<compile_context>
chip_gen: v7x
topology: tpu7x:2x2x1
jax: 0.10.0
libtpu: 0.0.40
codegen_flags: <defaults>
</compile_context>

<pallas_src>
import functools

import jax
import jax.numpy as jnp
from jax import lax
from jax.experimental import pallas as pl
from jax.experimental.pallas import tpu as pltpu


def _round_up(x, m):
    return ((x + m - 1) // m) * m


def _conv_cbam_kernel(w_sa_ref, x_ref, row_ref, col_ref, wc_ref, b_ref,
                      w1_ref, w2_ref, o_ref, *, C2, H, W, Wp):
    """One batch sample per grid step.

    w_sa_ref : SMEM (18,)  f32   3x3 spatial-attention taps (first 9 pre-scaled by 1/C2)
    x_ref    : VMEM (1, C1p, S)  padded input slab, S = H * Wp (lane-dense)
    row_ref  : VMEM (1, S) int32 spatial row index of each flattened position
    col_ref  : VMEM (1, S) int32 spatial col index of each flattened position
    wc_ref   : VMEM (C2, C1p) f32  1x1 conv weight with BN scale folded in
    b_ref    : VMEM (C2, 1)   f32  folded BN bias
    w1_ref   : VMEM (me, C2)  f32  channel-attention fc1
    w2_ref   : VMEM (C2, me)  f32  channel-attention fc2
    o_ref    : VMEM (1, C2, S)
    """
    S = H * Wp
    x2 = x_ref[0]                     # (C1p, S); promoted to f32 by the dot below
    row = row_ref[...]                # (1, S) int32
    col = col_ref[...]                # (1, S) int32
    w1 = w1_ref[...]
    w2 = w2_ref[...]

    # ---- 1x1 conv (+ folded inference BN) + hardswish, all in f32 ----
    y = jnp.dot(wc_ref[...], x2, preferred_element_type=jnp.float32)   # (C2, S)
    y = y + b_ref[...]
    y = y * (jnp.clip(y + 3.0, 0.0, 6.0) * (1.0 / 6.0))                # hardswish

    # ---- channel attention (masked global pooling + 2-layer MLP) ----
    valid = col < W                   # lanes >= W are padding; all rows are real
    sum_sp = jnp.sum(jnp.where(valid, y, 0.0), axis=1, keepdims=True)          # (C2, 1)
    max_sp = jnp.max(jnp.where(valid, y, -jnp.inf), axis=1, keepdims=True)     # (C2, 1)
    avg_sp = sum_sp * (1.0 / (H * W))

    def _mlp(v):                      # v: (C2, 1) -> (C2, 1)
        h = jnp.maximum(jnp.dot(w1, v, preferred_element_type=jnp.float32), 0.0)
        return jnp.dot(w2, h, preferred_element_type=jnp.float32)

    gate = jax.nn.sigmoid(_mlp(avg_sp) + _mlp(max_sp))                 # (C2, 1)
    y_g = y * gate                                                     # (C2, S) gated activations

    # ---- spatial attention ----
    # Channel sum (1/C2 is folded into the first 9 taps) and channel max, computed
    # on the VMEM/vreg-resident gated slab (the HBM input was only read once).
    f_sum = jnp.where(valid, jnp.sum(y_g, axis=0, keepdims=True), 0.0)  # (1, S)
    f_max = jnp.where(valid, jnp.max(y_g, axis=0, keepdims=True), 0.0)  # (1, S)

    # 3x3 taps: a shift by (di, dj) in (H, W) space is a single lane roll by
    # di*Wp + dj in the flattened layout; wraparound / out-of-range taps are
    # masked with the precomputed row/col index arrays (VPU selects).
    taps = []
    for di in (-1, 0, 1):
        for dj in (-1, 0, 1):
            cond = None
            if di == 1:
                cond = row < (H - 1)
            elif di == -1:
                cond = row >= 1
            if dj == 1:
                cc = col < (W - 1)
                cond = cc if cond is None else (cond & cc)
            elif dj == -1:
                cc = col >= 1
                cond = cc if cond is None else (cond & cc)
            shift = (-(di * Wp + dj)) % S
            taps.append(((di + 1) * 3 + (dj + 1), shift, cond))

    acc = jnp.zeros((1, S), jnp.float32)
    for ci, feat in enumerate((f_sum, f_max)):        # conv input channel order: [avg, max]
        for k_idx, shift, cond in taps:
            t = feat if shift == 0 else pltpu.roll(feat, shift, axis=1)
            if cond is not None:
                t = jnp.where(cond, t, 0.0)
            acc = acc + w_sa_ref[ci * 9 + k_idx] * t   # scalar (SMEM) x vector MAC

    sa = jax.nn.sigmoid(acc)                           # (1, S)

    # Full-width, lane-dense store of the whole (C2, S) block.
    o_ref[0] = (y_g * sa).astype(o_ref.dtype)


def conv_cbam_forward(x, conv_w, bn_gamma, bn_beta, bn_mean, bn_var,
                      ca_w1, ca_w2, sa_w, *, eps=1e-5):
    """x: (N, C1, H, W). Returns (N, C2, H, W) — Conv_CBAM forward (inference BN)."""
    N, C1, H, W = x.shape
    C2 = conv_w.shape[0]
    me = ca_w1.shape[0]
    assert conv_w.shape == (C2, C1, 1, 1)
    assert ca_w1.shape == (me, C2, 1, 1) and ca_w2.shape == (C2, me, 1, 1)
    assert sa_w.shape == (1, 2, 3, 3)

    # ---- host-side folding / layout plumbing (done once, outside the kernel) ----
    Wp = _round_up(W, 128)            # lane-dense minor dim
    C1p = _round_up(C1, 8)            # sublane-aligned contraction dim
    S = H * Wp

    scale = bn_gamma / jnp.sqrt(bn_var + eps)
    wc = (conv_w[:, :, 0, 0] * scale[:, None]).astype(jnp.float32)       # (C2, C1)
    wc = jnp.pad(wc, ((0, 0), (0, C1p - C1)))                            # (C2, C1p)
    b = (bn_beta - scale * bn_mean).astype(jnp.float32).reshape(C2, 1)

    w1 = ca_w1[:, :, 0, 0].astype(jnp.float32)                           # (me, C2)
    w2 = ca_w2[:, :, 0, 0].astype(jnp.float32)                           # (C2, me)

    w_sa = sa_w.reshape(-1).astype(jnp.float32)                          # (18,)
    w_sa = w_sa.at[:9].multiply(1.0 / C2)   # fold 1/C of the channel mean into the taps

    x_p = jnp.pad(x, ((0, 0), (0, C1p - C1), (0, 0), (0, Wp - W)))
    x_p = x_p.reshape(N, C1p, S)                                         # lane-dense slab

    pos = jnp.arange(S, dtype=jnp.int32)
    row_idx = (pos // Wp).reshape(1, S)
    col_idx = (pos % Wp).reshape(1, S)

    kernel = functools.partial(_conv_cbam_kernel, C2=C2, H=H, W=W, Wp=Wp)

    itemsize = x.dtype.itemsize
    flops_per_sample = 2 * C1p * C2 * S + 14 * C2 * S + 90 * S
    cost = pl.CostEstimate(
        flops=int(N * flops_per_sample),
        transcendentals=int(N * (S + 4 * C2)),
        bytes_accessed=int(N * C1p * S * itemsize + N * C2 * S * itemsize
                           + 4 * (wc.size + b.size + w1.size + w2.size + w_sa.size)
                           + 2 * S * 4))

    vmem_need = (2 * C1p * S * 4            # double-buffered input block
                 + 2 * C2 * S * itemsize    # double-buffered output block
                 + 10 * C2 * S * 4          # in-kernel f32 temporaries
                 + (1 << 20))
    vmem_limit = int(min(max(vmem_need, 8 * 1024 * 1024), 48 * 1024 * 1024))

    out_p = pl.pallas_call(
        kernel,
        out_shape=jax.ShapeDtypeStruct((N, C2, S), x.dtype),
        grid_spec=pltpu.PrefetchScalarGridSpec(
            num_scalar_prefetch=1,
            grid=(N,),
            in_specs=[
                pl.BlockSpec((1, C1p, S), lambda n, wsa: (n, 0, 0)),   # x
                pl.BlockSpec((1, S), lambda n, wsa: (0, 0)),           # row_idx
                pl.BlockSpec((1, S), lambda n, wsa: (0, 0)),           # col_idx
                pl.BlockSpec((C2, C1p), lambda n, wsa: (0, 0)),        # folded conv weight
                pl.BlockSpec((C2, 1), lambda n, wsa: (0, 0)),          # folded BN bias
                pl.BlockSpec((me, C2), lambda n, wsa: (0, 0)),         # CA fc1
                pl.BlockSpec((C2, me), lambda n, wsa: (0, 0)),         # CA fc2
            ],
            out_specs=pl.BlockSpec((1, C2, S), lambda n, wsa: (n, 0, 0)),
        ),
        compiler_params=pltpu.CompilerParams(
            dimension_semantics=("parallel",),
            vmem_limit_bytes=vmem_limit),
        cost_estimate=cost,
    )(w_sa, x_p, row_idx, col_idx, wc, b, w1, w2)

    # un-pad / restore NCHW (wrapper-side layout plumbing)
    return out_p.reshape(N, C2, H, Wp)[:, :, :, :W]


def conv_cbam_reference(x, conv_w, bn_gamma, bn_beta, bn_mean, bn_var,
                        ca_w1, ca_w2, sa_w, eps=1e-5):
    """Pure-JAX reference mirroring the PyTorch Conv_CBAM forward (inference BN)."""
    y = lax.conv_general_dilated(x, conv_w, (1, 1), "VALID",
                                 dimension_numbers=("NCHW", "OIHW", "NCHW"))
    scale = (bn_gamma / jnp.sqrt(bn_var + eps))[None, :, None, None]
    y = scale * (y - bn_mean[None, :, None, None]) + bn_beta[None, :, None, None]
    y = y * jnp.clip(y + 3.0, 0.0, 6.0) / 6.0                            # hardswish
    # channel attention (reduction folded into weight shapes)
    avg = jnp.mean(y, axis=(2, 3))
    mx = jnp.max(y, axis=(2, 3))
    w1 = ca_w1[:, :, 0, 0]
    w2 = ca_w2[:, :, 0, 0]

    def mlp(v):
        return jnp.maximum(v @ w1.T, 0.0) @ w2.T

    gate = jax.nn.sigmoid(mlp(avg) + mlp(mx))
    y = y * gate[:, :, None, None]
    # spatial attention
    avg_c = jnp.mean(y, axis=1, keepdims=True)
    max_c = jnp.max(y, axis=1, keepdims=True)
    s = lax.conv_general_dilated(jnp.concatenate([avg_c, max_c], axis=1), sa_w,
                                 (1, 1), ((1, 1), (1, 1)),
                                 dimension_numbers=("NCHW", "OIHW", "NCHW"))
    return y * jax.nn.sigmoid(s)


if __name__ == "__main__":
    key = jax.random.PRNGKey(0)
    ks = jax.random.split(key, 9)

    N, C1, C2, H, W = 2, 4, 8, 16, 16
    reduction = 1                      # Conv_CBAM uses ChannelAttention(c2, reduction=1)
    me = C2 // reduction

    x = jax.random.normal(ks[0], (N, C1, H, W), dtype=jnp.float32)
    conv_w = 0.3 * jax.random.normal(ks[1], (C2, C1, 1, 1), dtype=jnp.float32)
    bn_gamma = 1.0 + 0.1 * jax.random.normal(ks[2], (C2,), dtype=jnp.float32)
    bn_beta = 0.1 * jax.random.normal(ks[3], (C2,), dtype=jnp.float32)
    bn_mean = 0.1 * jax.random.normal(ks[4], (C2,), dtype=jnp.float32)
    bn_var = jnp.abs(jax.random.normal(ks[5], (C2,), dtype=jnp.float32)) + 0.5
    ca_w1 = 0.3 * jax.random.normal(ks[6], (me, C2, 1, 1), dtype=jnp.float32)
    ca_w2 = 0.3 * jax.random.normal(ks[7], (C2, me, 1, 1), dtype=jnp.float32)
    sa_w = 0.2 * jax.random.normal(ks[8], (1, 2, 3, 3), dtype=jnp.float32)

    out = conv_cbam_forward(x, conv_w, bn_gamma, bn_beta, bn_mean, bn_var,
                            ca_w1, ca_w2, sa_w)
    out = jax.block_until_ready(out)

    ref = conv_cbam_reference(x, conv_w, bn_gamma, bn_beta, bn_mean, bn_var,
                              ca_w1, ca_w2, sa_w)
    assert out.shape == (N, C2, H, W)
    max_err = jnp.max(jnp.abs(out - ref))
    assert jnp.allclose(out, ref, rtol=1e-4, atol=1e-4), (
        f"mismatch vs reference: max abs err {max_err}")
    print("KERNEL_OK")
</pallas_src>

<mosaic_0001>
module attributes {stable_mosaic.version = 11 : i64} {
  func.func @_conv_cbam_kernel(%arg0: i32, %arg1: memref<18xf32, #tpu.memory_space<smem>>, %arg2: memref<1x8x2048xf32, #tpu.memory_space<vmem>>, %arg3: memref<1x2048xi32, #tpu.memory_space<vmem>>, %arg4: memref<1x2048xi32, #tpu.memory_space<vmem>>, %arg5: memref<8x8xf32, #tpu.memory_space<vmem>>, %arg6: memref<8x1xf32, #tpu.memory_space<vmem>>, %arg7: memref<8x8xf32, #tpu.memory_space<vmem>>, %arg8: memref<8x8xf32, #tpu.memory_space<vmem>>, %arg9: memref<1x8x2048xf32, #tpu.memory_space<vmem>>) attributes {dimension_semantics = [#tpu.dimension_semantics<parallel>], iteration_bounds = array<i64: 2>, scalar_prefetch = 1 : i64, scratch_operands = 0 : i64, tpu.core_type = #tpu.core_type<tc>, window_params = [{transform_indices = @transform_0, window_bounds = array<i64: 1, 8, 2048>}, {pipeline_mode = #tpu.pipeline_mode<synchronous>, transform_indices = @transform_1, window_bounds = array<i64: 1, 2048>}, {pipeline_mode = #tpu.pipeline_mode<synchronous>, transform_indices = @transform_2, window_bounds = array<i64: 1, 2048>}, {pipeline_mode = #tpu.pipeline_mode<synchronous>, transform_indices = @transform_3, window_bounds = array<i64: 8, 8>}, {pipeline_mode = #tpu.pipeline_mode<synchronous>, transform_indices = @transform_4, window_bounds = array<i64: 8, 1>}, {pipeline_mode = #tpu.pipeline_mode<synchronous>, transform_indices = @transform_5, window_bounds = array<i64: 8, 8>}, {pipeline_mode = #tpu.pipeline_mode<synchronous>, transform_indices = @transform_6, window_bounds = array<i64: 8, 8>}, {transform_indices = @transform_7, window_bounds = array<i64: 1, 8, 2048>}]} {
    %c0 = arith.constant 0 : index
    %c0_0 = arith.constant 0 : index
    %c0_1 = arith.constant 0 : index
    %0 = vector.load %arg2[%c0, %c0_0, %c0_1] : memref<1x8x2048xf32, #tpu.memory_space<vmem>>, vector<1x8x2048xf32>
    %1 = vector.shape_cast %0 : vector<1x8x2048xf32> to vector<8x2048xf32>
    %c0_2 = arith.constant 0 : index
    %c0_3 = arith.constant 0 : index
    %2 = vector.load %arg3[%c0_2, %c0_3] : memref<1x2048xi32, #tpu.memory_space<vmem>>, vector<1x2048xi32>
    %c0_4 = arith.constant 0 : index
    %c0_5 = arith.constant 0 : index
    %3 = vector.load %arg4[%c0_4, %c0_5] : memref<1x2048xi32, #tpu.memory_space<vmem>>, vector<1x2048xi32>
    %c0_6 = arith.constant 0 : index
    %c0_7 = arith.constant 0 : index
    %4 = vector.load %arg7[%c0_6, %c0_7] : memref<8x8xf32, #tpu.memory_space<vmem>>, vector<8x8xf32>
    %c0_8 = arith.constant 0 : index
    %c0_9 = arith.constant 0 : index
    %5 = vector.load %arg8[%c0_8, %c0_9] : memref<8x8xf32, #tpu.memory_space<vmem>>, vector<8x8xf32>
    %c0_10 = arith.constant 0 : index
    %c0_11 = arith.constant 0 : index
    %6 = vector.load %arg5[%c0_10, %c0_11] : memref<8x8xf32, #tpu.memory_space<vmem>>, vector<8x8xf32>
    %cst = arith.constant dense<0.000000e+00> : vector<8x2048xf32>
    %7 = tpu.matmul %6, %1, %cst {dimension_numbers = #tpu.dot_dimension_numbers<[1], [0], [0], [1], [0, 0, 1, 1], [], []>} : vector<8x8xf32>, vector<8x2048xf32>, vector<8x2048xf32> -> vector<8x2048xf32>
    %c0_12 = arith.constant 0 : index
    %c0_13 = arith.constant 0 : index
    %8 = vector.load %arg6[%c0_12, %c0_13] : memref<8x1xf32, #tpu.memory_space<vmem>>, vector<8x1xf32>
    %9 = vector.broadcast %8 : vector<8x1xf32> to vector<8x2048xf32>
    %10 = arith.addf %7, %9 : vector<8x2048xf32>
    %cst_14 = arith.constant 3.000000e+00 : f32
    %11 = vector.broadcast %cst_14 : f32 to vector<8x2048xf32>
    %12 = arith.addf %10, %11 : vector<8x2048xf32>
    %cst_15 = arith.constant 0.000000e+00 : f32
    %cst_16 = arith.constant 6.000000e+00 : f32
    %13 = vector.broadcast %cst_15 : f32 to vector<8x2048xf32>
    %14 = arith.maximumf %13, %12 : vector<8x2048xf32>
    %15 = vector.broadcast %cst_16 : f32 to vector<8x2048xf32>
    %16 = arith.minimumf %15, %14 : vector<8x2048xf32>
    %cst_17 = arith.constant 0.166666672 : f32
    %17 = vector.broadcast %cst_17 : f32 to vector<8x2048xf32>
    %18 = arith.mulf %16, %17 : vector<8x2048xf32>
    %19 = arith.mulf %10, %18 : vector<8x2048xf32>
    %c16_i32 = arith.constant 16 : i32
    %20 = vector.broadcast %c16_i32 : i32 to vector<1x2048xi32>
    %21 = arith.cmpi slt, %3, %20 : vector<1x2048xi32>
    %cst_18 = arith.constant 0.000000e+00 : f32
    %22 = vector.shape_cast %21 : vector<1x2048xi1> to vector<1x2048xi1>
    %23 = vector.broadcast %22 : vector<1x2048xi1> to vector<8x2048xi1>
    %24 = vector.broadcast %cst_18 : f32 to vector<8x2048xf32>
    %25 = arith.select %23, %19, %24 : vector<8x2048xi1>, vector<8x2048xf32>
    %cst_19 = arith.constant dense<0.000000e+00> : vector<8xf32>
    %26 = vector.multi_reduction <add>, %25, %cst_19 [1] : vector<8x2048xf32> to vector<8xf32>
    %27 = vector.shape_cast %26 : vector<8xf32> to vector<8x1xf32>
    %cst_20 = arith.constant 0xFF800000 : f32
    %28 = vector.shape_cast %21 : vector<1x2048xi1> to vector<1x2048xi1>
    %29 = vector.broadcast %28 : vector<1x2048xi1> to vector<8x2048xi1>
    %30 = vector.broadcast %cst_20 : f32 to vector<8x2048xf32>
    %31 = arith.select %29, %19, %30 : vector<8x2048xi1>, vector<8x2048xf32>
    %cst_21 = arith.constant dense<0xFF800000> : vector<8xf32>
    %32 = vector.multi_reduction <maximumf>, %31, %cst_21 [1] : vector<8x2048xf32> to vector<8xf32>
    %33 = vector.shape_cast %32 : vector<8xf32> to vector<8x1xf32>
    %cst_22 = arith.constant 3.906250e-03 : f32
    %34 = vector.broadcast %cst_22 : f32 to vector<8x1xf32>
    %35 = arith.mulf %27, %34 : vector<8x1xf32>
    %cst_23 = arith.constant dense<0.000000e+00> : vector<8x1xf32>
    %36 = tpu.matmul %4, %35, %cst_23 {dimension_numbers = #tpu.dot_dimension_numbers<[1], [0], [0], [1], [0, 0, 1, 1], [], []>} : vector<8x8xf32>, vector<8x1xf32>, vector<8x1xf32> -> vector<8x1xf32>
    %cst_24 = arith.constant 0.000000e+00 : f32
    %37 = vector.broadcast %cst_24 : f32 to vector<8x1xf32>
    %38 = arith.maximumf %36, %37 : vector<8x1xf32>
    %cst_25 = arith.constant dense<0.000000e+00> : vector<8x1xf32>
    %39 = tpu.matmul %5, %38, %cst_25 {dimension_numbers = #tpu.dot_dimension_numbers<[1], [0], [0], [1], [0, 0, 1, 1], [], []>} : vector<8x8xf32>, vector<8x1xf32>, vector<8x1xf32> -> vector<8x1xf32>
    %cst_26 = arith.constant dense<0.000000e+00> : vector<8x1xf32>
    %40 = tpu.matmul %4, %33, %cst_26 {dimension_numbers = #tpu.dot_dimension_numbers<[1], [0], [0], [1], [0, 0, 1, 1], [], []>} : vector<8x8xf32>, vector<8x1xf32>, vector<8x1xf32> -> vector<8x1xf32>
    %cst_27 = arith.constant 0.000000e+00 : f32
    %41 = vector.broadcast %cst_27 : f32 to vector<8x1xf32>
    %42 = arith.maximumf %40, %41 : vector<8x1xf32>
    %cst_28 = arith.constant dense<0.000000e+00> : vector<8x1xf32>
    %43 = tpu.matmul %5, %42, %cst_28 {dimension_numbers = #tpu.dot_dimension_numbers<[1], [0], [0], [1], [0, 0, 1, 1], [], []>} : vector<8x8xf32>, vector<8x1xf32>, vector<8x1xf32> -> vector<8x1xf32>
    %44 = arith.addf %39, %43 : vector<8x1xf32>
    %45 = arith.negf %44 : vector<8x1xf32>
    %46 = math.exp %45 : vector<8x1xf32>
    %cst_29 = arith.constant 1.000000e+00 : f32
    %47 = vector.broadcast %cst_29 : f32 to vector<8x1xf32>
    %48 = arith.addf %47, %46 : vector<8x1xf32>
    %49 = arith.divf %47, %48 : vector<8x1xf32>
    %50 = vector.broadcast %49 : vector<8x1xf32> to vector<8x2048xf32>
    %51 = arith.mulf %19, %50 : vector<8x2048xf32>
    %cst_30 = arith.constant dense<0.000000e+00> : vector<2048xf32>
    %52 = vector.multi_reduction <add>, %51, %cst_30 [0] : vector<8x2048xf32> to vector<2048xf32>
    %53 = vector.shape_cast %52 : vector<2048xf32> to vector<1x2048xf32>
    %cst_31 = arith.constant 0.000000e+00 : f32
    %54 = vector.broadcast %cst_31 : f32 to vector<1x2048xf32>
    %55 = arith.select %21, %53, %54 : vector<1x2048xi1>, vector<1x2048xf32>
    %cst_32 = arith.constant dense<0xFF800000> : vector<2048xf32>
    %56 = vector.multi_reduction <maximumf>, %51, %cst_32 [0] : vector<8x2048xf32> to vector<2048xf32>
    %57 = vector.shape_cast %56 : vector<2048xf32> to vector<1x2048xf32>
    %cst_33 = arith.constant 0.000000e+00 : f32
    %58 = vector.broadcast %cst_33 : f32 to vector<1x2048xf32>
    %59 = arith.select %21, %57, %58 : vector<1x2048xi1>, vector<1x2048xf32>
    %c1_i32 = arith.constant 1 : i32
    %60 = vector.broadcast %c1_i32 : i32 to vector<1x2048xi32>
    %61 = arith.cmpi sge, %2, %60 : vector<1x2048xi32>
    %c1_i32_34 = arith.constant 1 : i32
    %62 = vector.broadcast %c1_i32_34 : i32 to vector<1x2048xi32>
    %63 = arith.cmpi sge, %3, %62 : vector<1x2048xi32>
    %64 = arith.andi %61, %63 : vector<1x2048xi1>
    %c1_i32_35 = arith.constant 1 : i32
    %65 = vector.broadcast %c1_i32_35 : i32 to vector<1x2048xi32>
    %66 = arith.cmpi sge, %2, %65 : vector<1x2048xi32>
    %c1_i32_36 = arith.constant 1 : i32
    %67 = vector.broadcast %c1_i32_36 : i32 to vector<1x2048xi32>
    %68 = arith.cmpi sge, %2, %67 : vector<1x2048xi32>
    %c15_i32 = arith.constant 15 : i32
    %69 = vector.broadcast %c15_i32 : i32 to vector<1x2048xi32>
    %70 = arith.cmpi slt, %3, %69 : vector<1x2048xi32>
    %71 = arith.andi %68, %70 : vector<1x2048xi1>
    %c1_i32_37 = arith.constant 1 : i32
    %72 = vector.broadcast %c1_i32_37 : i32 to vector<1x2048xi32>
    %73 = arith.cmpi sge, %3, %72 : vector<1x2048xi32>
    %c15_i32_38 = arith.constant 15 : i32
    %74 = vector.broadcast %c15_i32_38 : i32 to vector<1x2048xi32>
    %75 = arith.cmpi slt, %3, %74 : vector<1x2048xi32>
    %c15_i32_39 = arith.constant 15 : i32
    %76 = vector.broadcast %c15_i32_39 : i32 to vector<1x2048xi32>
    %77 = arith.cmpi slt, %2, %76 : vector<1x2048xi32>
    %c1_i32_40 = arith.constant 1 : i32
    %78 = vector.broadcast %c1_i32_40 : i32 to vector<1x2048xi32>
    %79 = arith.cmpi sge, %3, %78 : vector<1x2048xi32>
    %80 = arith.andi %77, %79 : vector<1x2048xi1>
    %c15_i32_41 = arith.constant 15 : i32
    %81 = vector.broadcast %c15_i32_41 : i32 to vector<1x2048xi32>
    %82 = arith.cmpi slt, %2, %81 : vector<1x2048xi32>
    %c15_i32_42 = arith.constant 15 : i32
    %83 = vector.broadcast %c15_i32_42 : i32 to vector<1x2048xi32>
    %84 = arith.cmpi slt, %2, %83 : vector<1x2048xi32>
    %c15_i32_43 = arith.constant 15 : i32
    %85 = vector.broadcast %c15_i32_43 : i32 to vector<1x2048xi32>
    %86 = arith.cmpi slt, %3, %85 : vector<1x2048xi32>
    %87 = arith.andi %84, %86 : vector<1x2048xi1>
    %cst_44 = arith.constant 0.000000e+00 : f32
    %88 = vector.broadcast %cst_44 : f32 to vector<1x2048xf32>
    %c129_i32 = arith.constant 129 : i32
    %89 = tpu.dynamic_rotate %55 by %c129_i32 dim 1 : vector<1x2048xf32>, i32 -> vector<1x2048xf32>
    %cst_45 = arith.constant 0.000000e+00 : f32
    %90 = vector.broadcast %cst_45 : f32 to vector<1x2048xf32>
    %91 = arith.select %64, %89, %90 : vector<1x2048xi1>, vector<1x2048xf32>
    %c0_46 = arith.constant 0 : index
    %92 = memref.load %arg1[%c0_46] : memref<18xf32, #tpu.memory_space<smem>>
    %93 = vector.broadcast %92 : f32 to vector<1x2048xf32>
    %94 = arith.mulf %93, %91 : vector<1x2048xf32>
    %95 = arith.addf %88, %94 : vector<1x2048xf32>
    %c128_i32 = arith.constant 128 : i32
    %96 = tpu.dynamic_rotate %55 by %c128_i32 dim 1 : vector<1x2048xf32>, i32 -> vector<1x2048xf32>
    %cst_47 = arith.constant 0.000000e+00 : f32
    %97 = vector.broadcast %cst_47 : f32 to vector<1x2048xf32>
    %98 = arith.select %66, %96, %97 : vector<1x2048xi1>, vector<1x2048xf32>
    %c1 = arith.constant 1 : index
    %99 = memref.load %arg1[%c1] : memref<18xf32, #tpu.memory_space<smem>>
    %100 = vector.broadcast %99 : f32 to vector<1x2048xf32>
    %101 = arith.mulf %100, %98 : vector<1x2048xf32>
    %102 = arith.addf %95, %101 : vector<1x2048xf32>
    %c127_i32 = arith.constant 127 : i32
    %103 = tpu.dynamic_rotate %55 by %c127_i32 dim 1 : vector<1x2048xf32>, i32 -> vector<1x2048xf32>
    %cst_48 = arith.constant 0.000000e+00 : f32
    %104 = vector.broadcast %cst_48 : f32 to vector<1x2048xf32>
    %105 = arith.select %71, %103, %104 : vector<1x2048xi1>, vector<1x2048xf32>
    %c2 = arith.constant 2 : index
    %106 = memref.load %arg1[%c2] : memref<18xf32, #tpu.memory_space<smem>>
    %107 = vector.broadcast %106 : f32 to vector<1x2048xf32>
    %108 = arith.mulf %107, %105 : vector<1x2048xf32>
    %109 = arith.addf %102, %108 : vector<1x2048xf32>
    %c1_i32_49 = arith.constant 1 : i32
    %110 = tpu.dynamic_rotate %55 by %c1_i32_49 dim 1 : vector<1x2048xf32>, i32 -> vector<1x2048xf32>
    %cst_50 = arith.constant 0.000000e+00 : f32
    %111 = vector.broadcast %cst_50 : f32 to vector<1x2048xf32>
    %112 = arith.select %73, %110, %111 : vector<1x2048xi1>, vector<1x2048xf32>
    %c3 = arith.constant 3 : index
    %113 = memref.load %arg1[%c3] : memref<18xf32, #tpu.memory_space<smem>>
    %114 = vector.broadcast %113 : f32 to vector<1x2048xf32>
    %115 = arith.mulf %114, %112 : vector<1x2048xf32>
    %116 = arith.addf %109, %115 : vector<1x2048xf32>
    %c4 = arith.constant 4 : index
    %117 = memref.load %arg1[%c4] : memref<18xf32, #tpu.memory_space<smem>>
    %118 = vector.broadcast %117 : f32 to vector<1x2048xf32>
    %119 = arith.mulf %118, %55 : vector<1x2048xf32>
    %120 = arith.addf %116, %119 : vector<1x2048xf32>
    %c2047_i32 = arith.constant 2047 : i32
    %121 = tpu.dynamic_rotate %55 by %c2047_i32 dim 1 : vector<1x2048xf32>, i32 -> vector<1x2048xf32>
    %cst_51 = arith.constant 0.000000e+00 : f32
    %122 = vector.broadcast %cst_51 : f32 to vector<1x2048xf32>
    %123 = arith.select %75, %121, %122 : vector<1x2048xi1>, vector<1x2048xf32>
    %c5 = arith.constant 5 : index
    %124 = memref.load %arg1[%c5] : memref<18xf32, #tpu.memory_space<smem>>
    %125 = vector.broadcast %124 : f32 to vector<1x2048xf32>
    %126 = arith.mulf %125, %123 : vector<1x2048xf32>
    %127 = arith.addf %120, %126 : vector<1x2048xf32>
    %c1921_i32 = arith.constant 1921 : i32
    %128 = tpu.dynamic_rotate %55 by %c1921_i32 dim 1 : vector<1x2048xf32>, i32 -> vector<1x2048xf32>
    %cst_52 = arith.constant 0.000000e+00 : f32
    %129 = vector.broadcast %cst_52 : f32 to vector<1x2048xf32>
    %130 = arith.select %80, %128, %129 : vector<1x2048xi1>, vector<1x2048xf32>
    %c6 = arith.constant 6 : index
    %131 = memref.load %arg1[%c6] : memref<18xf32, #tpu.memory_space<smem>>
    %132 = vector.broadcast %131 : f32 to vector<1x2048xf32>
    %133 = arith.mulf %132, %130 : vector<1x2048xf32>
    %134 = arith.addf %127, %133 : vector<1x2048xf32>
    %c1920_i32 = arith.constant 1920 : i32
    %135 = tpu.dynamic_rotate %55 by %c1920_i32 dim 1 : vector<1x2048xf32>, i32 -> vector<1x2048xf32>
    %cst_53 = arith.constant 0.000000e+00 : f32
    %136 = vector.broadcast %cst_53 : f32 to vector<1x2048xf32>
    %137 = arith.select %82, %135, %136 : vector<1x2048xi1>, vector<1x2048xf32>
    %c7 = arith.constant 7 : index
    %138 = memref.load %arg1[%c7] : memref<18xf32, #tpu.memory_space<smem>>
    %139 = vector.broadcast %138 : f32 to vector<1x2048xf32>
    %140 = arith.mulf %139, %137 : vector<1x2048xf32>
    %141 = arith.addf %134, %140 : vector<1x2048xf32>
    %c1919_i32 = arith.constant 1919 : i32
    %142 = tpu.dynamic_rotate %55 by %c1919_i32 dim 1 : vector<1x2048xf32>, i32 -> vector<1x2048xf32>
    %cst_54 = arith.constant 0.000000e+00 : f32
    %143 = vector.broadcast %cst_54 : f32 to vector<1x2048xf32>
    %144 = arith.select %87, %142, %143 : vector<1x2048xi1>, vector<1x2048xf32>
    %c8 = arith.constant 8 : index
    %145 = memref.load %arg1[%c8] : memref<18xf32, #tpu.memory_space<smem>>
    %146 = vector.broadcast %145 : f32 to vector<1x2048xf32>
    %147 = arith.mulf %146, %144 : vector<1x2048xf32>
    %148 = arith.addf %141, %147 : vector<1x2048xf32>
    %c129_i32_55 = arith.constant 129 : i32
    %149 = tpu.dynamic_rotate %59 by %c129_i32_55 dim 1 : vector<1x2048xf32>, i32 -> vector<1x2048xf32>
    %cst_56 = arith.constant 0.000000e+00 : f32
    %150 = vector.broadcast %cst_56 : f32 to vector<1x2048xf32>
    %151 = arith.select %64, %149, %150 : vector<1x2048xi1>, vector<1x2048xf32>
    %c9 = arith.constant 9 : index
    %152 = memref.load %arg1[%c9] : memref<18xf32, #tpu.memory_space<smem>>
    %153 = vector.broadcast %152 : f32 to vector<1x2048xf32>
    %154 = arith.mulf %153, %151 : vector<1x2048xf32>
    %155 = arith.addf %148, %154 : vector<1x2048xf32>
    %c128_i32_57 = arith.constant 128 : i32
    %156 = tpu.dynamic_rotate %59 by %c128_i32_57 dim 1 : vector<1x2048xf32>, i32 -> vector<1x2048xf32>
    %cst_58 = arith.constant 0.000000e+00 : f32
    %157 = vector.broadcast %cst_58 : f32 to vector<1x2048xf32>
    %158 = arith.select %66, %156, %157 : vector<1x2048xi1>, vector<1x2048xf32>
    %c10 = arith.constant 10 : index
    %159 = memref.load %arg1[%c10] : memref<18xf32, #tpu.memory_space<smem>>
    %160 = vector.broadcast %159 : f32 to vector<1x2048xf32>
    %161 = arith.mulf %160, %158 : vector<1x2048xf32>
    %162 = arith.addf %155, %161 : vector<1x2048xf32>
    %c127_i32_59 = arith.constant 127 : i32
    %163 = tpu.dynamic_rotate %59 by %c127_i32_59 dim 1 : vector<1x2048xf32>, i32 -> vector<1x2048xf32>
    %cst_60 = arith.constant 0.000000e+00 : f32
    %164 = vector.broadcast %cst_60 : f32 to vector<1x2048xf32>
    %165 = arith.select %71, %163, %164 : vector<1x2048xi1>, vector<1x2048xf32>
    %c11 = arith.constant 11 : index
    %166 = memref.load %arg1[%c11] : memref<18xf32, #tpu.memory_space<smem>>
    %167 = vector.broadcast %166 : f32 to vector<1x2048xf32>
    %168 = arith.mulf %167, %165 : vector<1x2048xf32>
    %169 = arith.addf %162, %168 : vector<1x2048xf32>
    %c1_i32_61 = arith.constant 1 : i32
    %170 = tpu.dynamic_rotate %59 by %c1_i32_61 dim 1 : vector<1x2048xf32>, i32 -> vector<1x2048xf32>
    %cst_62 = arith.constant 0.000000e+00 : f32
    %171 = vector.broadcast %cst_62 : f32 to vector<1x2048xf32>
    %172 = arith.select %73, %170, %171 : vector<1x2048xi1>, vector<1x2048xf32>
    %c12 = arith.constant 12 : index
    %173 = memref.load %arg1[%c12] : memref<18xf32, #tpu.memory_space<smem>>
    %174 = vector.broadcast %173 : f32 to vector<1x2048xf32>
    %175 = arith.mulf %174, %172 : vector<1x2048xf32>
    %176 = arith.addf %169, %175 : vector<1x2048xf32>
    %c13 = arith.constant 13 : index
    %177 = memref.load %arg1[%c13] : memref<18xf32, #tpu.memory_space<smem>>
    %178 = vector.broadcast %177 : f32 to vector<1x2048xf32>
    %179 = arith.mulf %178, %59 : vector<1x2048xf32>
    %180 = arith.addf %176, %179 : vector<1x2048xf32>
    %c2047_i32_63 = arith.constant 2047 : i32
    %181 = tpu.dynamic_rotate %59 by %c2047_i32_63 dim 1 : vector<1x2048xf32>, i32 -> vector<1x2048xf32>
    %cst_64 = arith.constant 0.000000e+00 : f32
    %182 = vector.broadcast %cst_64 : f32 to vector<1x2048xf32>
    %183 = arith.select %75, %181, %182 : vector<1x2048xi1>, vector<1x2048xf32>
    %c14 = arith.constant 14 : index
    %184 = memref.load %arg1[%c14] : memref<18xf32, #tpu.memory_space<smem>>
    %185 = vector.broadcast %184 : f32 to vector<1x2048xf32>
    %186 = arith.mulf %185, %183 : vector<1x2048xf32>
    %187 = arith.addf %180, %186 : vector<1x2048xf32>
    %c1921_i32_65 = arith.constant 1921 : i32
    %188 = tpu.dynamic_rotate %59 by %c1921_i32_65 dim 1 : vector<1x2048xf32>, i32 -> vector<1x2048xf32>
    %cst_66 = arith.constant 0.000000e+00 : f32
    %189 = vector.broadcast %cst_66 : f32 to vector<1x2048xf32>
    %190 = arith.select %80, %188, %189 : vector<1x2048xi1>, vector<1x2048xf32>
    %c15 = arith.constant 15 : index
    %191 = memref.load %arg1[%c15] : memref<18xf32, #tpu.memory_space<smem>>
    %192 = vector.broadcast %191 : f32 to vector<1x2048xf32>
    %193 = arith.mulf %192, %190 : vector<1x2048xf32>
    %194 = arith.addf %187, %193 : vector<1x2048xf32>
    %c1920_i32_67 = arith.constant 1920 : i32
    %195 = tpu.dynamic_rotate %59 by %c1920_i32_67 dim 1 : vector<1x2048xf32>, i32 -> vector<1x2048xf32>
    %cst_68 = arith.constant 0.000000e+00 : f32
    %196 = vector.broadcast %cst_68 : f32 to vector<1x2048xf32>
    %197 = arith.select %82, %195, %196 : vector<1x2048xi1>, vector<1x2048xf32>
    %c16 = arith.constant 16 : index
    %198 = memref.load %arg1[%c16] : memref<18xf32, #tpu.memory_space<smem>>
    %199 = vector.broadcast %198 : f32 to vector<1x2048xf32>
    %200 = arith.mulf %199, %197 : vector<1x2048xf32>
    %201 = arith.addf %194, %200 : vector<1x2048xf32>
    %c1919_i32_69 = arith.constant 1919 : i32
    %202 = tpu.dynamic_rotate %59 by %c1919_i32_69 dim 1 : vector<1x2048xf32>, i32 -> vector<1x2048xf32>
    %cst_70 = arith.constant 0.000000e+00 : f32
    %203 = vector.broadcast %cst_70 : f32 to vector<1x2048xf32>
    %204 = arith.select %87, %202, %203 : vector<1x2048xi1>, vector<1x2048xf32>
    %c17 = arith.constant 17 : index
    %205 = memref.load %arg1[%c17] : memref<18xf32, #tpu.memory_space<smem>>
    %206 = vector.broadcast %205 : f32 to vector<1x2048xf32>
    %207 = arith.mulf %206, %204 : vector<1x2048xf32>
    %208 = arith.addf %201, %207 : vector<1x2048xf32>
    %209 = arith.negf %208 : vector<1x2048xf32>
    %210 = math.exp %209 : vector<1x2048xf32>
    %cst_71 = arith.constant 1.000000e+00 : f32
    %211 = vector.broadcast %cst_71 : f32 to vector<1x2048xf32>
    %212 = arith.addf %211, %210 : vector<1x2048xf32>
    %213 = arith.divf %211, %212 : vector<1x2048xf32>
    %214 = vector.broadcast %213 : vector<1x2048xf32> to vector<8x2048xf32>
    %215 = arith.mulf %51, %214 : vector<8x2048xf32>
    %c0_72 = arith.constant 0 : index
    %c0_73 = arith.constant 0 : index
    %c0_74 = arith.constant 0 : index
    %216 = vector.load %arg9[%c0_72, %c0_73, %c0_74] : memref<1x8x2048xf32, #tpu.memory_space<vmem>>, vector<1x8x2048xf32>
    %217 = vector.shape_cast %216 : vector<1x8x2048xf32> to vector<8x2048xf32>
    %218 = vector.shape_cast %215 : vector<8x2048xf32> to vector<1x8x2048xf32>
    tpu.vector_store %arg9[%c0_72, %c0_73, %c0_74], %218 {strides = array<i32>} : memref<1x8x2048xf32, #tpu.memory_space<vmem>>, vector<1x8x2048xf32>,
    return
  }
  func.func @transform_0(%arg0: i32, %arg1: memref<18xf32, #tpu.memory_space<smem>>) -> (i32, i32, i32) {
    %c0_i32 = arith.constant 0 : i32
    %c0_i32_0 = arith.constant 0 : i32
    %c0_i32_1 = arith.constant 0 : i32
    return %arg0, %c0_i32, %c0_i32_0 : i32, i32, i32
  }
  func.func @transform_1(%arg0: i32, %arg1: memref<18xf32, #tpu.memory_space<smem>>) -> (i32, i32) {
    %c0_i32 = arith.constant 0 : i32
    %c0_i32_0 = arith.constant 0 : i32
    %c0_i32_1 = arith.constant 0 : i32
    return %c0_i32, %c0_i32_0 : i32, i32
  }
  func.func @transform_2(%arg0: i32, %arg1: memref<18xf32, #tpu.memory_space<smem>>) -> (i32, i32) {
    %c0_i32 = arith.constant 0 : i32
    %c0_i32_0 = arith.constant 0 : i32
    %c0_i32_1 = arith.constant 0 : i32
    return %c0_i32, %c0_i32_0 : i32, i32
  }
  func.func @transform_3(%arg0: i32, %arg1: memref<18xf32, #tpu.memory_space<smem>>) -> (i32, i32) {
    %c0_i32 = arith.constant 0 : i32
    %c0_i32_0 = arith.constant 0 : i32
    %c0_i32_1 = arith.constant 0 : i32
    return %c0_i32, %c0_i32_0 : i32, i32
  }
  func.func @transform_4(%arg0: i32, %arg1: memref<18xf32, #tpu.memory_space<smem>>) -> (i32, i32) {
    %c0_i32 = arith.constant 0 : i32
    %c0_i32_0 = arith.constant 0 : i32
    %c0_i32_1 = arith.constant 0 : i32
    return %c0_i32, %c0_i32_0 : i32, i32
  }
  func.func @transform_5(%arg0: i32, %arg1: memref<18xf32, #tpu.memory_space<smem>>) -> (i32, i32) {
    %c0_i32 = arith.constant 0 : i32
    %c0_i32_0 = arith.constant 0 : i32
    %c0_i32_1 = arith.constant 0 : i32
    return %c0_i32, %c0_i32_0 : i32, i32
  }
  func.func @transform_6(%arg0: i32, %arg1: memref<18xf32, #tpu.memory_space<smem>>) -> (i32, i32) {
    %c0_i32 = arith.constant 0 : i32
    %c0_i32_0 = arith.constant 0 : i32
    %c0_i32_1 = arith.constant 0 : i32
    return %c0_i32, %c0_i32_0 : i32, i32
  }
  func.func @transform_7(%arg0: i32, %arg1: memref<18xf32, #tpu.memory_space<smem>>) -> (i32, i32, i32) {
    %c0_i32 = arith.constant 0 : i32
    %c0_i32_0 = arith.constant 0 : i32
    %c0_i32_1 = arith.constant 0 : i32
    return %arg0, %c0_i32, %c0_i32_0 : i32, i32, i32
  }
}

</mosaic_0001>

<llo_original>
// kernel: tpu_custom_call.1
$region0: #{tpu_custom_call.1}
  #allocation0 [shape = 'u32[]', space=smem, size = 0x4, offset = 0x4, fixed_abs, tag = 'smem constant byte address 0x4 - core index']
  #allocation1 [shape = 'u32[144,128]{1,0:T(1,128)}', space=vmem, size = 0x12000, scoped, tag = 'internal scratch']
  #allocation2 [shape = 's32[1]{0}', space=sflag, size = 0x4, scoped, tag = 'scoped memory for tpu_custom_call.1']
  #allocation3 [shape = 'u8[512]{0}', space=smem, size = 0x200, scoped, tag = 'prefetched SMEM operand 0']
  %s0 = inlined_call_operand.hbm [shape: f32[18], index: 0, kind: input, shape index: {}]
  %s1 = inlined_call_operand.hbm [shape: f32[2,8,2048], index: 1, kind: input, shape index: {}]
  %s2 = inlined_call_operand.vmem [shape: s32[1,2048], index: 2, kind: input, shape index: {}]
  %s3 = inlined_call_operand.hbm [shape: s32[1,2048], index: 3, kind: input, shape index: {}]
  %s4 = inlined_call_operand.vmem [shape: f32[8,8], index: 4, kind: input, shape index: {}]
  %s5 = inlined_call_operand.vmem [shape: f32[8,1], index: 5, kind: input, shape index: {}]
  %s6 = inlined_call_operand.hbm [shape: f32[8,8], index: 6, kind: input, shape index: {}]
  %s7 = inlined_call_operand.vmem [shape: f32[8,8], index: 7, kind: input, shape index: {}]
  %s8 = inlined_call_operand.hbm [shape: f32[2,8,2048], index: 8, kind: output, shape index: {}]
  %s9 = sld [smem:[#allocation0]]
  $region73: #{tpu_custom_call.1} parent=0
    _
  %s11 = ssub.s32 1, %s9
  %s12 = scalar_select 0, %s11, %s9
  %14 = dma.hbm_to_smem %s0, 16, [#allocation3], [#allocation2]
  %15 = dma.done [#allocation2], 16
  %16 = sfence
  $region1: #{tpu_custom_call.1} parent=0
    #allocation4 [shape = 'u8[131072]{0}', space=vmem, size = 0x20000, scoped, tag = 'input window, operand 1']
    #allocation5 [shape = 's32[2]{0}', space=sflag, size = 0x8, scoped, tag = 'scoped memory for tpu_custom_call.1']
    #allocation6 [shape = 's32[2]{0}', space=sflag, size = 0x8, scoped, tag = 'scoped memory for tpu_custom_call.1']
    #allocation7 [shape = 'u8[8192]{0}', space=vmem, size = 0x2000, scoped, tag = 'input window, operand 3, single buffered']
    #allocation8 [shape = 's32[1]{0}', space=sflag, size = 0x4, scoped, tag = 'scoped memory for tpu_custom_call.1']
    #allocation9 [shape = 'u8[4096]{0}', space=vmem, size = 0x1000, scoped, tag = 'input window, operand 6, single buffered']
    #allocation10 [shape = 'u8[131072]{0}', space=vmem, size = 0x20000, scoped, tag = 'output window, operand 0']
    %17 = vsyncpa [#allocation5], 0
    %s18 = scalar_lea.sflag [#allocation5], 1
    %19 = vsyncpa %s18, 0
    %20 = vsyncpa [#allocation8], 0
    %21 = vsyncpa [#allocation6], 0
    %s22 = scalar_lea.sflag [#allocation6], 1
    %23 = vsyncpa %s22, 0
    loop: start=0, step=1, limit=4
    $region2: #{tpu_custom_call.1} parent=1 // loop_pre_header
      _
    $region3: #{tpu_custom_call.1} parent=1 // loop_header
      %s25 = sphi 0, %s29
      %p26 = scmp.ge.s32.totalorder %s25, 4
      %s35 = sphi 0, %s37
      %s38 = sphi 0, %s35
      %s39 = sphi 0, %s38
      %s55 = sphi 0, %s39
      %s59 = sphi 0, %s59
      %s61 = sphi 0, %s59
      %s62 = sphi 0, %s61
      %s76 = sphi 0, %s62
      %s80 = sphi 0, %s80
      %s82 = sphi 0, %s80
      %s83 = sphi 0, %s82
      %s97 = sphi 0, %s83
      %s101 = sphi 0, %s101
      %s103 = sphi 0, %s101
      %s104 = sphi 0, %s103
      %s118 = sphi 0, %s104
      %s122 = sphi 0, %s122
      %s124 = sphi 0, %s122
      %s125 = sphi 0, %s124
      %s139 = sphi 0, %s125
      %s143 = sphi 0, %s143
      %s145 = sphi 0, %s143
      %s146 = sphi 0, %s145
      %s160 = sphi 0, %s146
      %s164 = sphi 0, %s164
      %s166 = sphi 0, %s164
      %s167 = sphi 0, %s166
      %s181 = sphi 0, %s167
      %s187 = sphi 0, %s189
      %s190 = sphi 0, %s187
      %s191 = sphi 0, %s190
      %s207 = sphi 0, %s191
    $region4: #{tpu_custom_call.1} parent=1 // loop_header_branch
      %28 = sbr.rel (%p26) target = $region8
    $region5: #{tpu_custom_call.1} parent=1 // loop_body
      %s30 = ssub.s32 %s25, 1
      %s31 = ssub.s32 %s25, 2
      %s32 = sadd.s32 %s25, 1
      %s33 = ssub.s32 %s25, %s32
      %p34 = scmp.eq.s32.totalorder %s33, 0
      %s36 = sadd.s32 %s35, 1
      %s37 = scalar_select %p34, %s35, %s36
      %p40 = pneg %p34
      %p41 = scmp.eq.s32.totalorder %s25, 1
      %p42 = por %p40, %p41
      %p43 = scmp.ne.s32.totalorder %s35, %s38
      %p44 = scmp.eq.s32.totalorder %s25, 0
      %p45 = por %p43, %p44
      %p46 = scmp.ne.s32.totalorder %s35, %s38
      %p47 = scmp.eq.s32.totalorder %s30, 1
      %p48 = por %p46, %p47
      %p49 = scmp.ne.s32.totalorder %s38, %s39
      %p50 = scmp.eq.s32.totalorder %s30, 0
      %p51 = por %p49, %p50
      %p52 = scmp.ne.s32.totalorder %s38, %s39
      %p53 = scmp.eq.s32.totalorder %s31, 1
      %p54 = por %p52, %p53
      %p56 = scmp.ne.s32.totalorder %s39, %s55
      %p57 = scmp.eq.s32.totalorder %s31, 0
      %p58 = por %p56, %p57
      %s60 = sadd.s32 %s59, 1
      %p63 = scmp.eq.s32.totalorder %s25, 1
      %p64 = scmp.ne.s32.totalorder %s59, %s61
      %p65 = scmp.eq.s32.totalorder %s25, 0
      %p66 = por %p64, %p65
      %p67 = scmp.ne.s32.totalorder %s59, %s61
      %p68 = scmp.eq.s32.totalorder %s30, 1
      %p69 = por %p67, %p68
      %p70 = scmp.ne.s32.totalorder %s61, %s62
      %p71 = scmp.eq.s32.totalorder %s30, 0
      %p72 = por %p70, %p71
      %p73 = scmp.ne.s32.totalorder %s61, %s62
      %p74 = scmp.eq.s32.totalorder %s31, 1
      %p75 = por %p73, %p74
      %p77 = scmp.ne.s32.totalorder %s62, %s76
      %p78 = scmp.eq.s32.totalorder %s31, 0
      %p79 = por %p77, %p78
      %s81 = sadd.s32 %s80, 1
      %p84 = scmp.eq.s32.totalorder %s25, 1
      %p85 = scmp.ne.s32.totalorder %s80, %s82
      %p86 = scmp.eq.s32.totalorder %s25, 0
      %p87 = por %p85, %p86
      %p88 = scmp.ne.s32.totalorder %s80, %s82
      %p89 = scmp.eq.s32.totalorder %s30, 1
      %p90 = por %p88, %p89
      %p91 = scmp.ne.s32.totalorder %s82, %s83
      %p92 = scmp.eq.s32.totalorder %s30, 0
      %p93 = por %p91, %p92
      %p94 = scmp.ne.s32.totalorder %s82, %s83
      %p95 = scmp.eq.s32.totalorder %s31, 1
      %p96 = por %p94, %p95
      %p98 = scmp.ne.s32.totalorder %s83, %s97
      %p99 = scmp.eq.s32.totalorder %s31, 0
      %p100 = por %p98, %p99
      %s102 = sadd.s32 %s101, 1
      %p105 = scmp.eq.s32.totalorder %s25, 1
      %p106 = scmp.ne.s32.totalorder %s101, %s103
      %p107 = scmp.eq.s32.totalorder %s25, 0
      %p108 = por %p106, %p107
      %p109 = scmp.ne.s32.totalorder %s101, %s103
      %p110 = scmp.eq.s32.totalorder %s30, 1
      %p111 = por %p109, %p110
      %p112 = scmp.ne.s32.totalorder %s103, %s104
      %p113 = scmp.eq.s32.totalorder %s30, 0
      %p114 = por %p112, %p113
      %p115 = scmp.ne.s32.totalorder %s103, %s104
      %p116 = scmp.eq.s32.totalorder %s31, 1
      %p117 = por %p115, %p116
      %p119 = scmp.ne.s32.totalorder %s104, %s118
      %p120 = scmp.eq.s32.totalorder %s31, 0
      %p121 = por %p119, %p120
      %s123 = sadd.s32 %s122, 1
      %p126 = scmp.eq.s32.totalorder %s25, 1
      %p127 = scmp.ne.s32.totalorder %s122, %s124
      %p128 = scmp.eq.s32.totalorder %s25, 0
      %p129 = por %p127, %p128
      %p130 = scmp.ne.s32.totalorder %s122, %s124
      %p131 = scmp.eq.s32.totalorder %s30, 1
      %p132 = por %p130, %p131
      %p133 = scmp.ne.s32.totalorder %s124, %s125
      %p134 = scmp.eq.s32.totalorder %s30, 0
      %p135 = por %p133, %p134
      %p136 = scmp.ne.s32.totalorder %s124, %s125
      %p137 = scmp.eq.s32.totalorder %s31, 1
      %p138 = por %p136, %p137
      %p140 = scmp.ne.s32.totalorder %s125, %s139
      %p141 = scmp.eq.s32.totalorder %s31, 0
      %p142 = por %p140, %p141
      %s144 = sadd.s32 %s143, 1
      %p147 = scmp.eq.s32.totalorder %s25, 1
      %p148 = scmp.ne.s32.totalorder %s143, %s145
      %p149 = scmp.eq.s32.totalorder %s25, 0
      %p150 = por %p148, %p149
      %p151 = scmp.ne.s32.totalorder %s143, %s145
      %p152 = scmp.eq.s32.totalorder %s30, 1
      %p153 = por %p151, %p152
      %p154 = scmp.ne.s32.totalorder %s145, %s146
      %p155 = scmp.eq.s32.totalorder %s30, 0
      %p156 = por %p154, %p155
      %p157 = scmp.ne.s32.totalorder %s145, %s146
      %p158 = scmp.eq.s32.totalorder %s31, 1
      %p159 = por %p157, %p158
      %p161 = scmp.ne.s32.totalorder %s146, %s160
      %p162 = scmp.eq.s32.totalorder %s31, 0
      %p163 = por %p161, %p162
      %s165 = sadd.s32 %s164, 1
      %p168 = scmp.eq.s32.totalorder %s25, 1
      %p169 = scmp.ne.s32.totalorder %s164, %s166
      %p170 = scmp.eq.s32.totalorder %s25, 0
      %p171 = por %p169, %p170
      %p172 = scmp.ne.s32.totalorder %s164, %s166
      %p173 = scmp.eq.s32.totalorder %s30, 1
      %p174 = por %p172, %p173
      %p175 = scmp.ne.s32.totalorder %s166, %s167
      %p176 = scmp.eq.s32.totalorder %s30, 0
      %p177 = por %p175, %p176
      %p178 = scmp.ne.s32.totalorder %s166, %s167
      %p179 = scmp.eq.s32.totalorder %s31, 1
      %p180 = por %p178, %p179
      %p182 = scmp.ne.s32.totalorder %s167, %s181
      %p183 = scmp.eq.s32.totalorder %s31, 0
      %p184 = por %p182, %p183
      %s185 = ssub.s32 %s25, %s32
      %p186 = scmp.eq.s32.totalorder %s185, 0
      %s188 = sadd.s32 %s187, 1
      %s189 = scalar_select %p186, %s187, %s188
      %p192 = pneg %p186
      %p193 = scmp.eq.s32.totalorder %s25, 1
      %p194 = por %p192, %p193
      %p195 = scmp.ne.s32.totalorder %s187, %s190
      %p196 = scmp.eq.s32.totalorder %s25, 0
      %p197 = por %p195, %p196
      %p198 = scmp.ne.s32.totalorder %s187, %s190
      %p199 = scmp.eq.s32.totalorder %s30, 1
      %p200 = por %p198, %p199
      %p201 = scmp.ne.s32.totalorder %s190, %s191
      %p202 = scmp.eq.s32.totalorder %s30, 0
      %p203 = por %p201, %p202
      %p204 = scmp.ne.s32.totalorder %s190, %s191
      %p205 = scmp.eq.s32.totalorder %s31, 1
      %p206 = por %p204, %p205
      %p208 = scmp.ne.s32.totalorder %s191, %s207
      %p209 = scmp.eq.s32.totalorder %s31, 0
      %p210 = por %p208, %p209
      %p211 = scmp.le.s32.totalorder 1, %s25
      %p212 = scmp.lt.s32.totalorder %s25, 3
      %p213 = pnand %p211, %p212
      %p214 = pneg %p213
      // Predicated region
      $region9: #{tpu_custom_call.1} parent=5 // pred_check
        _
      $region10: #{tpu_custom_call.1} parent=5 // pred_check_branch
        %216 = sbr.rel (%p213) target = $region12
      $region11: #{tpu_custom_call.1} parent=5 // pred_region
        %s217 = ssub.s32 %s25, 1
        // Predicated region
        $region13: #{tpu_custom_call.1} parent=11 // pred_check
          %p218 = pneg %p72
        $region14: #{tpu_custom_call.1} parent=11 // pred_check_branch
          %220 = sbr.rel (%p218) target = $region16
        $region15: #{tpu_custom_call.1} parent=11 // pred_region
          _
        $region16: #{tpu_custom_call.1} parent=11 // pred_fallthru
          _
        // Predicated region
        $region17: #{tpu_custom_call.1} parent=11 // pred_check
          %p221 = pneg %p93
        $region18: #{tpu_custom_call.1} parent=11 // pred_check_branch
          %223 = sbr.rel (%p221) target = $region20
        $region19: #{tpu_custom_call.1} parent=11 // pred_region
          %s225 = ssub.s32 256, 256
          %226 = vsyncadd [#allocation8], %s225
          %s228 = sshll.u32 [#allocation7], 4
          %s229 = int_to_ptr.vmem [resolvable:$true] %s228
          %231 = dma.hbm_to_vmem [thread:$0]  %s3, 256, %s229, [#allocation8]
        $region20: #{tpu_custom_call.1} parent=11 // pred_fallthru
          _
        // Predicated region
        $region21: #{tpu_custom_call.1} parent=11 // pred_check
          %p232 = pneg %p114
        $region22: #{tpu_custom_call.1} parent=11 // pred_check_branch
          %234 = sbr.rel (%p232) target = $region24
        $region23: #{tpu_custom_call.1} parent=11 // pred_region
          _
        $region24: #{tpu_custom_call.1} parent=11 // pred_fallthru
          _
        // Predicated region
        $region25: #{tpu_custom_call.1} parent=11 // pred_check
          %p235 = pneg %p135
        $region26: #{tpu_custom_call.1} parent=11 // pred_check_branch
          %237 = sbr.rel (%p235) target = $region28
        $region27: #{tpu_custom_call.1} parent=11 // pred_region
          _
        $region28: #{tpu_custom_call.1} parent=11 // pred_fallthru
          _
        // Predicated region
        $region29: #{tpu_custom_call.1} parent=11 // pred_check
          %p238 = pneg %p156
        $region30: #{tpu_custom_call.1} parent=11 // pred_check_branch
          %240 = sbr.rel (%p238) target = $region32
        $region31: #{tpu_custom_call.1} parent=11 // pred_region
          %s242 = ssub.s32 128, 128
          %243 = vsyncadd [#allocation8], %s242
          %s245 = sshll.u32 [#allocation9], 4
          %s246 = int_to_ptr.vmem [resolvable:$true] %s245
          %248 = dma.hbm_to_vmem [thread:$0]  %s6, 128, %s246, [#allocation8]
        $region32: #{tpu_custom_call.1} parent=11 // pred_fallthru
          _
        // Predicated region
        $region33: #{tpu_custom_call.1} parent=11 // pred_check
          %p249 = pneg %p177
        $region34: #{tpu_custom_call.1} parent=11 // pred_check_branch
          %251 = sbr.rel (%p249) target = $region36
        $region35: #{tpu_custom_call.1} parent=11 // pred_region
          _
        $region36: #{tpu_custom_call.1} parent=11 // pred_fallthru
          _
      $region12: #{tpu_custom_call.1} parent=5 // pred_fallthru
        _
      %p252 = scmp.lt.s32.totalorder %s25, 2
      // Predicated region
      $region37: #{tpu_custom_call.1} parent=5 // pred_check
        %p253 = pneg %p252
      $region38: #{tpu_custom_call.1} parent=5 // pred_check_branch
        %255 = sbr.rel (%p253) target = $region40
      $region39: #{tpu_custom_call.1} parent=5 // pred_region
        // Predicated region
        $region41: #{tpu_custom_call.1} parent=39 // pred_check
          %p256 = pneg %p45
        $region42: #{tpu_custom_call.1} parent=39 // pred_check_branch
          %258 = sbr.rel (%p256) target = $region44
        $region43: #{tpu_custom_call.1} parent=39 // pred_region
          %s259 = sand.u32 %s35, 1
          %s260 = scalar_lea.sflag [#allocation5], %s259
          %s261 = sand.u32 %s35, 1
          %s262 = smul.addr %s261, 128
          %s263 = scalar_lea.vmem [#allocation4], %s262
          %s265 = ssub.s32 2048, 2048
          %266 = vsyncadd %s260, %s265
          %s267 = smul.addr %s25, 16
          %s268 = smul.addr %s267, 128
          %s269 = scalar_lea.hbm %s1, %s268
          %s271 = sshll.u32 %s263, 4
          %s272 = int_to_ptr.vmem [resolvable:$true] %s271
          %274 = dma.hbm_to_vmem [thread:$0]  %s269, 2048, %s272, %s260
        $region44: #{tpu_custom_call.1} parent=39 // pred_fallthru
          _
      $region40: #{tpu_custom_call.1} parent=5 // pred_fallthru
        _
      %p275 = scmp.le.s32.totalorder 1, %s25
      %p276 = scmp.lt.s32.totalorder %s25, 3
      %p277 = pnand %p275, %p276
      %p278 = pneg %p277
      // Predicated region
      $region45: #{tpu_custom_call.1} parent=5 // pred_check
        _
      $region46: #{tpu_custom_call.1} parent=5 // pred_check_branch
        %280 = sbr.rel (%p277) target = $region48
      $region47: #{tpu_custom_call.1} parent=5 // pred_region
        %s281 = ssub.s32 %s25, 1
        %s282 = sand.u32 %s38, 1
        %s283 = scalar_lea.sflag [#allocation5], %s282
        %s284 = sand.u32 %s38, 1
        %s285 = smul.addr %s284, 128
        %s286 = scalar_lea.vmem [#allocation4], %s285
        // Predicated region
        $region49: #{tpu_custom_call.1} parent=47 // pred_check
          %p287 = pneg %p51
        $region50: #{tpu_custom_call.1} parent=47 // pred_check_branch
          %289 = sbr.rel (%p287) target = $region52
        $region51: #{tpu_custom_call.1} parent=47 // pred_region
          %290 = dma.done %s283, 2048
        $region52: #{tpu_custom_call.1} parent=47 // pred_fallthru
          _
        // Predicated region
        $region53: #{tpu_custom_call.1} parent=47 // pred_check
          %p291 = pneg %p93
        $region54: #{tpu_custom_call.1} parent=47 // pred_check_branch
          %293 = sbr.rel (%p291) target = $region56
        $region55: #{tpu_custom_call.1} parent=47 // pred_region
          %294 = dma.done [#allocation8], 256
        $region56: #{tpu_custom_call.1} parent=47 // pred_fallthru
          _
        // Predicated region
        $region57: #{tpu_custom_call.1} parent=47 // pred_check
          %p295 = pneg %p156
        $region58: #{tpu_custom_call.1} parent=47 // pred_check_branch
          %297 = sbr.rel (%p295) target = $region60
        $region59: #{tpu_custom_call.1} parent=47 // pred_region
          %298 = dma.done [#allocation8], 128
        $region60: #{tpu_custom_call.1} parent=47 // pred_fallthru
          _
        %s299 = sand.u32 %s38, 1
        %s300 = scalar_lea.sflag [#allocation5], %s299
        %s301 = sand.u32 %s38, 1
        %s302 = smul.addr %s301, 128
        %s303 = scalar_lea.vmem [#allocation4], %s302
        %p304 = pneg %p51
        %p305 = pneg %p48
        %p306 = pneg %p72
        %p307 = pneg %p69
        %p308 = pneg %p93
        %p309 = pneg %p90
        %p310 = pneg %p114
        %p311 = pneg %p111
        %p312 = pneg %p135
        %p313 = pneg %p132
        %p314 = pneg %p156
        %p315 = pneg %p153
        %p316 = pneg %p177
        %p317 = pneg %p174
        %p318 = pneg %p203
        %p319 = pneg %p200
        %s320 = sand.u32 %s190, 1
        %s321 = scalar_lea.sflag [#allocation6], %s320
        %s322 = sand.u32 %s190, 1
        %s323 = smul.addr %s322, 128
        %s324 = scalar_lea.vmem [#allocation10], %s323
        %v325 = vld [vmem:[%s286] sm:$0xff]
        %v326 = vld [vmem:[%s286 + $0x8] sm:$0xff]
        %v327 = vld [vmem:[%s286 + $0x10] sm:$0xff]
        %v328 = vld [vmem:[%s286 + $0x18] sm:$0xff]
        %v329 = vld [vmem:[%s286 + $0x20] sm:$0xff]
        %v330 = vld [vmem:[%s286 + $0x28] sm:$0xff]
        %v331 = vld [vmem:[%s286 + $0x30] sm:$0xff]
        %v332 = vld [vmem:[%s286 + $0x38] sm:$0xff]
        %v333 = vld [vmem:[%s286 + $0x40] sm:$0xff]
        %v334 = vld [vmem:[%s286 + $0x48] sm:$0xff]
        %v335 = vld [vmem:[%s286 + $0x50] sm:$0xff]
        %v336 = vld [vmem:[%s286 + $0x58] sm:$0xff]
        %v337 = vld [vmem:[%s286 + $0x60] sm:$0xff]
        %v338 = vld [vmem:[%s286 + $0x68] sm:$0xff]
        %v339 = vld [vmem:[%s286 + $0x70] sm:$0xff]
        %v340 = vld [vmem:[%s286 + $0x78] sm:$0xff]
        %v341 = vld [vmem:[%s2] sm:$0xff]
        %v342 = vld [vmem:[%s2 + $0x8] sm:$0xff]
        %v343 = vld [vmem:[#allocation7] sm:$0xff]
        %v344 = vld [vmem:[#allocation7 + $0x8] sm:$0xff]
        %v345 = vld [vmem:[#allocation9] sm:$0xff]
        %v346 = vld [vmem:[%s7] sm:$0xff]
        %v347 = vld [vmem:[%s4] sm:$0xff]
        %v348 = vld [vmem:[%s5] sm:$0xff]
        %350 = vset.pattern.permute.xlu0 0
        %351 = vperm.xlu0 %350, %v348
        %v352 = vpop.permute.xlu0 %351
        %vm354 = vcmask 64512
        %v356 = vsel %vm354, %v347, 0
        %358 = vmatprep.subr.mxu0 %v326
        %359 = vmatpush1.msra.mxu0 %v325
        %360 = vmatprep.subr.mxu0 0.0
        %361 = vmatpush1.msra.mxu0 0.0
        %362 = vmatprep.subr.mxu0 0.0
        %363 = vmatpush1.msra.mxu0 0.0
        %364 = vmatprep.subr.mxu0 0.0
        %365 = vmatpush1.msra.mxu0 0.0
        %366 = vmatprep.subr.mxu0 0.0
        %367 = vmatpush1.msra.mxu0 0.0
        %368 = vmatprep.subr.mxu0 0.0
        %369 = vmatpush1.msra.mxu0 0.0
        %370 = vmatprep.subr.mxu0 0.0
        %371 = vmatpush1.msra.mxu0 0.0
        %372 = vmatprep.subr.mxu0 0.0
        %373 = vmatpush1.msra.mxu0 0.0
        %374 = vmatprep.subr.mxu0 0.0
        %375 = vmatpush1.msra.mxu0 0.0
        %376 = vmatprep.subr.mxu0 0.0
        %377 = vmatpush1.msra.mxu0 0.0
        %378 = vmatprep.subr.mxu0 0.0
        %379 = vmatpush1.msra.mxu0 0.0
        %380 = vmatprep.subr.mxu0 0.0
        %381 = vmatpush1.msra.mxu0 0.0
        %382 = vmatprep.subr.mxu0 0.0
        %383 = vmatpush1.msra.mxu0 0.0
        %384 = vmatprep.subr.mxu0 0.0
        %385 = vmatpush1.msra.mxu0 0.0
        %386 = vmatprep.subr.mxu0 0.0
        %387 = vmatpush1.msra.mxu0 0.0
        %388 = vmatprep.subr.mxu0 0.0
        %389 = vmatpush1.msra.mxu0 0.0
        %390 = vmatprep.subr.mxu0 0.0
        %391 = vmatpush1.msra.mxu0 0.0
        %392 = vmatprep.subr.mxu0 0.0
        %393 = vmatpush1.msra.mxu0 0.0
        %394 = vmatprep.subr.mxu0 0.0
        %395 = vmatpush1.msra.mxu0 0.0
        %396 = vmatprep.subr.mxu0 0.0
        %397 = vmatpush1.msra.mxu0 0.0
        %398 = vmatprep.subr.mxu0 0.0
        %399 = vmatpush1.msra.mxu0 0.0
        %400 = vmatprep.subr.mxu0 0.0
        %401 = vmatpush1.msra.mxu0 0.0
        %402 = vmatprep.subr.mxu0 0.0
        %403 = vmatpush1.msra.mxu0 0.0
        %404 = vmatprep.subr.mxu0 0.0
        %405 = vmatpush1.msra.mxu0 0.0
        %406 = vmatprep.subr.mxu0 0.0
        %407 = vmatpush1.msra.mxu0 0.0
        %408 = vmatprep.subr.mxu0 0.0
        %409 = vmatpush1.msra.mxu0 0.0
        %410 = vmatprep.subr.mxu0 0.0
        %411 = vmatpush1.msra.mxu0 0.0
        %412 = vmatprep.subr.mxu0 0.0
        %413 = vmatpush1.msra.mxu0 0.0
        %414 = vmatprep.subr.mxu0 0.0
        %415 = vmatpush1.msra.mxu0 0.0
        %416 = vmatprep.subr.mxu0 0.0
        %417 = vmatpush1.msra.mxu0 0.0
        %418 = vmatprep.subr.mxu0 0.0
        %419 = vmatpush1.msra.mxu0 0.0
        %420 = vmatprep.subr.mxu0 0.0
        %421 = vmatpush1.msra.mxu0 0.0
        %422 = vmatprep.mubr.f32.mxu0 0.0
        %423 = vmatmul.mubr.f32.gmra.mrb[0].mxu0 %v356
        %v424 = vpop.f32.mrb[0].mxu0
        %v425 = vadd.f32 %v352, %v424
        %v426 = vpop.f32.mrb[0].mxu0
        %v427 = vadd.f32 %v352, %v426
        %428 = vdwg.mxu0
        %429 = vmatprep.subr.mxu0 %v328
        %430 = vmatpush1.msra.mxu0 %v327
        %431 = vmatprep.subr.mxu0 0.0
        %432 = vmatpush1.msra.mxu0 0.0
        %433 = vmatprep.subr.mxu0 0.0
        %434 = vmatpush1.msra.mxu0 0.0
        %435 = vmatprep.subr.mxu0 0.0
        %436 = vmatpush1.msra.mxu0 0.0
        %437 = vmatprep.subr.mxu0 0.0
        %438 = vmatpush1.msra.mxu0 0.0
        %439 = vmatprep.subr.mxu0 0.0
        %440 = vmatpush1.msra.mxu0 0.0
        %441 = vmatprep.subr.mxu0 0.0
        %442 = vmatpush1.msra.mxu0 0.0
        %443 = vmatprep.subr.mxu0 0.0
        %444 = vmatpush1.msra.mxu0 0.0
        %445 = vmatprep.subr.mxu0 0.0
        %446 = vmatpush1.msra.mxu0 0.0
        %447 = vmatprep.subr.mxu0 0.0
        %448 = vmatpush1.msra.mxu0 0.0
        %449 = vmatprep.subr.mxu0 0.0
        %450 = vmatpush1.msra.mxu0 0.0
        %451 = vmatprep.subr.mxu0 0.0
        %452 = vmatpush1.msra.mxu0 0.0
        %453 = vmatprep.subr.mxu0 0.0
        %454 = vmatpush1.msra.mxu0 0.0
        %455 = vmatprep.subr.mxu0 0.0
        %456 = vmatpush1.msra.mxu0 0.0
        %457 = vmatprep.subr.mxu0 0.0
        %458 = vmatpush1.msra.mxu0 0.0
        %459 = vmatprep.subr.mxu0 0.0
        %460 = vmatpush1.msra.mxu0 0.0
        %461 = vmatprep.subr.mxu0 0.0
        %462 = vmatpush1.msra.mxu0 0.0
        %463 = vmatprep.subr.mxu0 0.0
        %464 = vmatpush1.msra.mxu0 0.0
        %465 = vmatprep.subr.mxu0 0.0
        %466 = vmatpush1.msra.mxu0 0.0
        %467 = vmatprep.subr.mxu0 0.0
        %468 = vmatpush1.msra.mxu0 0.0
        %469 = vmatprep.subr.mxu0 0.0
        %470 = vmatpush1.msra.mxu0 0.0
        %471 = vmatprep.subr.mxu0 0.0
        %472 = vmatpush1.msra.mxu0 0.0
        %473 = vmatprep.subr.mxu0 0.0
        %474 = vmatpush1.msra.mxu0 0.0
        %475 = vmatprep.subr.mxu0 0.0
        %476 = vmatpush1.msra.mxu0 0.0
        %477 = vmatprep.subr.mxu0 0.0
        %478 = vmatpush1.msra.mxu0 0.0
        %479 = vmatprep.subr.mxu0 0.0
        %480 = vmatpush1.msra.mxu0 0.0
        %481 = vmatprep.subr.mxu0 0.0
        %482 = vmatpush1.msra.mxu0 0.0
        %483 = vmatprep.subr.mxu0 0.0
        %484 = vmatpush1.msra.mxu0 0.0
        %485 = vmatprep.subr.mxu0 0.0
        %486 = vmatpush1.msra.mxu0 0.0
        %487 = vmatprep.subr.mxu0 0.0
        %488 = vmatpush1.msra.mxu0 0.0
        %489 = vmatprep.subr.mxu0 0.0
        %490 = vmatpush1.msra.mxu0 0.0
        %491 = vmatprep.subr.mxu0 0.0
        %492 = vmatpush1.msra.mxu0 0.0
        %493 = vmatprep.mubr.f32.mxu0 0.0
        %494 = vmatmul.mubr.f32.gmra.mrb[0].mxu0 %v356
        %v495 = vpop.f32.mrb[0].mxu0
        %v496 = vadd.f32 %v352, %v495
        %v497 = vpop.f32.mrb[0].mxu0
        %v498 = vadd.f32 %v352, %v497
        %499 = vdwg.mxu0
        %500 = vmatprep.subr.mxu0 %v330
        %501 = vmatpush1.msra.mxu0 %v329
        %502 = vmatprep.subr.mxu0 0.0
        %503 = vmatpush1.msra.mxu0 0.0
        %504 = vmatprep.subr.mxu0 0.0
        %505 = vmatpush1.msra.mxu0 0.0
        %506 = vmatprep.subr.mxu0 0.0
        %507 = vmatpush1.msra.mxu0 0.0
        %508 = vmatprep.subr.mxu0 0.0
        %509 = vmatpush1.msra.mxu0 0.0
        %510 = vmatprep.subr.mxu0 0.0
        %511 = vmatpush1.msra.mxu0 0.0
        %512 = vmatprep.subr.mxu0 0.0
        %513 = vmatpush1.msra.mxu0 0.0
        %514 = vmatprep.subr.mxu0 0.0
        %515 = vmatpush1.msra.mxu0 0.0
        %516 = vmatprep.subr.mxu0 0.0
        %517 = vmatpush1.msra.mxu0 0.0
        %518 = vmatprep.subr.mxu0 0.0
        %519 = vmatpush1.msra.mxu0 0.0
        %520 = vmatprep.subr.mxu0 0.0
        %521 = vmatpush1.msra.mxu0 0.0
        %522 = vmatprep.subr.mxu0 0.0
        %523 = vmatpush1.msra.mxu0 0.0
        %524 = vmatprep.subr.mxu0 0.0
        %525 = vmatpush1.msra.mxu0 0.0
        %526 = vmatprep.subr.mxu0 0.0
        %527 = vmatpush1.msra.mxu0 0.0
        %528 = vmatprep.subr.mxu0 0.0
        %529 = vmatpush1.msra.mxu0 0.0
        %530 = vmatprep.subr.mxu0 0.0
        %531 = vmatpush1.msra.mxu0 0.0
        %532 = vmatprep.subr.mxu0 0.0
        %533 = vmatpush1.msra.mxu0 0.0
        %534 = vmatprep.subr.mxu0 0.0
        %535 = vmatpush1.msra.mxu0 0.0
        %536 = vmatprep.subr.mxu0 0.0
        %537 = vmatpush1.msra.mxu0 0.0
        %538 = vmatprep.subr.mxu0 0.0
        %539 = vmatpush1.msra.mxu0 0.0
        %540 = vmatprep.subr.mxu0 0.0
        %541 = vmatpush1.msra.mxu0 0.0
        %542 = vmatprep.subr.mxu0 0.0
        %543 = vmatpush1.msra.mxu0 0.0
        %544 = vmatprep.subr.mxu0 0.0
        %545 = vmatpush1.msra.mxu0 0.0
        %546 = vmatprep.subr.mxu0 0.0
        %547 = vmatpush1.msra.mxu0 0.0
        %548 = vmatprep.subr.mxu0 0.0
        %549 = vmatpush1.msra.mxu0 0.0
        %550 = vmatprep.subr.mxu0 0.0
        %551 = vmatpush1.msra.mxu0 0.0
        %552 = vmatprep.subr.mxu0 0.0
        %553 = vmatpush1.msra.mxu0 0.0
        %554 = vmatprep.subr.mxu0 0.0
        %555 = vmatpush1.msra.mxu0 0.0
        %556 = vmatprep.subr.mxu0 0.0
        %557 = vmatpush1.msra.mxu0 0.0
        %558 = vmatprep.subr.mxu0 0.0
        %559 = vmatpush1.msra.mxu0 0.0
        %560 = vmatprep.subr.mxu0 0.0
        %561 = vmatpush1.msra.mxu0 0.0
        %562 = vmatprep.subr.mxu0 0.0
        %563 = vmatpush1.msra.mxu0 0.0
        %564 = vmatprep.mubr.f32.mxu0 0.0
        %565 = vmatmul.mubr.f32.gmra.mrb[0].mxu0 %v356
        %v566 = vpop.f32.mrb[0].mxu0
        %v567 = vadd.f32 %v352, %v566
        %v568 = vpop.f32.mrb[0].mxu0
        %v569 = vadd.f32 %v352, %v568
        %570 = vdwg.mxu0
        %571 = vmatprep.subr.mxu0 %v332
        %572 = vmatpush1.msra.mxu0 %v331
        %573 = vmatprep.subr.mxu0 0.0
        %574 = vmatpush1.msra.mxu0 0.0
        %575 = vmatprep.subr.mxu0 0.0
        %576 = vmatpush1.msra.mxu0 0.0
        %577 = vmatprep.subr.mxu0 0.0
        %578 = vmatpush1.msra.mxu0 0.0
        %579 = vmatprep.subr.mxu0 0.0
        %580 = vmatpush1.msra.mxu0 0.0
        %581 = vmatprep.subr.mxu0 0.0
        %582 = vmatpush1.msra.mxu0 0.0
        %583 = vmatprep.subr.mxu0 0.0
        %584 = vmatpush1.msra.mxu0 0.0
        %585 = vmatprep.subr.mxu0 0.0
        %586 = vmatpush1.msra.mxu0 0.0
        %587 = vmatprep.subr.mxu0 0.0
        %588 = vmatpush1.msra.mxu0 0.0
        %589 = vmatprep.subr.mxu0 0.0
        %590 = vmatpush1.msra.mxu0 0.0
        %591 = vmatprep.subr.mxu0 0.0
        %592 = vmatpush1.msra.mxu0 0.0
        %593 = vmatprep.subr.mxu0 0.0
        %594 = vmatpush1.msra.mxu0 0.0
        %595 = vmatprep.subr.mxu0 0.0
        %596 = vmatpush1.msra.mxu0 0.0
        %597 = vmatprep.subr.mxu0 0.0
        %598 = vmatpush1.msra.mxu0 0.0
        %599 = vmatprep.subr.mxu0 0.0
        %600 = vmatpush1.msra.mxu0 0.0
        %601 = vmatprep.subr.mxu0 0.0
        %602 = vmatpush1.msra.mxu0 0.0
        %603 = vmatprep.subr.mxu0 0.0
        %604 = vmatpush1.msra.mxu0 0.0
        %605 = vmatprep.subr.mxu0 0.0
        %606 = vmatpush1.msra.mxu0 0.0
        %607 = vmatprep.subr.mxu0 0.0
        %608 = vmatpush1.msra.mxu0 0.0
        %609 = vmatprep.subr.mxu0 0.0
        %610 = vmatpush1.msra.mxu0 0.0
        %611 = vmatprep.subr.mxu0 0.0
        %612 = vmatpush1.msra.mxu0 0.0
        %613 = vmatprep.subr.mxu0 0.0
        %614 = vmatpush1.msra.mxu0 0.0
        %615 = vmatprep.subr.mxu0 0.0
        %616 = vmatpush1.msra.mxu0 0.0
        %617 = vmatprep.subr.mxu0 0.0
        %618 = vmatpush1.msra.mxu0 0.0
        %619 = vmatprep.subr.mxu0 0.0
        %620 = vmatpush1.msra.mxu0 0.0
        %621 = vmatprep.subr.mxu0 0.0
        %622 = vmatpush1.msra.mxu0 0.0
        %623 = vmatprep.subr.mxu0 0.0
        %624 = vmatpush1.msra.mxu0 0.0
        %625 = vmatprep.subr.mxu0 0.0
        %626 = vmatpush1.msra.mxu0 0.0
        %627 = vmatprep.subr.mxu0 0.0
        %628 = vmatpush1.msra.mxu0 0.0
        %629 = vmatprep.subr.mxu0 0.0
        %630 = vmatpush1.msra.mxu0 0.0
        %631 = vmatprep.subr.mxu0 0.0
        %632 = vmatpush1.msra.mxu0 0.0
        %633 = vmatprep.subr.mxu0 0.0
        %634 = vmatpush1.msra.mxu0 0.0
        %635 = vmatprep.mubr.f32.mxu0 0.0
        %636 = vmatmul.mubr.f32.gmra.mrb[0].mxu0 %v356
        %v637 = vpop.f32.mrb[0].mxu0
        %v638 = vadd.f32 %v352, %v637
        %v639 = vpop.f32.mrb[0].mxu0
        %v640 = vadd.f32 %v352, %v639
        %641 = vdwg.mxu0
        %642 = vmatprep.subr.mxu0 %v334
        %643 = vmatpush1.msra.mxu0 %v333
        %644 = vmatprep.subr.mxu0 0.0
        %645 = vmatpush1.msra.mxu0 0.0
        %646 = vmatprep.subr.mxu0 0.0
        %647 = vmatpush1.msra.mxu0 0.0
        %648 = vmatprep.subr.mxu0 0.0
        %649 = vmatpush1.msra.mxu0 0.0
        %650 = vmatprep.subr.mxu0 0.0
        %651 = vmatpush1.msra.mxu0 0.0
        %652 = vmatprep.subr.mxu0 0.0
        %653 = vmatpush1.msra.mxu0 0.0
        %654 = vmatprep.subr.mxu0 0.0
        %655 = vmatpush1.msra.mxu0 0.0
        %656 = vmatprep.subr.mxu0 0.0
        %657 = vmatpush1.msra.mxu0 0.0
        %658 = vmatprep.subr.mxu0 0.0
        %659 = vmatpush1.msra.mxu0 0.0
        %660 = vmatprep.subr.mxu0 0.0
        %661 = vmatpush1.msra.mxu0 0.0
        %662 = vmatprep.subr.mxu0 0.0
        %663 = vmatpush1.msra.mxu0 0.0
        %664 = vmatprep.subr.mxu0 0.0
        %665 = vmatpush1.msra.mxu0 0.0
        %666 = vmatprep.subr.mxu0 0.0
        %667 = vmatpush1.msra.mxu0 0.0
        %668 = vmatprep.subr.mxu0 0.0
        %669 = vmatpush1.msra.mxu0 0.0
        %670 = vmatprep.subr.mxu0 0.0
        %671 = vmatpush1.msra.mxu0 0.0
        %672 = vmatprep.subr.mxu0 0.0
        %673 = vmatpush1.msra.mxu0 0.0
        %674 = vmatprep.subr.mxu0 0.0
        %675 = vmatpush1.msra.mxu0 0.0
        %676 = vmatprep.subr.mxu0 0.0
        %677 = vmatpush1.msra.mxu0 0.0
        %678 = vmatprep.subr.mxu0 0.0
        %679 = vmatpush1.msra.mxu0 0.0
        %680 = vmatprep.subr.mxu0 0.0
        %681 = vmatpush1.msra.mxu0 0.0
        %682 = vmatprep.subr.mxu0 0.0
        %683 = vmatpush1.msra.mxu0 0.0
        %684 = vmatprep.subr.mxu0 0.0
        %685 = vmatpush1.msra.mxu0 0.0
        %686 = vmatprep.subr.mxu0 0.0
        %687 = vmatpush1.msra.mxu0 0.0
        %688 = vmatprep.subr.mxu0 0.0
        %689 = vmatpush1.msra.mxu0 0.0
        %690 = vmatprep.subr.mxu0 0.0
        %691 = vmatpush1.msra.mxu0 0.0
        %692 = vmatprep.subr.mxu0 0.0
        %693 = vmatpush1.msra.mxu0 0.0
        %694 = vmatprep.subr.mxu0 0.0
        %695 = vmatpush1.msra.mxu0 0.0
        %696 = vmatprep.subr.mxu0 0.0
        %697 = vmatpush1.msra.mxu0 0.0
        %698 = vmatprep.subr.mxu0 0.0
        %699 = vmatpush1.msra.mxu0 0.0
        %700 = vmatprep.subr.mxu0 0.0
        %701 = vmatpush1.msra.mxu0 0.0
        %702 = vmatprep.subr.mxu0 0.0
        %703 = vmatpush1.msra.mxu0 0.0
        %704 = vmatprep.subr.mxu0 0.0
        %705 = vmatpush1.msra.mxu0 0.0
        %706 = vmatprep.mubr.f32.mxu0 0.0
        %707 = vmatmul.mubr.f32.gmra.mrb[0].mxu0 %v356
        %v708 = vpop.f32.mrb[0].mxu0
        %v709 = vadd.f32 %v352, %v708
        %v710 = vpop.f32.mrb[0].mxu0
        %v711 = vadd.f32 %v352, %v710
        %712 = vdwg.mxu0
        %713 = vmatprep.subr.mxu0 %v336
        %714 = vmatpush1.msra.mxu0 %v335
        %715 = vmatprep.subr.mxu0 0.0
        %716 = vmatpush1.msra.mxu0 0.0
        %717 = vmatprep.subr.mxu0 0.0
        %718 = vmatpush1.msra.mxu0 0.0
        %719 = vmatprep.subr.mxu0 0.0
        %720 = vmatpush1.msra.mxu0 0.0
        %721 = vmatprep.subr.mxu0 0.0
        %722 = vmatpush1.msra.mxu0 0.0
        %723 = vmatprep.subr.mxu0 0.0
        %724 = vmatpush1.msra.mxu0 0.0
        %725 = vmatprep.subr.mxu0 0.0
        %726 = vmatpush1.msra.mxu0 0.0
        %727 = vmatprep.subr.mxu0 0.0
        %728 = vmatpush1.msra.mxu0 0.0
        %729 = vmatprep.subr.mxu0 0.0
        %730 = vmatpush1.msra.mxu0 0.0
        %731 = vmatprep.subr.mxu0 0.0
        %732 = vmatpush1.msra.mxu0 0.0
        %733 = vmatprep.subr.mxu0 0.0
        %734 = vmatpush1.msra.mxu0 0.0
        %735 = vmatprep.subr.mxu0 0.0
        %736 = vmatpush1.msra.mxu0 0.0
        %737 = vmatprep.subr.mxu0 0.0
        %738 = vmatpush1.msra.mxu0 0.0
        %739 = vmatprep.subr.mxu0 0.0
        %740 = vmatpush1.msra.mxu0 0.0
        %741 = vmatprep.subr.mxu0 0.0
        %742 = vmatpush1.msra.mxu0 0.0
        %743 = vmatprep.subr.mxu0 0.0
        %744 = vmatpush1.msra.mxu0 0.0
        %745 = vmatprep.subr.mxu0 0.0
        %746 = vmatpush1.msra.mxu0 0.0
        %747 = vmatprep.subr.mxu0 0.0
        %748 = vmatpush1.msra.mxu0 0.0
        %749 = vmatprep.subr.mxu0 0.0
        %750 = vmatpush1.msra.mxu0 0.0
        %751 = vmatprep.subr.mxu0 0.0
        %752 = vmatpush1.msra.mxu0 0.0
        %753 = vmatprep.subr.mxu0 0.0
        %754 = vmatpush1.msra.mxu0 0.0
        %755 = vmatprep.subr.mxu0 0.0
        %756 = vmatpush1.msra.mxu0 0.0
        %757 = vmatprep.subr.mxu0 0.0
        %758 = vmatpush1.msra.mxu0 0.0
        %759 = vmatprep.subr.mxu0 0.0
        %760 = vmatpush1.msra.mxu0 0.0
        %761 = vmatprep.subr.mxu0 0.0
        %762 = vmatpush1.msra.mxu0 0.0
        %763 = vmatprep.subr.mxu0 0.0
        %764 = vmatpush1.msra.mxu0 0.0
        %765 = vmatprep.subr.mxu0 0.0
        %766 = vmatpush1.msra.mxu0 0.0
        %767 = vmatprep.subr.mxu0 0.0
        %768 = vmatpush1.msra.mxu0 0.0
        %769 = vmatprep.subr.mxu0 0.0
        %770 = vmatpush1.msra.mxu0 0.0
        %771 = vmatprep.subr.mxu0 0.0
        %772 = vmatpush1.msra.mxu0 0.0
        %773 = vmatprep.subr.mxu0 0.0
        %774 = vmatpush1.msra.mxu0 0.0
        %775 = vmatprep.subr.mxu0 0.0
        %776 = vmatpush1.msra.mxu0 0.0
        %777 = vmatprep.mubr.f32.mxu0 0.0
        %778 = vmatmul.mubr.f32.gmra.mrb[0].mxu0 %v356
        %v779 = vpop.f32.mrb[0].mxu0
        %v780 = vadd.f32 %v352, %v779
        %v781 = vpop.f32.mrb[0].mxu0
        %v782 = vadd.f32 %v352, %v781
        %783 = vdwg.mxu0
        %784 = vmatprep.subr.mxu0 %v338
        %785 = vmatpush1.msra.mxu0 %v337
        %786 = vmatprep.subr.mxu0 0.0
        %787 = vmatpush1.msra.mxu0 0.0
        %788 = vmatprep.subr.mxu0 0.0
        %789 = vmatpush1.msra.mxu0 0.0
        %790 = vmatprep.subr.mxu0 0.0
        %791 = vmatpush1.msra.mxu0 0.0
        %792 = vmatprep.subr.mxu0 0.0
        %793 = vmatpush1.msra.mxu0 0.0
        %794 = vmatprep.subr.mxu0 0.0
        %795 = vmatpush1.msra.mxu0 0.0
        %796 = vmatprep.subr.mxu0 0.0
        %797 = vmatpush1.msra.mxu0 0.0
        %798 = vmatprep.subr.mxu0 0.0
        %799 = vmatpush1.msra.mxu0 0.0
        %800 = vmatprep.subr.mxu0 0.0
        %801 = vmatpush1.msra.mxu0 0.0
        %802 = vmatprep.subr.mxu0 0.0
        %803 = vmatpush1.msra.mxu0 0.0
        %804 = vmatprep.subr.mxu0 0.0
        %805 = vmatpush1.msra.mxu0 0.0
        %806 = vmatprep.subr.mxu0 0.0
        %807 = vmatpush1.msra.mxu0 0.0
        %808 = vmatprep.subr.mxu0 0.0
        %809 = vmatpush1.msra.mxu0 0.0
        %810 = vmatprep.subr.mxu0 0.0
        %811 = vmatpush1.msra.mxu0 0.0
        %812 = vmatprep.subr.mxu0 0.0
        %813 = vmatpush1.msra.mxu0 0.0
        %814 = vmatprep.subr.mxu0 0.0
        %815 = vmatpush1.msra.mxu0 0.0
        %816 = vmatprep.subr.mxu0 0.0
        %817 = vmatpush1.msra.mxu0 0.0
        %818 = vmatprep.subr.mxu0 0.0
        %819 = vmatpush1.msra.mxu0 0.0
        %820 = vmatprep.subr.mxu0 0.0
        %821 = vmatpush1.msra.mxu0 0.0
        %822 = vmatprep.subr.mxu0 0.0
        %823 = vmatpush1.msra.mxu0 0.0
        %824 = vmatprep.subr.mxu0 0.0
        %825 = vmatpush1.msra.mxu0 0.0
        %826 = vmatprep.subr.mxu0 0.0
        %827 = vmatpush1.msra.mxu0 0.0
        %828 = vmatprep.subr.mxu0 0.0
        %829 = vmatpush1.msra.mxu0 0.0
        %830 = vmatprep.subr.mxu0 0.0
        %831 = vmatpush1.msra.mxu0 0.0
        %832 = vmatprep.subr.mxu0 0.0
        %833 = vmatpush1.msra.mxu0 0.0
        %834 = vmatprep.subr.mxu0 0.0
        %835 = vmatpush1.msra.mxu0 0.0
        %836 = vmatprep.subr.mxu0 0.0
        %837 = vmatpush1.msra.mxu0 0.0
        %838 = vmatprep.subr.mxu0 0.0
        %839 = vmatpush1.msra.mxu0 0.0
        %840 = vmatprep.subr.mxu0 0.0
        %841 = vmatpush1.msra.mxu0 0.0
        %842 = vmatprep.subr.mxu0 0.0
        %843 = vmatpush1.msra.mxu0 0.0
        %844 = vmatprep.subr.mxu0 0.0
        %845 = vmatpush1.msra.mxu0 0.0
        %846 = vmatprep.subr.mxu0 0.0
        %847 = vmatpush1.msra.mxu0 0.0
        %848 = vmatprep.mubr.f32.mxu0 0.0
        %849 = vmatmul.mubr.f32.gmra.mrb[0].mxu0 %v356
        %v850 = vpop.f32.mrb[0].mxu0
        %v851 = vadd.f32 %v352, %v850
        %v852 = vpop.f32.mrb[0].mxu0
        %v853 = vadd.f32 %v352, %v852
        %854 = vdwg.mxu0
        %855 = vmatprep.subr.mxu0 %v340
        %856 = vmatpush1.msra.mxu0 %v339
        %857 = vmatprep.subr.mxu0 0.0
        %858 = vmatpush1.msra.mxu0 0.0
        %859 = vmatprep.subr.mxu0 0.0
        %860 = vmatpush1.msra.mxu0 0.0
        %861 = vmatprep.subr.mxu0 0.0
        %862 = vmatpush1.msra.mxu0 0.0
        %863 = vmatprep.subr.mxu0 0.0
        %864 = vmatpush1.msra.mxu0 0.0
        %865 = vmatprep.subr.mxu0 0.0
        %866 = vmatpush1.msra.mxu0 0.0
        %867 = vmatprep.subr.mxu0 0.0
        %868 = vmatpush1.msra.mxu0 0.0
        %869 = vmatprep.subr.mxu0 0.0
        %870 = vmatpush1.msra.mxu0 0.0
        %871 = vmatprep.subr.mxu0 0.0
        %872 = vmatpush1.msra.mxu0 0.0
        %873 = vmatprep.subr.mxu0 0.0
        %874 = vmatpush1.msra.mxu0 0.0
        %875 = vmatprep.subr.mxu0 0.0
        %876 = vmatpush1.msra.mxu0 0.0
        %877 = vmatprep.subr.mxu0 0.0
        %878 = vmatpush1.msra.mxu0 0.0
        %879 = vmatprep.subr.mxu0 0.0
        %880 = vmatpush1.msra.mxu0 0.0
        %881 = vmatprep.subr.mxu0 0.0
        %882 = vmatpush1.msra.mxu0 0.0
        %883 = vmatprep.subr.mxu0 0.0
        %884 = vmatpush1.msra.mxu0 0.0
        %885 = vmatprep.subr.mxu0 0.0
        %886 = vmatpush1.msra.mxu0 0.0
        %887 = vmatprep.subr.mxu0 0.0
        %888 = vmatpush1.msra.mxu0 0.0
        %889 = vmatprep.subr.mxu0 0.0
        %890 = vmatpush1.msra.mxu0 0.0
        %891 = vmatprep.subr.mxu0 0.0
        %892 = vmatpush1.msra.mxu0 0.0
        %893 = vmatprep.subr.mxu0 0.0
        %894 = vmatpush1.msra.mxu0 0.0
        %895 = vmatprep.subr.mxu0 0.0
        %896 = vmatpush1.msra.mxu0 0.0
        %897 = vmatprep.subr.mxu0 0.0
        %898 = vmatpush1.msra.mxu0 0.0
        %899 = vmatprep.subr.mxu0 0.0
        %900 = vmatpush1.msra.mxu0 0.0
        %901 = vmatprep.subr.mxu0 0.0
        %902 = vmatpush1.msra.mxu0 0.0
        %903 = vmatprep.subr.mxu0 0.0
        %904 = vmatpush1.msra.mxu0 0.0
        %905 = vmatprep.subr.mxu0 0.0
        %906 = vmatpush1.msra.mxu0 0.0
        %907 = vmatprep.subr.mxu0 0.0
        %908 = vmatpush1.msra.mxu0 0.0
        %909 = vmatprep.subr.mxu0 0.0
        %910 = vmatpush1.msra.mxu0 0.0
        %911 = vmatprep.subr.mxu0 0.0
        %912 = vmatpush1.msra.mxu0 0.0
        %913 = vmatprep.subr.mxu0 0.0
        %914 = vmatpush1.msra.mxu0 0.0
        %915 = vmatprep.subr.mxu0 0.0
        %916 = vmatpush1.msra.mxu0 0.0
        %917 = vmatprep.subr.mxu0 0.0
        %918 = vmatpush1.msra.mxu0 0.0
        %919 = vmatprep.mubr.f32.mxu0 0.0
        %920 = vmatmul.mubr.f32.gmra.mrb[0].mxu0 %v356
        %v921 = vpop.f32.mrb[0].mxu0
        %v922 = vadd.f32 %v352, %v921
        %v923 = vpop.f32.mrb[0].mxu0
        %v924 = vadd.f32 %v352, %v923
        %925 = vdwg.mxu0
        %v926 = vadd.f32 %v425, 3.0
        %v927 = vadd.f32 %v427, 3.0
        %v928 = vadd.f32 %v496, 3.0
        %v929 = vadd.f32 %v498, 3.0
        %v930 = vadd.f32 %v567, 3.0
        %v931 = vadd.f32 %v569, 3.0
        %v932 = vadd.f32 %v638, 3.0
        %v933 = vadd.f32 %v640, 3.0
        %v934 = vadd.f32 %v709, 3.0
        %v935 = vadd.f32 %v711, 3.0
        %v936 = vadd.f32 %v780, 3.0
        %v937 = vadd.f32 %v782, 3.0
        %v938 = vadd.f32 %v851, 3.0
        %v939 = vadd.f32 %v853, 3.0
        %v940 = vadd.f32 %v922, 3.0
        %v941 = vadd.f32 %v924, 3.0
        %v942 = vmax.f32 %v926, 0.0
        %v943 = vmax.f32 %v927, 0.0
        %v944 = vmax.f32 %v928, 0.0
        %v945 = vmax.f32 %v929, 0.0
        %v946 = vmax.f32 %v930, 0.0
        %v947 = vmax.f32 %v931, 0.0
        %v948 = vmax.f32 %v932, 0.0
        %v949 = vmax.f32 %v933, 0.0
        %v950 = vmax.f32 %v934, 0.0
        %v951 = vmax.f32 %v935, 0.0
        %v952 = vmax.f32 %v936, 0.0
        %v953 = vmax.f32 %v937, 0.0
        %v954 = vmax.f32 %v938, 0.0
        %v955 = vmax.f32 %v939, 0.0
        %v956 = vmax.f32 %v940, 0.0
        %v957 = vmax.f32 %v941, 0.0
        %v958 = vmin.f32 %v942, 6.0
        %v959 = vmin.f32 %v943, 6.0
        %v960 = vmin.f32 %v944, 6.0
        %v961 = vmin.f32 %v945, 6.0
        %v962 = vmin.f32 %v946, 6.0
        %v963 = vmin.f32 %v947, 6.0
        %v964 = vmin.f32 %v948, 6.0
        %v965 = vmin.f32 %v949, 6.0
        %v966 = vmin.f32 %v950, 6.0
        %v967 = vmin.f32 %v951, 6.0
        %v968 = vmin.f32 %v952, 6.0
        %v969 = vmin.f32 %v953, 6.0
        %v970 = vmin.f32 %v954, 6.0
        %v971 = vmin.f32 %v955, 6.0
        %v972 = vmin.f32 %v956, 6.0
        %v973 = vmin.f32 %v957, 6.0
        %v974 = vmul.f32 %v958, 0.16666667
        %v975 = vmul.f32 %v959, 0.16666667
        %v976 = vmul.f32 %v960, 0.16666667
        %v977 = vmul.f32 %v961, 0.16666667
        %v978 = vmul.f32 %v962, 0.16666667
        %v979 = vmul.f32 %v963, 0.16666667
        %v980 = vmul.f32 %v964, 0.16666667
        %v981 = vmul.f32 %v965, 0.16666667
        %v982 = vmul.f32 %v966, 0.16666667
        %v983 = vmul.f32 %v967, 0.16666667
        %v984 = vmul.f32 %v968, 0.16666667
        %v985 = vmul.f32 %v969, 0.16666667
        %v986 = vmul.f32 %v970, 0.16666667
        %v987 = vmul.f32 %v971, 0.16666667
        %v988 = vmul.f32 %v972, 0.16666667
        %v989 = vmul.f32 %v973, 0.16666667
        %v990 = vmul.f32 %v425, %v974
        %v991 = vmul.f32 %v427, %v975
        %v992 = vmul.f32 %v496, %v976
        %v993 = vmul.f32 %v498, %v977
        %v994 = vmul.f32 %v567, %v978
        %v995 = vmul.f32 %v569, %v979
        %v996 = vmul.f32 %v638, %v980
        %v997 = vmul.f32 %v640, %v981
        %v998 = vmul.f32 %v709, %v982
        %v999 = vmul.f32 %v711, %v983
        %v1000 = vmul.f32 %v780, %v984
        %v1001 = vmul.f32 %v782, %v985
        %v1002 = vmul.f32 %v851, %v986
        %v1003 = vmul.f32 %v853, %v987
        %v1004 = vmul.f32 %v922, %v988
        %v1005 = vmul.f32 %v924, %v989
        %vm1006 = vcmp.lt.s32.totalorder %v343, 16
        %vm1007 = vcmp.lt.s32.totalorder %v344, 16
        %v1008 = vsel %vm1006, 1, 0
        %v1009 = vsel %vm1007, 1, 0
        %v1010 = vlaneseq
        %v1011 = vshrl.u32 %v1010, 7
        %v1012 = vsub.s32 0, %v1011
        %v1013 = vrot.slane %v1008, %v1012
        %v1014 = vlaneseq
        %v1015 = vshrl.u32 %v1014, 7
        %v1016 = vsub.s32 1, %v1015
        %v1017 = vrot.slane %v1008, %v1016
        %v1018 = vlaneseq
        %v1019 = vshrl.u32 %v1018, 7
        %v1020 = vsub.s32 2, %v1019
        %v1021 = vrot.slane %v1008, %v1020
        %v1022 = vlaneseq
        %v1023 = vshrl.u32 %v1022, 7
        %v1024 = vsub.s32 3, %v1023
        %v1025 = vrot.slane %v1008, %v1024
        %v1026 = vlaneseq
        %v1027 = vshrl.u32 %v1026, 7
        %v1028 = vsub.s32 4, %v1027
        %v1029 = vrot.slane %v1008, %v1028
        %v1030 = vlaneseq
        %v1031 = vshrl.u32 %v1030, 7
        %v1032 = vsub.s32 5, %v1031
        %v1033 = vrot.slane %v1008, %v1032
        %v1034 = vlaneseq
        %v1035 = vshrl.u32 %v1034, 7
        %v1036 = vsub.s32 6, %v1035
        %v1037 = vrot.slane %v1008, %v1036
        %v1038 = vlaneseq
        %v1039 = vshrl.u32 %v1038, 7
        %v1040 = vsub.s32 7, %v1039
        %v1041 = vrot.slane %v1008, %v1040
        %v1042 = vlaneseq
        %v1043 = vshrl.u32 %v1042, 7
        %v1044 = vsub.s32 0, %v1043
        %v1045 = vrot.slane %v1009, %v1044
        %v1046 = vlaneseq
        %v1047 = vshrl.u32 %v1046, 7
        %v1048 = vsub.s32 1, %v1047
        %v1049 = vrot.slane %v1009, %v1048
        %v1050 = vlaneseq
        %v1051 = vshrl.u32 %v1050, 7
        %v1052 = vsub.s32 2, %v1051
        %v1053 = vrot.slane %v1009, %v1052
        %v1054 = vlaneseq
        %v1055 = vshrl.u32 %v1054, 7
        %v1056 = vsub.s32 3, %v1055
        %v1057 = vrot.slane %v1009, %v1056
        %v1058 = vlaneseq
        %v1059 = vshrl.u32 %v1058, 7
        %v1060 = vsub.s32 4, %v1059
        %v1061 = vrot.slane %v1009, %v1060
        %v1062 = vlaneseq
        %v1063 = vshrl.u32 %v1062, 7
        %v1064 = vsub.s32 5, %v1063
        %v1065 = vrot.slane %v1009, %v1064
        %v1066 = vlaneseq
        %v1067 = vshrl.u32 %v1066, 7
        %v1068 = vsub.s32 6, %v1067
        %v1069 = vrot.slane %v1009, %v1068
        %v1070 = vlaneseq
        %v1071 = vshrl.u32 %v1070, 7
        %v1072 = vsub.s32 7, %v1071
        %v1073 = vrot.slane %v1009, %v1072
        %vm1074 = vcmp.eq.s32.totalorder %v1013, 1
        %vm1075 = vcmp.eq.s32.totalorder %v1017, 1
        %vm1076 = vcmp.eq.s32.totalorder %v1021, 1
        %vm1077 = vcmp.eq.s32.totalorder %v1025, 1
        %vm1078 = vcmp.eq.s32.totalorder %v1029, 1
        %vm1079 = vcmp.eq.s32.totalorder %v1033, 1
        %vm1080 = vcmp.eq.s32.totalorder %v1037, 1
        %vm1081 = vcmp.eq.s32.totalorder %v1041, 1
        %vm1082 = vcmp.eq.s32.totalorder %v1045, 1
        %vm1083 = vcmp.eq.s32.totalorder %v1049, 1
        %vm1084 = vcmp.eq.s32.totalorder %v1053, 1
        %vm1085 = vcmp.eq.s32.totalorder %v1057, 1
        %vm1086 = vcmp.eq.s32.totalorder %v1061, 1
        %vm1087 = vcmp.eq.s32.totalorder %v1065, 1
        %vm1088 = vcmp.eq.s32.totalorder %v1069, 1
        %vm1089 = vcmp.eq.s32.totalorder %v1073, 1
        %v1090 = vsel %vm1074, %v990, 0.0
        %v1091 = vsel %vm1075, %v991, 0.0
        %v1092 = vsel %vm1076, %v992, 0.0
        %v1093 = vsel %vm1077, %v993, 0.0
        %v1094 = vsel %vm1078, %v994, 0.0
        %v1095 = vsel %vm1079, %v995, 0.0
        %v1096 = vsel %vm1080, %v996, 0.0
        %v1097 = vsel %vm1081, %v997, 0.0
        %v1098 = vsel %vm1082, %v998, 0.0
        %v1099 = vsel %vm1083, %v999, 0.0
        %v1100 = vsel %vm1084, %v1000, 0.0
        %v1101 = vsel %vm1085, %v1001, 0.0
        %v1102 = vsel %vm1086, %v1002, 0.0
        %v1103 = vsel %vm1087, %v1003, 0.0
        %v1104 = vsel %vm1088, %v1004, 0.0
        %v1105 = vsel %vm1089, %v1005, 0.0
        %v1106 = vadd.f32 %v1090, %v1091
        %v1107 = vadd.f32 %v1106, %v1092
        %v1108 = vadd.f32 %v1107, %v1093
        %v1109 = vadd.f32 %v1108, %v1094
        %v1110 = vadd.f32 %v1109, %v1095
        %v1111 = vadd.f32 %v1110, %v1096
        %v1112 = vadd.f32 %v1111, %v1097
        %v1113 = vadd.f32 %v1112, %v1098
        %v1114 = vadd.f32 %v1113, %v1099
        %v1115 = vadd.f32 %v1114, %v1100
        %v1116 = vadd.f32 %v1115, %v1101
        %v1117 = vadd.f32 %v1116, %v1102
        %v1118 = vadd.f32 %v1117, %v1103
        %v1119 = vadd.f32 %v1118, %v1104
        %v1120 = vadd.f32 %v1119, %v1105
        %1121 = vadd.xlane.f32.xlu0 %v1120
        %v1122 = vpop.xlane.xlu0 %1121
        %v1123 = vsel %vm1074, %v990, -inf
        %v1124 = vsel %vm1075, %v991, -inf
        %v1125 = vsel %vm1076, %v992, -inf
        %v1126 = vsel %vm1077, %v993, -inf
        %v1127 = vsel %vm1078, %v994, -inf
        %v1128 = vsel %vm1079, %v995, -inf
        %v1129 = vsel %vm1080, %v996, -inf
        %v1130 = vsel %vm1081, %v997, -inf
        %v1131 = vsel %vm1082, %v998, -inf
        %v1132 = vsel %vm1083, %v999, -inf
        %v1133 = vsel %vm1084, %v1000, -inf
        %v1134 = vsel %vm1085, %v1001, -inf
        %v1135 = vsel %vm1086, %v1002, -inf
        %v1136 = vsel %vm1087, %v1003, -inf
        %v1137 = vsel %vm1088, %v1004, -inf
        %v1138 = vsel %vm1089, %v1005, -inf
        %v1139 = vmax.f32 %v1123, %v1127
        %v1140 = vmax.f32 %v1124, %v1128
        %v1141 = vmax.f32 %v1125, %v1129
        %v1142 = vmax.f32 %v1126, %v1130
        %v1143 = vmax.f32 %v1139, %v1131
        %v1144 = vmax.f32 %v1140, %v1132
        %v1145 = vmax.f32 %v1141, %v1133
        %v1146 = vmax.f32 %v1142, %v1134
        %v1147 = vmax.f32 %v1143, %v1135
        %v1148 = vmax.f32 %v1144, %v1136
        %v1149 = vmax.f32 %v1145, %v1137
        %v1150 = vmax.f32 %v1146, %v1138
        %v1151 = vmax.f32 %v1147, %v1148
        %v1152 = vmax.f32 %v1149, %v1150
        %v1153 = vmax.f32 %v1151, %v1152
        %1154 = vmax.xlane.f32.xlu0 %v1153
        %v1155 = vpop.xlane.xlu0 %1154
        %v1156 = vmul.f32 %v1122, 0.00390625
        %v1158 = vsel %vm354, %v345, 0
        %1160 = vmatprep.subr.mxu0 0.0
        %1161 = vmatpush1.msra.mxu0 %v1156
        %1162 = vmatprep.subr.mxu0 0.0
        %1163 = vmatpush1.msra.mxu0 0.0
        %1164 = vmatprep.subr.mxu0 0.0
        %1165 = vmatpush1.msra.mxu0 0.0
        %1166 = vmatprep.subr.mxu0 0.0
        %1167 = vmatpush1.msra.mxu0 0.0
        %1168 = vmatprep.subr.mxu0 0.0
        %1169 = vmatpush1.msra.mxu0 0.0
        %1170 = vmatprep.subr.mxu0 0.0
        %1171 = vmatpush1.msra.mxu0 0.0
        %1172 = vmatprep.subr.mxu0 0.0
        %1173 = vmatpush1.msra.mxu0 0.0
        %1174 = vmatprep.subr.mxu0 0.0
        %1175 = vmatpush1.msra.mxu0 0.0
        %1176 = vmatprep.subr.mxu0 0.0
        %1177 = vmatpush1.msra.mxu0 0.0
        %1178 = vmatprep.subr.mxu0 0.0
        %1179 = vmatpush1.msra.mxu0 0.0
        %1180 = vmatprep.subr.mxu0 0.0
        %1181 = vmatpush1.msra.mxu0 0.0
        %1182 = vmatprep.subr.mxu0 0.0
        %1183 = vmatpush1.msra.mxu0 0.0
        %1184 = vmatprep.subr.mxu0 0.0
        %1185 = vmatpush1.msra.mxu0 0.0
        %1186 = vmatprep.subr.mxu0 0.0
        %1187 = vmatpush1.msra.mxu0 0.0
        %1188 = vmatprep.subr.mxu0 0.0
        %1189 = vmatpush1.msra.mxu0 0.0
        %1190 = vmatprep.subr.mxu0 0.0
        %1191 = vmatpush1.msra.mxu0 0.0
        %1192 = vmatprep.subr.mxu0 0.0
        %1193 = vmatpush1.msra.mxu0 0.0
        %1194 = vmatprep.subr.mxu0 0.0
        %1195 = vmatpush1.msra.mxu0 0.0
        %1196 = vmatprep.subr.mxu0 0.0
        %1197 = vmatpush1.msra.mxu0 0.0
        %1198 = vmatprep.subr.mxu0 0.0
        %1199 = vmatpush1.msra.mxu0 0.0
        %1200 = vmatprep.subr.mxu0 0.0
        %1201 = vmatpush1.msra.mxu0 0.0
        %1202 = vmatprep.subr.mxu0 0.0
        %1203 = vmatpush1.msra.mxu0 0.0
        %1204 = vmatprep.subr.mxu0 0.0
        %1205 = vmatpush1.msra.mxu0 0.0
        %1206 = vmatprep.subr.mxu0 0.0
        %1207 = vmatpush1.msra.mxu0 0.0
        %1208 = vmatprep.subr.mxu0 0.0
        %1209 = vmatpush1.msra.mxu0 0.0
        %1210 = vmatprep.subr.mxu0 0.0
        %1211 = vmatpush1.msra.mxu0 0.0
        %1212 = vmatprep.subr.mxu0 0.0
        %1213 = vmatpush1.msra.mxu0 0.0
        %1214 = vmatprep.subr.mxu0 0.0
        %1215 = vmatpush1.msra.mxu0 0.0
        %1216 = vmatprep.subr.mxu0 0.0
        %1217 = vmatpush1.msra.mxu0 0.0
        %1218 = vmatprep.subr.mxu0 0.0
        %1219 = vmatpush1.msra.mxu0 0.0
        %1220 = vmatprep.subr.mxu0 0.0
        %1221 = vmatpush1.msra.mxu0 0.0
        %1222 = vmatprep.subr.mxu0 0.0
        %1223 = vmatpush1.msra.mxu0 0.0
        %1224 = vmatprep.mubr.f32.mxu0 0.0
        %1225 = vmatmul.mubr.f32.gmra.mrb[0].mxu0 %v1158
        %v1226 = vpop.f32.mrb[0].mxu0
        %v1227 = vadd.f32 0.0, %v1226
        %v1228 = vpop.f32.mrb[0].mxu0
        %1229 = vdwg.mxu0
        %v1230 = vmax.f32 %v1227, 0.0
        %1231 = vmatprep.subr.mxu0 0.0
        %1232 = vmatpush1.msra.mxu0 %v1155
        %1233 = vmatprep.subr.mxu0 0.0
        %1234 = vmatpush1.msra.mxu0 0.0
        %1235 = vmatprep.subr.mxu0 0.0
        %1236 = vmatpush1.msra.mxu0 0.0
        %1237 = vmatprep.subr.mxu0 0.0
        %1238 = vmatpush1.msra.mxu0 0.0
        %1239 = vmatprep.subr.mxu0 0.0
        %1240 = vmatpush1.msra.mxu0 0.0
        %1241 = vmatprep.subr.mxu0 0.0
        %1242 = vmatpush1.msra.mxu0 0.0
        %1243 = vmatprep.subr.mxu0 0.0
        %1244 = vmatpush1.msra.mxu0 0.0
        %1245 = vmatprep.subr.mxu0 0.0
        %1246 = vmatpush1.msra.mxu0 0.0
        %1247 = vmatprep.subr.mxu0 0.0
        %1248 = vmatpush1.msra.mxu0 0.0
        %1249 = vmatprep.subr.mxu0 0.0
        %1250 = vmatpush1.msra.mxu0 0.0
        %1251 = vmatprep.subr.mxu0 0.0
        %1252 = vmatpush1.msra.mxu0 0.0
        %1253 = vmatprep.subr.mxu0 0.0
        %1254 = vmatpush1.msra.mxu0 0.0
        %1255 = vmatprep.subr.mxu0 0.0
        %1256 = vmatpush1.msra.mxu0 0.0
        %1257 = vmatprep.subr.mxu0 0.0
        %1258 = vmatpush1.msra.mxu0 0.0
        %1259 = vmatprep.subr.mxu0 0.0
        %1260 = vmatpush1.msra.mxu0 0.0
        %1261 = vmatprep.subr.mxu0 0.0
        %1262 = vmatpush1.msra.mxu0 0.0
        %1263 = vmatprep.subr.mxu0 0.0
        %1264 = vmatpush1.msra.mxu0 0.0
        %1265 = vmatprep.subr.mxu0 0.0
        %1266 = vmatpush1.msra.mxu0 0.0
        %1267 = vmatprep.subr.mxu0 0.0
        %1268 = vmatpush1.msra.mxu0 0.0
        %1269 = vmatprep.subr.mxu0 0.0
        %1270 = vmatpush1.msra.mxu0 0.0
        %1271 = vmatprep.subr.mxu0 0.0
        %1272 = vmatpush1.msra.mxu0 0.0
        %1273 = vmatprep.subr.mxu0 0.0
        %1274 = vmatpush1.msra.mxu0 0.0
        %1275 = vmatprep.subr.mxu0 0.0
        %1276 = vmatpush1.msra.mxu0 0.0
        %1277 = vmatprep.subr.mxu0 0.0
        %1278 = vmatpush1.msra.mxu0 0.0
        %1279 = vmatprep.subr.mxu0 0.0
        %1280 = vmatpush1.msra.mxu0 0.0
        %1281 = vmatprep.subr.mxu0 0.0
        %1282 = vmatpush1.msra.mxu0 0.0
        %1283 = vmatprep.subr.mxu0 0.0
        %1284 = vmatpush1.msra.mxu0 0.0
        %1285 = vmatprep.subr.mxu0 0.0
        %1286 = vmatpush1.msra.mxu0 0.0
        %1287 = vmatprep.subr.mxu0 0.0
        %1288 = vmatpush1.msra.mxu0 0.0
        %1289 = vmatprep.subr.mxu0 0.0
        %1290 = vmatpush1.msra.mxu0 0.0
        %1291 = vmatprep.subr.mxu0 0.0
        %1292 = vmatpush1.msra.mxu0 0.0
        %1293 = vmatprep.subr.mxu0 0.0
        %1294 = vmatpush1.msra.mxu0 0.0
        %1295 = vmatprep.mubr.f32.mxu0 0.0
        %1296 = vmatmul.mubr.f32.gmra.mrb[0].mxu0 %v1158
        %v1297 = vpop.f32.mrb[0].mxu0
        %v1298 = vadd.f32 0.0, %v1297
        %v1299 = vpop.f32.mrb[0].mxu0
        %1300 = vdwg.mxu0
        %v1301 = vmax.f32 %v1298, 0.0
        %v1303 = vsel %vm354, %v346, 0
        %1305 = vmatprep.subr.mxu0 0.0
        %1306 = vmatpush1.msra.mxu0 %v1301
        %1307 = vmatprep.subr.mxu0 0.0
        %1308 = vmatpush1.msra.mxu0 0.0
        %1309 = vmatprep.subr.mxu0 0.0
        %1310 = vmatpush1.msra.mxu0 0.0
        %1311 = vmatprep.subr.mxu0 0.0
        %1312 = vmatpush1.msra.mxu0 0.0
        %1313 = vmatprep.subr.mxu0 0.0
        %1314 = vmatpush1.msra.mxu0 0.0
        %1315 = vmatprep.subr.mxu0 0.0
        %1316 = vmatpush1.msra.mxu0 0.0
        %1317 = vmatprep.subr.mxu0 0.0
        %1318 = vmatpush1.msra.mxu0 0.0
        %1319 = vmatprep.subr.mxu0 0.0
        %1320 = vmatpush1.msra.mxu0 0.0
        %1321 = vmatprep.subr.mxu0 0.0
        %1322 = vmatpush1.msra.mxu0 0.0
        %1323 = vmatprep.subr.mxu0 0.0
        %1324 = vmatpush1.msra.mxu0 0.0
        %1325 = vmatprep.subr.mxu0 0.0
        %1326 = vmatpush1.msra.mxu0 0.0
        %1327 = vmatprep.subr.mxu0 0.0
        %1328 = vmatpush1.msra.mxu0 0.0
        %1329 = vmatprep.subr.mxu0 0.0
        %1330 = vmatpush1.msra.mxu0 0.0
        %1331 = vmatprep.subr.mxu0 0.0
        %1332 = vmatpush1.msra.mxu0 0.0
        %1333 = vmatprep.subr.mxu0 0.0
        %1334 = vmatpush1.msra.mxu0 0.0
        %1335 = vmatprep.subr.mxu0 0.0
        %1336 = vmatpush1.msra.mxu0 0.0
        %1337 = vmatprep.subr.mxu0 0.0
        %1338 = vmatpush1.msra.mxu0 0.0
        %1339 = vmatprep.subr.mxu0 0.0
        %1340 = vmatpush1.msra.mxu0 0.0
        %1341 = vmatprep.subr.mxu0 0.0
        %1342 = vmatpush1.msra.mxu0 0.0
        %1343 = vmatprep.subr.mxu0 0.0
        %1344 = vmatpush1.msra.mxu0 0.0
        %1345 = vmatprep.subr.mxu0 0.0
        %1346 = vmatpush1.msra.mxu0 0.0
        %1347 = vmatprep.subr.mxu0 0.0
        %1348 = vmatpush1.msra.mxu0 0.0
        %1349 = vmatprep.subr.mxu0 0.0
        %1350 = vmatpush1.msra.mxu0 0.0
        %1351 = vmatprep.subr.mxu0 0.0
        %1352 = vmatpush1.msra.mxu0 0.0
        %1353 = vmatprep.subr.mxu0 0.0
        %1354 = vmatpush1.msra.mxu0 0.0
        %1355 = vmatprep.subr.mxu0 0.0
        %1356 = vmatpush1.msra.mxu0 0.0
        %1357 = vmatprep.subr.mxu0 0.0
        %1358 = vmatpush1.msra.mxu0 0.0
        %1359 = vmatprep.subr.mxu0 0.0
        %1360 = vmatpush1.msra.mxu0 0.0
        %1361 = vmatprep.subr.mxu0 0.0
        %1362 = vmatpush1.msra.mxu0 0.0
        %1363 = vmatprep.subr.mxu0 0.0
        %1364 = vmatpush1.msra.mxu0 0.0
        %1365 = vmatprep.subr.mxu0 0.0
        %1366 = vmatpush1.msra.mxu0 0.0
        %1367 = vmatprep.subr.mxu0 0.0
        %1368 = vmatpush1.msra.mxu0 0.0
        %1369 = vmatprep.mubr.f32.mxu0 0.0
        %1370 = vmatmul.mubr.f32.gmra.mrb[0].mxu0 %v1303
        %v1371 = vpop.f32.mrb[0].mxu0
        %v1372 = vadd.f32 0.0, %v1371
        %v1373 = vpop.f32.mrb[0].mxu0
        %1374 = vdwg.mxu0
        %1375 = vmatprep.subr.mxu0 0.0
        %1376 = vmatpush1.msra.mxu0 %v1230
        %1377 = vmatprep.subr.mxu0 0.0
        %1378 = vmatpush1.msra.mxu0 0.0
        %1379 = vmatprep.subr.mxu0 0.0
        %1380 = vmatpush1.msra.mxu0 0.0
        %1381 = vmatprep.subr.mxu0 0.0
        %1382 = vmatpush1.msra.mxu0 0.0
        %1383 = vmatprep.subr.mxu0 0.0
        %1384 = vmatpush1.msra.mxu0 0.0
        %1385 = vmatprep.subr.mxu0 0.0
        %1386 = vmatpush1.msra.mxu0 0.0
        %1387 = vmatprep.subr.mxu0 0.0
        %1388 = vmatpush1.msra.mxu0 0.0
        %1389 = vmatprep.subr.mxu0 0.0
        %1390 = vmatpush1.msra.mxu0 0.0
        %1391 = vmatprep.subr.mxu0 0.0
        %1392 = vmatpush1.msra.mxu0 0.0
        %1393 = vmatprep.subr.mxu0 0.0
        %1394 = vmatpush1.msra.mxu0 0.0
        %1395 = vmatprep.subr.mxu0 0.0
        %1396 = vmatpush1.msra.mxu0 0.0
        %1397 = vmatprep.subr.mxu0 0.0
        %1398 = vmatpush1.msra.mxu0 0.0
        %1399 = vmatprep.subr.mxu0 0.0
        %1400 = vmatpush1.msra.mxu0 0.0
        %1401 = vmatprep.subr.mxu0 0.0
        %1402 = vmatpush1.msra.mxu0 0.0
        %1403 = vmatprep.subr.mxu0 0.0
        %1404 = vmatpush1.msra.mxu0 0.0
        %1405 = vmatprep.subr.mxu0 0.0
        %1406 = vmatpush1.msra.mxu0 0.0
        %1407 = vmatprep.subr.mxu0 0.0
        %1408 = vmatpush1.msra.mxu0 0.0
        %1409 = vmatprep.subr.mxu0 0.0
        %1410 = vmatpush1.msra.mxu0 0.0
        %1411 = vmatprep.subr.mxu0 0.0
        %1412 = vmatpush1.msra.mxu0 0.0
        %1413 = vmatprep.subr.mxu0 0.0
        %1414 = vmatpush1.msra.mxu0 0.0
        %1415 = vmatprep.subr.mxu0 0.0
        %1416 = vmatpush1.msra.mxu0 0.0
        %1417 = vmatprep.subr.mxu0 0.0
        %1418 = vmatpush1.msra.mxu0 0.0
        %1419 = vmatprep.subr.mxu0 0.0
        %1420 = vmatpush1.msra.mxu0 0.0
        %1421 = vmatprep.subr.mxu0 0.0
        %1422 = vmatpush1.msra.mxu0 0.0
        %1423 = vmatprep.subr.mxu0 0.0
        %1424 = vmatpush1.msra.mxu0 0.0
        %1425 = vmatprep.subr.mxu0 0.0
        %1426 = vmatpush1.msra.mxu0 0.0
        %1427 = vmatprep.subr.mxu0 0.0
        %1428 = vmatpush1.msra.mxu0 0.0
        %1429 = vmatprep.subr.mxu0 0.0
        %1430 = vmatpush1.msra.mxu0 0.0
        %1431 = vmatprep.subr.mxu0 0.0
        %1432 = vmatpush1.msra.mxu0 0.0
        %1433 = vmatprep.subr.mxu0 0.0
        %1434 = vmatpush1.msra.mxu0 0.0
        %1435 = vmatprep.subr.mxu0 0.0
        %1436 = vmatpush1.msra.mxu0 0.0
        %1437 = vmatprep.subr.mxu0 0.0
        %1438 = vmatpush1.msra.mxu0 0.0
        %1439 = vmatprep.mubr.f32.mxu0 0.0
        %1440 = vmatmul.mubr.f32.gmra.mrb[0].mxu0 %v1303
        %v1441 = vpop.f32.mrb[0].mxu0
        %v1442 = vadd.f32 %v1372, %v1441
        %v1443 = vpop.f32.mrb[0].mxu0
        %1444 = vdwg.mxu0
        %v1445 = vxor.u32 %v1442, 2147483648
        %v1446 = vmul.f32 %v1445, 1.442695
        %v1447 = vpow.pop %v1446
        %v1448 = vadd.f32 %v1447, 1.0
        %v1449 = vrcp.pop %v1448
        %v1450 = vmul.f32 1.0, %v1449
        %1452 = vset.pattern.permute.xlu0 0
        %1453 = vperm.xlu0 %1452, %v1450
        %v1454 = vpop.permute.xlu0 %1453
        %v1456 = vmul.f32 %v990, %v1454
        %v1457 = vmul.f32 %v991, %v1454
        %v1458 = vmul.f32 %v992, %v1454
        %v1459 = vmul.f32 %v993, %v1454
        %v1460 = vmul.f32 %v994, %v1454
        %v1461 = vmul.f32 %v995, %v1454
        %v1462 = vmul.f32 %v996, %v1454
        %v1463 = vmul.f32 %v997, %v1454
        %v1464 = vmul.f32 %v998, %v1454
        %v1465 = vmul.f32 %v999, %v1454
        %v1466 = vmul.f32 %v1000, %v1454
        %v1467 = vmul.f32 %v1001, %v1454
        %v1468 = vmul.f32 %v1002, %v1454
        %v1469 = vmul.f32 %v1003, %v1454
        %v1470 = vmul.f32 %v1004, %v1454
        %v1471 = vmul.f32 %v1005, %v1454
        %v1472 = vrot.slane %v1456, 4
        %v1473 = vadd.f32 %v1456, %v1472
        %v1474 = vrot.slane %v1473, 2
        %v1475 = vadd.f32 %v1473, %v1474
        %v1476 = vrot.slane %v1475, 1
        %v1477 = vadd.f32 %v1475, %v1476
        %v1478 = vrot.slane %v1457, 4
        %v1479 = vadd.f32 %v1457, %v1478
        %v1480 = vrot.slane %v1479, 2
        %v1481 = vadd.f32 %v1479, %v1480
        %v1482 = vrot.slane %v1481, 1
        %v1483 = vadd.f32 %v1481, %v1482
        %v1484 = vrot.slane %v1458, 4
        %v1485 = vadd.f32 %v1458, %v1484
        %v1486 = vrot.slane %v1485, 2
        %v1487 = vadd.f32 %v1485, %v1486
        %v1488 = vrot.slane %v1487, 1
        %v1489 = vadd.f32 %v1487, %v1488
        %v1490 = vrot.slane %v1459, 4
        %v1491 = vadd.f32 %v1459, %v1490
        %v1492 = vrot.slane %v1491, 2
        %v1493 = vadd.f32 %v1491, %v1492
        %v1494 = vrot.slane %v1493, 1
        %v1495 = vadd.f32 %v1493, %v1494
        %v1496 = vrot.slane %v1460, 4
        %v1497 = vadd.f32 %v1460, %v1496
        %v1498 = vrot.slane %v1497, 2
        %v1499 = vadd.f32 %v1497, %v1498
        %v1500 = vrot.slane %v1499, 1
        %v1501 = vadd.f32 %v1499, %v1500
        %v1502 = vrot.slane %v1461, 4
        %v1503 = vadd.f32 %v1461, %v1502
        %v1504 = vrot.slane %v1503, 2
        %v1505 = vadd.f32 %v1503, %v1504
        %v1506 = vrot.slane %v1505, 1
        %v1507 = vadd.f32 %v1505, %v1506
        %v1508 = vrot.slane %v1462, 4
        %v1509 = vadd.f32 %v1462, %v1508
        %v1510 = vrot.slane %v1509, 2
        %v1511 = vadd.f32 %v1509, %v1510
        %v1512 = vrot.slane %v1511, 1
        %v1513 = vadd.f32 %v1511, %v1512
        %v1514 = vrot.slane %v1463, 4
        %v1515 = vadd.f32 %v1463, %v1514
        %v1516 = vrot.slane %v1515, 2
        %v1517 = vadd.f32 %v1515, %v1516
        %v1518 = vrot.slane %v1517, 1
        %v1519 = vadd.f32 %v1517, %v1518
        %v1520 = vrot.slane %v1464, 4
        %v1521 = vadd.f32 %v1464, %v1520
        %v1522 = vrot.slane %v1521, 2
        %v1523 = vadd.f32 %v1521, %v1522
        %v1524 = vrot.slane %v1523, 1
        %v1525 = vadd.f32 %v1523, %v1524
        %v1526 = vrot.slane %v1465, 4
        %v1527 = vadd.f32 %v1465, %v1526
        %v1528 = vrot.slane %v1527, 2
        %v1529 = vadd.f32 %v1527, %v1528
        %v1530 = vrot.slane %v1529, 1
        %v1531 = vadd.f32 %v1529, %v1530
        %v1532 = vrot.slane %v1466, 4
        %v1533 = vadd.f32 %v1466, %v1532
        %v1534 = vrot.slane %v1533, 2
        %v1535 = vadd.f32 %v1533, %v1534
        %v1536 = vrot.slane %v1535, 1
        %v1537 = vadd.f32 %v1535, %v1536
        %v1538 = vrot.slane %v1467, 4
        %v1539 = vadd.f32 %v1467, %v1538
        %v1540 = vrot.slane %v1539, 2
        %v1541 = vadd.f32 %v1539, %v1540
        %v1542 = vrot.slane %v1541, 1
        %v1543 = vadd.f32 %v1541, %v1542
        %v1544 = vrot.slane %v1468, 4
        %v1545 = vadd.f32 %v1468, %v1544
        %v1546 = vrot.slane %v1545, 2
        %v1547 = vadd.f32 %v1545, %v1546
        %v1548 = vrot.slane %v1547, 1
        %v1549 = vadd.f32 %v1547, %v1548
        %v1550 = vrot.slane %v1469, 4
        %v1551 = vadd.f32 %v1469, %v1550
        %v1552 = vrot.slane %v1551, 2
        %v1553 = vadd.f32 %v1551, %v1552
        %v1554 = vrot.slane %v1553, 1
        %v1555 = vadd.f32 %v1553, %v1554
        %v1556 = vrot.slane %v1470, 4
        %v1557 = vadd.f32 %v1470, %v1556
        %v1558 = vrot.slane %v1557, 2
        %v1559 = vadd.f32 %v1557, %v1558
        %v1560 = vrot.slane %v1559, 1
        %v1561 = vadd.f32 %v1559, %v1560
        %v1562 = vrot.slane %v1471, 4
        %v1563 = vadd.f32 %v1471, %v1562
        %v1564 = vrot.slane %v1563, 2
        %v1565 = vadd.f32 %v1563, %v1564
        %v1566 = vrot.slane %v1565, 1
        %v1567 = vadd.f32 %v1565, %v1566
        %v1584 = vcombine.low %v1477, %v1483
        %v1585 = vcombine.low %v1489, %v1495
        %v1586 = vcombine.low %v1501, %v1507
        %v1587 = vcombine.low %v1513, %v1519
        %v1589 = vunpack.c.l.s4 1966171168
        %v1590 = vunpack.c.0.s8 %v1589
        %v1591 = vlaneseq
        %v1592 = vshrl.u32 %v1591, 7
        %v1593 = vsub.s32 %v1590, %v1592
        %v1594 = vrot.slane %v1584, %v1593
        %v1596 = vunpack.c.l.s4 1966171168
        %v1597 = vunpack.c.0.s8 %v1596
        %v1598 = vlaneseq
        %v1599 = vshrl.u32 %v1598, 7
        %v1600 = vsub.s32 %v1597, %v1599
        %v1601 = vrot.slane %v1585, %v1600
        %v1603 = vunpack.c.l.s4 1966171168
        %v1604 = vunpack.c.0.s8 %v1603
        %v1605 = vlaneseq
        %v1606 = vshrl.u32 %v1605, 7
        %v1607 = vsub.s32 %v1604, %v1606
        %v1608 = vrot.slane %v1586, %v1607
        %v1610 = vunpack.c.l.s4 1966171168
        %v1611 = vunpack.c.0.s8 %v1610
        %v1612 = vlaneseq
        %v1613 = vshrl.u32 %v1612, 7
        %v1614 = vsub.s32 %v1611, %v1613
        %v1615 = vrot.slane %v1587, %v1614
        %v1616 = vcombine.low %v1594, %v1601
        %v1617 = vcombine.low %v1608, %v1615
        %v1619 = vunpack.c.l.s4 1966171168
        %v1620 = vunpack.c.0.s8 %v1619
        %v1621 = vlaneseq
        %v1622 = vshrl.u32 %v1621, 7
        %v1623 = vsub.s32 %v1620, %v1622
        %v1624 = vrot.slane %v1616, %v1623
        %v1626 = vunpack.c.l.s4 1966171168
        %v1627 = vunpack.c.0.s8 %v1626
        %v1628 = vlaneseq
        %v1629 = vshrl.u32 %v1628, 7
        %v1630 = vsub.s32 %v1627, %v1629
        %v1631 = vrot.slane %v1617, %v1630
        %v1632 = vcombine.low %v1624, %v1631
        %v1633 = vcombine.low %v1525, %v1531
        %v1634 = vcombine.low %v1537, %v1543
        %v1635 = vcombine.low %v1549, %v1555
        %v1636 = vcombine.low %v1561, %v1567
        %v1638 = vunpack.c.l.s4 1966171168
        %v1639 = vunpack.c.0.s8 %v1638
        %v1640 = vlaneseq
        %v1641 = vshrl.u32 %v1640, 7
        %v1642 = vsub.s32 %v1639, %v1641
        %v1643 = vrot.slane %v1633, %v1642
        %v1645 = vunpack.c.l.s4 1966171168
        %v1646 = vunpack.c.0.s8 %v1645
        %v1647 = vlaneseq
        %v1648 = vshrl.u32 %v1647, 7
        %v1649 = vsub.s32 %v1646, %v1648
        %v1650 = vrot.slane %v1634, %v1649
        %v1652 = vunpack.c.l.s4 1966171168
        %v1653 = vunpack.c.0.s8 %v1652
        %v1654 = vlaneseq
        %v1655 = vshrl.u32 %v1654, 7
        %v1656 = vsub.s32 %v1653, %v1655
        %v1657 = vrot.slane %v1635, %v1656
        %v1659 = vunpack.c.l.s4 1966171168
        %v1660 = vunpack.c.0.s8 %v1659
        %v1661 = vlaneseq
        %v1662 = vshrl.u32 %v1661, 7
        %v1663 = vsub.s32 %v1660, %v1662
        %v1664 = vrot.slane %v1636, %v1663
        %v1665 = vcombine.low %v1643, %v1650
        %v1666 = vcombine.low %v1657, %v1664
        %v1668 = vunpack.c.l.s4 1966171168
        %v1669 = vunpack.c.0.s8 %v1668
        %v1670 = vlaneseq
        %v1671 = vshrl.u32 %v1670, 7
        %v1672 = vsub.s32 %v1669, %v1671
        %v1673 = vrot.slane %v1665, %v1672
        %v1675 = vunpack.c.l.s4 1966171168
        %v1676 = vunpack.c.0.s8 %v1675
        %v1677 = vlaneseq
        %v1678 = vshrl.u32 %v1677, 7
        %v1679 = vsub.s32 %v1676, %v1678
        %v1680 = vrot.slane %v1666, %v1679
        %v1681 = vcombine.low %v1673, %v1680
        %v1684 = vsel %vm1006, %v1632, 0.0
        %v1685 = vsel %vm1007, %v1681, 0.0
        %v1686 = vrot.slane %v1456, 4
        %v1687 = vmax.f32 %v1456, %v1686
        %v1688 = vrot.slane %v1687, 2
        %v1689 = vmax.f32 %v1687, %v1688
        %v1690 = vrot.slane %v1689, 1
        %v1691 = vmax.f32 %v1689, %v1690
        %v1692 = vrot.slane %v1457, 4
        %v1693 = vmax.f32 %v1457, %v1692
        %v1694 = vrot.slane %v1693, 2
        %v1695 = vmax.f32 %v1693, %v1694
        %v1696 = vrot.slane %v1695, 1
        %v1697 = vmax.f32 %v1695, %v1696
        %v1698 = vrot.slane %v1458, 4
        %v1699 = vmax.f32 %v1458, %v1698
        %v1700 = vrot.slane %v1699, 2
        %v1701 = vmax.f32 %v1699, %v1700
        %v1702 = vrot.slane %v1701, 1
        %v1703 = vmax.f32 %v1701, %v1702
        %v1704 = vrot.slane %v1459, 4
        %v1705 = vmax.f32 %v1459, %v1704
        %v1706 = vrot.slane %v1705, 2
        %v1707 = vmax.f32 %v1705, %v1706
        %v1708 = vrot.slane %v1707, 1
        %v1709 = vmax.f32 %v1707, %v1708
        %v1710 = vrot.slane %v1460, 4
        %v1711 = vmax.f32 %v1460, %v1710
        %v1712 = vrot.slane %v1711, 2
        %v1713 = vmax.f32 %v1711, %v1712
        %v1714 = vrot.slane %v1713, 1
        %v1715 = vmax.f32 %v1713, %v1714
        %v1716 = vrot.slane %v1461, 4
        %v1717 = vmax.f32 %v1461, %v1716
        %v1718 = vrot.slane %v1717, 2
        %v1719 = vmax.f32 %v1717, %v1718
        %v1720 = vrot.slane %v1719, 1
        %v1721 = vmax.f32 %v1719, %v1720
        %v1722 = vrot.slane %v1462, 4
        %v1723 = vmax.f32 %v1462, %v1722
        %v1724 = vrot.slane %v1723, 2
        %v1725 = vmax.f32 %v1723, %v1724
        %v1726 = vrot.slane %v1725, 1
        %v1727 = vmax.f32 %v1725, %v1726
        %v1728 = vrot.slane %v1463, 4
        %v1729 = vmax.f32 %v1463, %v1728
        %v1730 = vrot.slane %v1729, 2
        %v1731 = vmax.f32 %v1729, %v1730
        %v1732 = vrot.slane %v1731, 1
        %v1733 = vmax.f32 %v1731, %v1732
        %v1734 = vrot.slane %v1464, 4
        %v1735 = vmax.f32 %v1464, %v1734
        %v1736 = vrot.slane %v1735, 2
        %v1737 = vmax.f32 %v1735, %v1736
        %v1738 = vrot.slane %v1737, 1
        %v1739 = vmax.f32 %v1737, %v1738
        %v1740 = vrot.slane %v1465, 4
        %v1741 = vmax.f32 %v1465, %v1740
        %v1742 = vrot.slane %v1741, 2
        %v1743 = vmax.f32 %v1741, %v1742
        %v1744 = vrot.slane %v1743, 1
        %v1745 = vmax.f32 %v1743, %v1744
        %v1746 = vrot.slane %v1466, 4
        %v1747 = vmax.f32 %v1466, %v1746
        %v1748 = vrot.slane %v1747, 2
        %v1749 = vmax.f32 %v1747, %v1748
        %v1750 = vrot.slane %v1749, 1
        %v1751 = vmax.f32 %v1749, %v1750
        %v1752 = vrot.slane %v1467, 4
        %v1753 = vmax.f32 %v1467, %v1752
        %v1754 = vrot.slane %v1753, 2
        %v1755 = vmax.f32 %v1753, %v1754
        %v1756 = vrot.slane %v1755, 1
        %v1757 = vmax.f32 %v1755, %v1756
        %v1758 = vrot.slane %v1468, 4
        %v1759 = vmax.f32 %v1468, %v1758
        %v1760 = vrot.slane %v1759, 2
        %v1761 = vmax.f32 %v1759, %v1760
        %v1762 = vrot.slane %v1761, 1
        %v1763 = vmax.f32 %v1761, %v1762
        %v1764 = vrot.slane %v1469, 4
        %v1765 = vmax.f32 %v1469, %v1764
        %v1766 = vrot.slane %v1765, 2
        %v1767 = vmax.f32 %v1765, %v1766
        %v1768 = vrot.slane %v1767, 1
        %v1769 = vmax.f32 %v1767, %v1768
        %v1770 = vrot.slane %v1470, 4
        %v1771 = vmax.f32 %v1470, %v1770
        %v1772 = vrot.slane %v1771, 2
        %v1773 = vmax.f32 %v1771, %v1772
        %v1774 = vrot.slane %v1773, 1
        %v1775 = vmax.f32 %v1773, %v1774
        %v1776 = vrot.slane %v1471, 4
        %v1777 = vmax.f32 %v1471, %v1776
        %v1778 = vrot.slane %v1777, 2
        %v1779 = vmax.f32 %v1777, %v1778
        %v1780 = vrot.slane %v1779, 1
        %v1781 = vmax.f32 %v1779, %v1780
        %v1798 = vcombine.low %v1691, %v1697
        %v1799 = vcombine.low %v1703, %v1709
        %v1800 = vcombine.low %v1715, %v1721
        %v1801 = vcombine.low %v1727, %v1733
        %v1803 = vunpack.c.l.s4 1966171168
        %v1804 = vunpack.c.0.s8 %v1803
        %v1805 = vlaneseq
        %v1806 = vshrl.u32 %v1805, 7
        %v1807 = vsub.s32 %v1804, %v1806
        %v1808 = vrot.slane %v1798, %v1807
        %v1810 = vunpack.c.l.s4 1966171168
        %v1811 = vunpack.c.0.s8 %v1810
        %v1812 = vlaneseq
        %v1813 = vshrl.u32 %v1812, 7
        %v1814 = vsub.s32 %v1811, %v1813
        %v1815 = vrot.slane %v1799, %v1814
        %v1817 = vunpack.c.l.s4 1966171168
        %v1818 = vunpack.c.0.s8 %v1817
        %v1819 = vlaneseq
        %v1820 = vshrl.u32 %v1819, 7
        %v1821 = vsub.s32 %v1818, %v1820
        %v1822 = vrot.slane %v1800, %v1821
        %v1824 = vunpack.c.l.s4 1966171168
        %v1825 = vunpack.c.0.s8 %v1824
        %v1826 = vlaneseq
        %v1827 = vshrl.u32 %v1826, 7
        %v1828 = vsub.s32 %v1825, %v1827
        %v1829 = vrot.slane %v1801, %v1828
        %v1830 = vcombine.low %v1808, %v1815
        %v1831 = vcombine.low %v1822, %v1829
        %v1833 = vunpack.c.l.s4 1966171168
        %v1834 = vunpack.c.0.s8 %v1833
        %v1835 = vlaneseq
        %v1836 = vshrl.u32 %v1835, 7
        %v1837 = vsub.s32 %v1834, %v1836
        %v1838 = vrot.slane %v1830, %v1837
        %v1840 = vunpack.c.l.s4 1966171168
        %v1841 = vunpack.c.0.s8 %v1840
        %v1842 = vlaneseq
        %v1843 = vshrl.u32 %v1842, 7
        %v1844 = vsub.s32 %v1841, %v1843
        %v1845 = vrot.slane %v1831, %v1844
        %v1846 = vcombine.low %v1838, %v1845
        %v1847 = vcombine.low %v1739, %v1745
        %v1848 = vcombine.low %v1751, %v1757
        %v1849 = vcombine.low %v1763, %v1769
        %v1850 = vcombine.low %v1775, %v1781
        %v1852 = vunpack.c.l.s4 1966171168
        %v1853 = vunpack.c.0.s8 %v1852
        %v1854 = vlaneseq
        %v1855 = vshrl.u32 %v1854, 7
        %v1856 = vsub.s32 %v1853, %v1855
        %v1857 = vrot.slane %v1847, %v1856
        %v1859 = vunpack.c.l.s4 1966171168
        %v1860 = vunpack.c.0.s8 %v1859
        %v1861 = vlaneseq
        %v1862 = vshrl.u32 %v1861, 7
        %v1863 = vsub.s32 %v1860, %v1862
        %v1864 = vrot.slane %v1848, %v1863
        %v1866 = vunpack.c.l.s4 1966171168
        %v1867 = vunpack.c.0.s8 %v1866
        %v1868 = vlaneseq
        %v1869 = vshrl.u32 %v1868, 7
        %v1870 = vsub.s32 %v1867, %v1869
        %v1871 = vrot.slane %v1849, %v1870
        %v1873 = vunpack.c.l.s4 1966171168
        %v1874 = vunpack.c.0.s8 %v1873
        %v1875 = vlaneseq
        %v1876 = vshrl.u32 %v1875, 7
        %v1877 = vsub.s32 %v1874, %v1876
        %v1878 = vrot.slane %v1850, %v1877
        %v1879 = vcombine.low %v1857, %v1864
        %v1880 = vcombine.low %v1871, %v1878
        %v1882 = vunpack.c.l.s4 1966171168
        %v1883 = vunpack.c.0.s8 %v1882
        %v1884 = vlaneseq
        %v1885 = vshrl.u32 %v1884, 7
        %v1886 = vsub.s32 %v1883, %v1885
        %v1887 = vrot.slane %v1879, %v1886
        %v1889 = vunpack.c.l.s4 1966171168
        %v1890 = vunpack.c.0.s8 %v1889
        %v1891 = vlaneseq
        %v1892 = vshrl.u32 %v1891, 7
        %v1893 = vsub.s32 %v1890, %v1892
        %v1894 = vrot.slane %v1880, %v1893
        %v1895 = vcombine.low %v1887, %v1894
        %v1898 = vsel %vm1006, %v1846, 0.0
        %v1899 = vsel %vm1007, %v1895, 0.0
        %vm1900 = vcmp.ge.s32.totalorder %v341, 1
        %vm1901 = vcmp.ge.s32.totalorder %v342, 1
        %vm1902 = vcmp.ge.s32.totalorder %v343, 1
        %vm1903 = vcmp.ge.s32.totalorder %v344, 1
        %vm1904 = vmand %vm1900, %vm1902
        %vm1905 = vmand %vm1901, %vm1903
        %vm1906 = vcmp.lt.s32.totalorder %v343, 15
        %vm1907 = vcmp.lt.s32.totalorder %v344, 15
        %vm1908 = vmand %vm1900, %vm1906
        %vm1909 = vmand %vm1901, %vm1907
        %vm1910 = vcmp.lt.s32.totalorder %v341, 15
        %vm1911 = vcmp.lt.s32.totalorder %v342, 15
        %vm1912 = vmand %vm1910, %vm1902
        %vm1913 = vmand %vm1911, %vm1903
        %vm1914 = vmand %vm1910, %vm1906
        %vm1915 = vmand %vm1911, %vm1907
        %v1918 = vlaneseq
        %v1919 = vshrl.u32 %v1918, 7
        %v1920 = vsub.s32 0, %v1919
        %v1921 = vrot.slane %v1684, %v1920
        %v1922 = vlaneseq
        %v1923 = vshrl.u32 %v1922, 7
        %v1924 = vsub.s32 1, %v1923
        %v1925 = vrot.slane %v1684, %v1924
        %v1926 = vlaneseq
        %v1927 = vshrl.u32 %v1926, 7
        %v1928 = vsub.s32 2, %v1927
        %v1929 = vrot.slane %v1684, %v1928
        %v1930 = vlaneseq
        %v1931 = vshrl.u32 %v1930, 7
        %v1932 = vsub.s32 3, %v1931
        %v1933 = vrot.slane %v1684, %v1932
        %v1934 = vlaneseq
        %v1935 = vshrl.u32 %v1934, 7
        %v1936 = vsub.s32 4, %v1935
        %v1937 = vrot.slane %v1684, %v1936
        %v1938 = vlaneseq
        %v1939 = vshrl.u32 %v1938, 7
        %v1940 = vsub.s32 5, %v1939
        %v1941 = vrot.slane %v1684, %v1940
        %v1942 = vlaneseq
        %v1943 = vshrl.u32 %v1942, 7
        %v1944 = vsub.s32 6, %v1943
        %v1945 = vrot.slane %v1684, %v1944
        %v1946 = vlaneseq
        %v1947 = vshrl.u32 %v1946, 7
        %v1948 = vsub.s32 7, %v1947
        %v1949 = vrot.slane %v1684, %v1948
        %v1950 = vlaneseq
        %v1951 = vshrl.u32 %v1950, 7
        %v1952 = vsub.s32 0, %v1951
        %v1953 = vrot.slane %v1685, %v1952
        %v1954 = vlaneseq
        %v1955 = vshrl.u32 %v1954, 7
        %v1956 = vsub.s32 1, %v1955
        %v1957 = vrot.slane %v1685, %v1956
        %v1958 = vlaneseq
        %v1959 = vshrl.u32 %v1958, 7
        %v1960 = vsub.s32 2, %v1959
        %v1961 = vrot.slane %v1685, %v1960
        %v1962 = vlaneseq
        %v1963 = vshrl.u32 %v1962, 7
        %v1964 = vsub.s32 3, %v1963
        %v1965 = vrot.slane %v1685, %v1964
        %v1966 = vlaneseq
        %v1967 = vshrl.u32 %v1966, 7
        %v1968 = vsub.s32 4, %v1967
        %v1969 = vrot.slane %v1685, %v1968
        %v1970 = vlaneseq
        %v1971 = vshrl.u32 %v1970, 7
        %v1972 = vsub.s32 5, %v1971
        %v1973 = vrot.slane %v1685, %v1972
        %v1974 = vlaneseq
        %v1975 = vshrl.u32 %v1974, 7
        %v1976 = vsub.s32 6, %v1975
        %v1977 = vrot.slane %v1685, %v1976
        %v1978 = vlaneseq
        %v1979 = vshrl.u32 %v1978, 7
        %v1980 = vsub.s32 7, %v1979
        %v1981 = vrot.slane %v1685, %v1980
        %1998 = vrot.lane.b32.xlu0 %v1921, 1
        %v1999 = vpop.permute.xlu0 %1998
        %2000 = vrot.lane.b32.xlu0 %v1925, 1
        %v2001 = vpop.permute.xlu0 %2000
        %2002 = vrot.lane.b32.xlu0 %v1929, 1
        %v2003 = vpop.permute.xlu0 %2002
        %2004 = vrot.lane.b32.xlu0 %v1933, 1
        %v2005 = vpop.permute.xlu0 %2004
        %2006 = vrot.lane.b32.xlu0 %v1937, 1
        %v2007 = vpop.permute.xlu0 %2006
        %2008 = vrot.lane.b32.xlu0 %v1941, 1
        %v2009 = vpop.permute.xlu0 %2008
        %2010 = vrot.lane.b32.xlu0 %v1945, 1
        %v2011 = vpop.permute.xlu0 %2010
        %2012 = vrot.lane.b32.xlu0 %v1949, 1
        %v2013 = vpop.permute.xlu0 %2012
        %2014 = vrot.lane.b32.xlu0 %v1953, 1
        %v2015 = vpop.permute.xlu0 %2014
        %2016 = vrot.lane.b32.xlu0 %v1957, 1
        %v2017 = vpop.permute.xlu0 %2016
        %2018 = vrot.lane.b32.xlu0 %v1961, 1
        %v2019 = vpop.permute.xlu0 %2018
        %2020 = vrot.lane.b32.xlu0 %v1965, 1
        %v2021 = vpop.permute.xlu0 %2020
        %2022 = vrot.lane.b32.xlu0 %v1969, 1
        %v2023 = vpop.permute.xlu0 %2022
        %2024 = vrot.lane.b32.xlu0 %v1973, 1
        %v2025 = vpop.permute.xlu0 %2024
        %2026 = vrot.lane.b32.xlu0 %v1977, 1
        %v2027 = vpop.permute.xlu0 %2026
        %2028 = vrot.lane.b32.xlu0 %v1981, 1
        %v2029 = vpop.permute.xlu0 %2028
        %v2030 = vlaneseq
        %v2031 = vand.u32 %v2030, 127
        %vm2032 = vcmp.lt.s32.totalorder %v2031, 1
        %v2033 = vsel %vm2032, %v2027, %v2029
        %v2034 = vsel %vm2032, %v2025, %v2027
        %v2035 = vsel %vm2032, %v2023, %v2025
        %v2036 = vsel %vm2032, %v2021, %v2023
        %v2037 = vsel %vm2032, %v2019, %v2021
        %v2038 = vsel %vm2032, %v2017, %v2019
        %v2039 = vsel %vm2032, %v2015, %v2017
        %v2040 = vsel %vm2032, %v2013, %v2015
        %v2041 = vsel %vm2032, %v2011, %v2013
        %v2042 = vsel %vm2032, %v2009, %v2011
        %v2043 = vsel %vm2032, %v2007, %v2009
        %v2044 = vsel %vm2032, %v2005, %v2007
        %v2045 = vsel %vm2032, %v2003, %v2005
        %v2046 = vsel %vm2032, %v2001, %v2003
        %v2047 = vsel %vm2032, %v1999, %v2001
        %v2048 = vsel %vm2032, %v2029, %v1999
        %v2065 = vcombine.low %v2033, %v2048
        %v2066 = vcombine.low %v2047, %v2046
        %v2067 = vcombine.low %v2045, %v2044
        %v2068 = vcombine.low %v2043, %v2042
        %v2070 = vunpack.c.l.s4 1966171168
        %v2071 = vunpack.c.0.s8 %v2070
        %v2072 = vlaneseq
        %v2073 = vshrl.u32 %v2072, 7
        %v2074 = vsub.s32 %v2071, %v2073
        %v2075 = vrot.slane %v2065, %v2074
        %v2077 = vunpack.c.l.s4 1966171168
        %v2078 = vunpack.c.0.s8 %v2077
        %v2079 = vlaneseq
        %v2080 = vshrl.u32 %v2079, 7
        %v2081 = vsub.s32 %v2078, %v2080
        %v2082 = vrot.slane %v2066, %v2081
        %v2084 = vunpack.c.l.s4 1966171168
        %v2085 = vunpack.c.0.s8 %v2084
        %v2086 = vlaneseq
        %v2087 = vshrl.u32 %v2086, 7
        %v2088 = vsub.s32 %v2085, %v2087
        %v2089 = vrot.slane %v2067, %v2088
        %v2091 = vunpack.c.l.s4 1966171168
        %v2092 = vunpack.c.0.s8 %v2091
        %v2093 = vlaneseq
        %v2094 = vshrl.u32 %v2093, 7
        %v2095 = vsub.s32 %v2092, %v2094
        %v2096 = vrot.slane %v2068, %v2095
        %v2097 = vcombine.low %v2075, %v2082
        %v2098 = vcombine.low %v2089, %v2096
        %v2100 = vunpack.c.l.s4 1966171168
        %v2101 = vunpack.c.0.s8 %v2100
        %v2102 = vlaneseq
        %v2103 = vshrl.u32 %v2102, 7
        %v2104 = vsub.s32 %v2101, %v2103
        %v2105 = vrot.slane %v2097, %v2104
        %v2107 = vunpack.c.l.s4 1966171168
        %v2108 = vunpack.c.0.s8 %v2107
        %v2109 = vlaneseq
        %v2110 = vshrl.u32 %v2109, 7
        %v2111 = vsub.s32 %v2108, %v2110
        %v2112 = vrot.slane %v2098, %v2111
        %v2113 = vcombine.low %v2105, %v2112
        %v2114 = vcombine.low %v2041, %v2040
        %v2115 = vcombine.low %v2039, %v2038
        %v2116 = vcombine.low %v2037, %v2036
        %v2117 = vcombine.low %v2035, %v2034
        %v2119 = vunpack.c.l.s4 1966171168
        %v2120 = vunpack.c.0.s8 %v2119
        %v2121 = vlaneseq
        %v2122 = vshrl.u32 %v2121, 7
        %v2123 = vsub.s32 %v2120, %v2122
        %v2124 = vrot.slane %v2114, %v2123
        %v2126 = vunpack.c.l.s4 1966171168
        %v2127 = vunpack.c.0.s8 %v2126
        %v2128 = vlaneseq
        %v2129 = vshrl.u32 %v2128, 7
        %v2130 = vsub.s32 %v2127, %v2129
        %v2131 = vrot.slane %v2115, %v2130
        %v2133 = vunpack.c.l.s4 1966171168
        %v2134 = vunpack.c.0.s8 %v2133
        %v2135 = vlaneseq
        %v2136 = vshrl.u32 %v2135, 7
        %v2137 = vsub.s32 %v2134, %v2136
        %v2138 = vrot.slane %v2116, %v2137
        %v2140 = vunpack.c.l.s4 1966171168
        %v2141 = vunpack.c.0.s8 %v2140
        %v2142 = vlaneseq
        %v2143 = vshrl.u32 %v2142, 7
        %v2144 = vsub.s32 %v2141, %v2143
        %v2145 = vrot.slane %v2117, %v2144
        %v2146 = vcombine.low %v2124, %v2131
        %v2147 = vcombine.low %v2138, %v2145
        %v2149 = vunpack.c.l.s4 1966171168
        %v2150 = vunpack.c.0.s8 %v2149
        %v2151 = vlaneseq
        %v2152 = vshrl.u32 %v2151, 7
        %v2153 = vsub.s32 %v2150, %v2152
        %v2154 = vrot.slane %v2146, %v2153
        %v2156 = vunpack.c.l.s4 1966171168
        %v2157 = vunpack.c.0.s8 %v2156
        %v2158 = vlaneseq
        %v2159 = vshrl.u32 %v2158, 7
        %v2160 = vsub.s32 %v2157, %v2159
        %v2161 = vrot.slane %v2147, %v2160
        %v2162 = vcombine.low %v2154, %v2161
        %v2165 = vsel %vm1904, %v2113, 0.0
        %v2166 = vsel %vm1905, %v2162, 0.0
        %s2167 = sld [smem:[#allocation3]]
        %v2168 = vstv %s2167
        %v2169 = vmul.f32 %v2168, %v2165
        %v2170 = vmul.f32 %v2168, %v2166
        %v2171 = vadd.f32 %v2169, 0.0
        %v2172 = vadd.f32 %v2170, 0.0
        %v2173 = vcombine.low %v1981, %v1921
        %v2174 = vcombine.low %v1925, %v1929
        %v2175 = vcombine.low %v1933, %v1937
        %v2176 = vcombine.low %v1941, %v1945
        %v2178 = vunpack.c.l.s4 1966171168
        %v2179 = vunpack.c.0.s8 %v2178
        %v2180 = vlaneseq
        %v2181 = vshrl.u32 %v2180, 7
        %v2182 = vsub.s32 %v2179, %v2181
        %v2183 = vrot.slane %v2173, %v2182
        %v2185 = vunpack.c.l.s4 1966171168
        %v2186 = vunpack.c.0.s8 %v2185
        %v2187 = vlaneseq
        %v2188 = vshrl.u32 %v2187, 7
        %v2189 = vsub.s32 %v2186, %v2188
        %v2190 = vrot.slane %v2174, %v2189
        %v2192 = vunpack.c.l.s4 1966171168
        %v2193 = vunpack.c.0.s8 %v2192
        %v2194 = vlaneseq
        %v2195 = vshrl.u32 %v2194, 7
        %v2196 = vsub.s32 %v2193, %v2195
        %v2197 = vrot.slane %v2175, %v2196
        %v2199 = vunpack.c.l.s4 1966171168
        %v2200 = vunpack.c.0.s8 %v2199
        %v2201 = vlaneseq
        %v2202 = vshrl.u32 %v2201, 7
        %v2203 = vsub.s32 %v2200, %v2202
        %v2204 = vrot.slane %v2176, %v2203
        %v2205 = vcombine.low %v2183, %v2190
        %v2206 = vcombine.low %v2197, %v2204
        %v2208 = vunpack.c.l.s4 1966171168
        %v2209 = vunpack.c.0.s8 %v2208
        %v2210 = vlaneseq
        %v2211 = vshrl.u32 %v2210, 7
        %v2212 = vsub.s32 %v2209, %v2211
        %v2213 = vrot.slane %v2205, %v2212
        %v2215 = vunpack.c.l.s4 1966171168
        %v2216 = vunpack.c.0.s8 %v2215
        %v2217 = vlaneseq
        %v2218 = vshrl.u32 %v2217, 7
        %v2219 = vsub.s32 %v2216, %v2218
        %v2220 = vrot.slane %v2206, %v2219
        %v2221 = vcombine.low %v2213, %v2220
        %v2222 = vcombine.low %v1949, %v1953
        %v2223 = vcombine.low %v1957, %v1961
        %v2224 = vcombine.low %v1965, %v1969
        %v2225 = vcombine.low %v1973, %v1977
        %v2227 = vunpack.c.l.s4 1966171168
        %v2228 = vunpack.c.0.s8 %v2227
        %v2229 = vlaneseq
        %v2230 = vshrl.u32 %v2229, 7
        %v2231 = vsub.s32 %v2228, %v2230
        %v2232 = vrot.slane %v2222, %v2231
        %v2234 = vunpack.c.l.s4 1966171168
        %v2235 = vunpack.c.0.s8 %v2234
        %v2236 = vlaneseq
        %v2237 = vshrl.u32 %v2236, 7
        %v2238 = vsub.s32 %v2235, %v2237
        %v2239 = vrot.slane %v2223, %v2238
        %v2241 = vunpack.c.l.s4 1966171168
        %v2242 = vunpack.c.0.s8 %v2241
        %v2243 = vlaneseq
        %v2244 = vshrl.u32 %v2243, 7
        %v2245 = vsub.s32 %v2242, %v2244
        %v2246 = vrot.slane %v2224, %v2245
        %v2248 = vunpack.c.l.s4 1966171168
        %v2249 = vunpack.c.0.s8 %v2248
        %v2250 = vlaneseq
        %v2251 = vshrl.u32 %v2250, 7
        %v2252 = vsub.s32 %v2249, %v2251
        %v2253 = vrot.slane %v2225, %v2252
        %v2254 = vcombine.low %v2232, %v2239
        %v2255 = vcombine.low %v2246, %v2253
        %v2257 = vunpack.c.l.s4 1966171168
        %v2258 = vunpack.c.0.s8 %v2257
        %v2259 = vlaneseq
        %v2260 = vshrl.u32 %v2259, 7
        %v2261 = vsub.s32 %v2258, %v2260
        %v2262 = vrot.slane %v2254, %v2261
        %v2264 = vunpack.c.l.s4 1966171168
        %v2265 = vunpack.c.0.s8 %v2264
        %v2266 = vlaneseq
        %v2267 = vshrl.u32 %v2266, 7
        %v2268 = vsub.s32 %v2265, %v2267
        %v2269 = vrot.slane %v2255, %v2268
        %v2270 = vcombine.low %v2262, %v2269
        %v2273 = vsel %vm1900, %v2221, 0.0
        %v2274 = vsel %vm1901, %v2270, 0.0
        %s2275 = sld [smem:[#allocation3 + $0x1]]
        %v2276 = vstv %s2275
        %v2277 = vmul.f32 %v2276, %v2273
        %v2278 = vmul.f32 %v2276, %v2274
        %v2279 = vadd.f32 %v2171, %v2277
        %v2280 = vadd.f32 %v2172, %v2278
        %2281 = vrot.lane.b32.xlu0 %v1921, 127
        %v2282 = vpop.permute.xlu0 %2281
        %2283 = vrot.lane.b32.xlu0 %v1925, 127
        %v2284 = vpop.permute.xlu0 %2283
        %2285 = vrot.lane.b32.xlu0 %v1929, 127
        %v2286 = vpop.permute.xlu0 %2285
        %2287 = vrot.lane.b32.xlu0 %v1933, 127
        %v2288 = vpop.permute.xlu0 %2287
        %2289 = vrot.lane.b32.xlu0 %v1937, 127
        %v2290 = vpop.permute.xlu0 %2289
        %2291 = vrot.lane.b32.xlu0 %v1941, 127
        %v2292 = vpop.permute.xlu0 %2291
        %2293 = vrot.lane.b32.xlu0 %v1945, 127
        %v2294 = vpop.permute.xlu0 %2293
        %2295 = vrot.lane.b32.xlu0 %v1949, 127
        %v2296 = vpop.permute.xlu0 %2295
        %2297 = vrot.lane.b32.xlu0 %v1953, 127
        %v2298 = vpop.permute.xlu0 %2297
        %2299 = vrot.lane.b32.xlu0 %v1957, 127
        %v2300 = vpop.permute.xlu0 %2299
        %2301 = vrot.lane.b32.xlu0 %v1961, 127
        %v2302 = vpop.permute.xlu0 %2301
        %2303 = vrot.lane.b32.xlu0 %v1965, 127
        %v2304 = vpop.permute.xlu0 %2303
        %2305 = vrot.lane.b32.xlu0 %v1969, 127
        %v2306 = vpop.permute.xlu0 %2305
        %2307 = vrot.lane.b32.xlu0 %v1973, 127
        %v2308 = vpop.permute.xlu0 %2307
        %2309 = vrot.lane.b32.xlu0 %v1977, 127
        %v2310 = vpop.permute.xlu0 %2309
        %2311 = vrot.lane.b32.xlu0 %v1981, 127
        %v2312 = vpop.permute.xlu0 %2311
        %vm2313 = vcmp.lt.s32.totalorder %v2031, 127
        %v2314 = vsel %vm2313, %v2310, %v2312
        %v2315 = vsel %vm2313, %v2308, %v2310
        %v2316 = vsel %vm2313, %v2306, %v2308
        %v2317 = vsel %vm2313, %v2304, %v2306
        %v2318 = vsel %vm2313, %v2302, %v2304
        %v2319 = vsel %vm2313, %v2300, %v2302
        %v2320 = vsel %vm2313, %v2298, %v2300
        %v2321 = vsel %vm2313, %v2296, %v2298
        %v2322 = vsel %vm2313, %v2294, %v2296
        %v2323 = vsel %vm2313, %v2292, %v2294
        %v2324 = vsel %vm2313, %v2290, %v2292
        %v2325 = vsel %vm2313, %v2288, %v2290
        %v2326 = vsel %vm2313, %v2286, %v2288
        %v2327 = vsel %vm2313, %v2284, %v2286
        %v2328 = vsel %vm2313, %v2282, %v2284
        %v2329 = vsel %vm2313, %v2312, %v2282
        %v2346 = vcombine.low %v2329, %v2328
        %v2347 = vcombine.low %v2327, %v2326
        %v2348 = vcombine.low %v2325, %v2324
        %v2349 = vcombine.low %v2323, %v2322
        %v2351 = vunpack.c.l.s4 1966171168
        %v2352 = vunpack.c.0.s8 %v2351
        %v2353 = vlaneseq
        %v2354 = vshrl.u32 %v2353, 7
        %v2355 = vsub.s32 %v2352, %v2354
        %v2356 = vrot.slane %v2346, %v2355
        %v2358 = vunpack.c.l.s4 1966171168
        %v2359 = vunpack.c.0.s8 %v2358
        %v2360 = vlaneseq
        %v2361 = vshrl.u32 %v2360, 7
        %v2362 = vsub.s32 %v2359, %v2361
        %v2363 = vrot.slane %v2347, %v2362
        %v2365 = vunpack.c.l.s4 1966171168
        %v2366 = vunpack.c.0.s8 %v2365
        %v2367 = vlaneseq
        %v2368 = vshrl.u32 %v2367, 7
        %v2369 = vsub.s32 %v2366, %v2368
        %v2370 = vrot.slane %v2348, %v2369
        %v2372 = vunpack.c.l.s4 1966171168
        %v2373 = vunpack.c.0.s8 %v2372
        %v2374 = vlaneseq
        %v2375 = vshrl.u32 %v2374, 7
        %v2376 = vsub.s32 %v2373, %v2375
        %v2377 = vrot.slane %v2349, %v2376
        %v2378 = vcombine.low %v2356, %v2363
        %v2379 = vcombine.low %v2370, %v2377
        %v2381 = vunpack.c.l.s4 1966171168
        %v2382 = vunpack.c.0.s8 %v2381
        %v2383 = vlaneseq
        %v2384 = vshrl.u32 %v2383, 7
        %v2385 = vsub.s32 %v2382, %v2384
        %v2386 = vrot.slane %v2378, %v2385
        %v2388 = vunpack.c.l.s4 1966171168
        %v2389 = vunpack.c.0.s8 %v2388
        %v2390 = vlaneseq
        %v2391 = vshrl.u32 %v2390, 7
        %v2392 = vsub.s32 %v2389, %v2391
        %v2393 = vrot.slane %v2379, %v2392
        %v2394 = vcombine.low %v2386, %v2393
        %v2395 = vcombine.low %v2321, %v2320
        %v2396 = vcombine.low %v2319, %v2318
        %v2397 = vcombine.low %v2317, %v2316
        %v2398 = vcombine.low %v2315, %v2314
        %v2400 = vunpack.c.l.s4 1966171168
        %v2401 = vunpack.c.0.s8 %v2400
        %v2402 = vlaneseq
        %v2403 = vshrl.u32 %v2402, 7
        %v2404 = vsub.s32 %v2401, %v2403
        %v2405 = vrot.slane %v2395, %v2404
        %v2407 = vunpack.c.l.s4 1966171168
        %v2408 = vunpack.c.0.s8 %v2407
        %v2409 = vlaneseq
        %v2410 = vshrl.u32 %v2409, 7
        %v2411 = vsub.s32 %v2408, %v2410
        %v2412 = vrot.slane %v2396, %v2411
        %v2414 = vunpack.c.l.s4 1966171168
        %v2415 = vunpack.c.0.s8 %v2414
        %v2416 = vlaneseq
        %v2417 = vshrl.u32 %v2416, 7
        %v2418 = vsub.s32 %v2415, %v2417
        %v2419 = vrot.slane %v2397, %v2418
        %v2421 = vunpack.c.l.s4 1966171168
        %v2422 = vunpack.c.0.s8 %v2421
        %v2423 = vlaneseq
        %v2424 = vshrl.u32 %v2423, 7
        %v2425 = vsub.s32 %v2422, %v2424
        %v2426 = vrot.slane %v2398, %v2425
        %v2427 = vcombine.low %v2405, %v2412
        %v2428 = vcombine.low %v2419, %v2426
        %v2430 = vunpack.c.l.s4 1966171168
        %v2431 = vunpack.c.0.s8 %v2430
        %v2432 = vlaneseq
        %v2433 = vshrl.u32 %v2432, 7
        %v2434 = vsub.s32 %v2431, %v2433
        %v2435 = vrot.slane %v2427, %v2434
        %v2437 = vunpack.c.l.s4 1966171168
        %v2438 = vunpack.c.0.s8 %v2437
        %v2439 = vlaneseq
        %v2440 = vshrl.u32 %v2439, 7
        %v2441 = vsub.s32 %v2438, %v2440
        %v2442 = vrot.slane %v2428, %v2441
        %v2443 = vcombine.low %v2435, %v2442
        %v2446 = vsel %vm1908, %v2394, 0.0
        %v2447 = vsel %vm1909, %v2443, 0.0
        %s2448 = sld [smem:[#allocation3 + $0x2]]
        %v2449 = vstv %s2448
        %v2450 = vmul.f32 %v2449, %v2446
        %v2451 = vmul.f32 %v2449, %v2447
        %v2452 = vadd.f32 %v2279, %v2450
        %v2453 = vadd.f32 %v2280, %v2451
        %v2454 = vcombine.low %v2048, %v2047
        %v2455 = vcombine.low %v2046, %v2045
        %v2456 = vcombine.low %v2044, %v2043
        %v2457 = vcombine.low %v2042, %v2041
        %v2459 = vunpack.c.l.s4 1966171168
        %v2460 = vunpack.c.0.s8 %v2459
        %v2461 = vlaneseq
        %v2462 = vshrl.u32 %v2461, 7
        %v2463 = vsub.s32 %v2460, %v2462
        %v2464 = vrot.slane %v2454, %v2463
        %v2466 = vunpack.c.l.s4 1966171168
        %v2467 = vunpack.c.0.s8 %v2466
        %v2468 = vlaneseq
        %v2469 = vshrl.u32 %v2468, 7
        %v2470 = vsub.s32 %v2467, %v2469
        %v2471 = vrot.slane %v2455, %v2470
        %v2473 = vunpack.c.l.s4 1966171168
        %v2474 = vunpack.c.0.s8 %v2473
        %v2475 = vlaneseq
        %v2476 = vshrl.u32 %v2475, 7
        %v2477 = vsub.s32 %v2474, %v2476
        %v2478 = vrot.slane %v2456, %v2477
        %v2480 = vunpack.c.l.s4 1966171168
        %v2481 = vunpack.c.0.s8 %v2480
        %v2482 = vlaneseq
        %v2483 = vshrl.u32 %v2482, 7
        %v2484 = vsub.s32 %v2481, %v2483
        %v2485 = vrot.slane %v2457, %v2484
        %v2486 = vcombine.low %v2464, %v2471
        %v2487 = vcombine.low %v2478, %v2485
        %v2489 = vunpack.c.l.s4 1966171168
        %v2490 = vunpack.c.0.s8 %v2489
        %v2491 = vlaneseq
        %v2492 = vshrl.u32 %v2491, 7
        %v2493 = vsub.s32 %v2490, %v2492
        %v2494 = vrot.slane %v2486, %v2493
        %v2496 = vunpack.c.l.s4 1966171168
        %v2497 = vunpack.c.0.s8 %v2496
        %v2498 = vlaneseq
        %v2499 = vshrl.u32 %v2498, 7
        %v2500 = vsub.s32 %v2497, %v2499
        %v2501 = vrot.slane %v2487, %v2500
        %v2502 = vcombine.low %v2494, %v2501
        %v2503 = vcombine.low %v2040, %v2039
        %v2504 = vcombine.low %v2038, %v2037
        %v2505 = vcombine.low %v2036, %v2035
        %v2506 = vcombine.low %v2034, %v2033
        %v2508 = vunpack.c.l.s4 1966171168
        %v2509 = vunpack.c.0.s8 %v2508
        %v2510 = vlaneseq
        %v2511 = vshrl.u32 %v2510, 7
        %v2512 = vsub.s32 %v2509, %v2511
        %v2513 = vrot.slane %v2503, %v2512
        %v2515 = vunpack.c.l.s4 1966171168
        %v2516 = vunpack.c.0.s8 %v2515
        %v2517 = vlaneseq
        %v2518 = vshrl.u32 %v2517, 7
        %v2519 = vsub.s32 %v2516, %v2518
        %v2520 = vrot.slane %v2504, %v2519
        %v2522 = vunpack.c.l.s4 1966171168
        %v2523 = vunpack.c.0.s8 %v2522
        %v2524 = vlaneseq
        %v2525 = vshrl.u32 %v2524, 7
        %v2526 = vsub.s32 %v2523, %v2525
        %v2527 = vrot.slane %v2505, %v2526
        %v2529 = vunpack.c.l.s4 1966171168
        %v2530 = vunpack.c.0.s8 %v2529
        %v2531 = vlaneseq
        %v2532 = vshrl.u32 %v2531, 7
        %v2533 = vsub.s32 %v2530, %v2532
        %v2534 = vrot.slane %v2506, %v2533
        %v2535 = vcombine.low %v2513, %v2520
        %v2536 = vcombine.low %v2527, %v2534
        %v2538 = vunpack.c.l.s4 1966171168
        %v2539 = vunpack.c.0.s8 %v2538
        %v2540 = vlaneseq
        %v2541 = vshrl.u32 %v2540, 7
        %v2542 = vsub.s32 %v2539, %v2541
        %v2543 = vrot.slane %v2535, %v2542
        %v2545 = vunpack.c.l.s4 1966171168
        %v2546 = vunpack.c.0.s8 %v2545
        %v2547 = vlaneseq
        %v2548 = vshrl.u32 %v2547, 7
        %v2549 = vsub.s32 %v2546, %v2548
        %v2550 = vrot.slane %v2536, %v2549
        %v2551 = vcombine.low %v2543, %v2550
        %v2554 = vsel %vm1902, %v2502, 0.0
        %v2555 = vsel %vm1903, %v2551, 0.0
        %s2556 = sld [smem:[#allocation3 + $0x3]]
        %v2557 = vstv %s2556
        %v2558 = vmul.f32 %v2557, %v2554
        %v2559 = vmul.f32 %v2557, %v2555
        %v2560 = vadd.f32 %v2452, %v2558
        %v2561 = vadd.f32 %v2453, %v2559
        %s2562 = sld [smem:[#allocation3 + $0x4]]
        %v2563 = vstv %s2562
        %v2564 = vmul.f32 %v2563, %v1684
        %v2565 = vmul.f32 %v2563, %v1685
        %v2566 = vadd.f32 %v2560, %v2564
        %v2567 = vadd.f32 %v2561, %v2565
        %v2568 = vcombine.low %v2328, %v2327
        %v2569 = vcombine.low %v2326, %v2325
        %v2570 = vcombine.low %v2324, %v2323
        %v2571 = vcombine.low %v2322, %v2321
        %v2573 = vunpack.c.l.s4 1966171168
        %v2574 = vunpack.c.0.s8 %v2573
        %v2575 = vlaneseq
        %v2576 = vshrl.u32 %v2575, 7
        %v2577 = vsub.s32 %v2574, %v2576
        %v2578 = vrot.slane %v2568, %v2577
        %v2580 = vunpack.c.l.s4 1966171168
        %v2581 = vunpack.c.0.s8 %v2580
        %v2582 = vlaneseq
        %v2583 = vshrl.u32 %v2582, 7
        %v2584 = vsub.s32 %v2581, %v2583
        %v2585 = vrot.slane %v2569, %v2584
        %v2587 = vunpack.c.l.s4 1966171168
        %v2588 = vunpack.c.0.s8 %v2587
        %v2589 = vlaneseq
        %v2590 = vshrl.u32 %v2589, 7
        %v2591 = vsub.s32 %v2588, %v2590
        %v2592 = vrot.slane %v2570, %v2591
        %v2594 = vunpack.c.l.s4 1966171168
        %v2595 = vunpack.c.0.s8 %v2594
        %v2596 = vlaneseq
        %v2597 = vshrl.u32 %v2596, 7
        %v2598 = vsub.s32 %v2595, %v2597
        %v2599 = vrot.slane %v2571, %v2598
        %v2600 = vcombine.low %v2578, %v2585
        %v2601 = vcombine.low %v2592, %v2599
        %v2603 = vunpack.c.l.s4 1966171168
        %v2604 = vunpack.c.0.s8 %v2603
        %v2605 = vlaneseq
        %v2606 = vshrl.u32 %v2605, 7
        %v2607 = vsub.s32 %v2604, %v2606
        %v2608 = vrot.slane %v2600, %v2607
        %v2610 = vunpack.c.l.s4 1966171168
        %v2611 = vunpack.c.0.s8 %v2610
        %v2612 = vlaneseq
        %v2613 = vshrl.u32 %v2612, 7
        %v2614 = vsub.s32 %v2611, %v2613
        %v2615 = vrot.slane %v2601, %v2614
        %v2616 = vcombine.low %v2608, %v2615
        %v2617 = vcombine.low %v2320, %v2319
        %v2618 = vcombine.low %v2318, %v2317
        %v2619 = vcombine.low %v2316, %v2315
        %v2620 = vcombine.low %v2314, %v2329
        %v2622 = vunpack.c.l.s4 1966171168
        %v2623 = vunpack.c.0.s8 %v2622
        %v2624 = vlaneseq
        %v2625 = vshrl.u32 %v2624, 7
        %v2626 = vsub.s32 %v2623, %v2625
        %v2627 = vrot.slane %v2617, %v2626
        %v2629 = vunpack.c.l.s4 1966171168
        %v2630 = vunpack.c.0.s8 %v2629
        %v2631 = vlaneseq
        %v2632 = vshrl.u32 %v2631, 7
        %v2633 = vsub.s32 %v2630, %v2632
        %v2634 = vrot.slane %v2618, %v2633
        %v2636 = vunpack.c.l.s4 1966171168
        %v2637 = vunpack.c.0.s8 %v2636
        %v2638 = vlaneseq
        %v2639 = vshrl.u32 %v2638, 7
        %v2640 = vsub.s32 %v2637, %v2639
        %v2641 = vrot.slane %v2619, %v2640
        %v2643 = vunpack.c.l.s4 1966171168
        %v2644 = vunpack.c.0.s8 %v2643
        %v2645 = vlaneseq
        %v2646 = vshrl.u32 %v2645, 7
        %v2647 = vsub.s32 %v2644, %v2646
        %v2648 = vrot.slane %v2620, %v2647
        %v2649 = vcombine.low %v2627, %v2634
        %v2650 = vcombine.low %v2641, %v2648
        %v2652 = vunpack.c.l.s4 1966171168
        %v2653 = vunpack.c.0.s8 %v2652
        %v2654 = vlaneseq
        %v2655 = vshrl.u32 %v2654, 7
        %v2656 = vsub.s32 %v2653, %v2655
        %v2657 = vrot.slane %v2649, %v2656
        %v2659 = vunpack.c.l.s4 1966171168
        %v2660 = vunpack.c.0.s8 %v2659
        %v2661 = vlaneseq
        %v2662 = vshrl.u32 %v2661, 7
        %v2663 = vsub.s32 %v2660, %v2662
        %v2664 = vrot.slane %v2650, %v2663
        %v2665 = vcombine.low %v2657, %v2664
        %v2668 = vsel %vm1906, %v2616, 0.0
        %v2669 = vsel %vm1907, %v2665, 0.0
        %s2670 = sld [smem:[#allocation3 + $0x5]]
        %v2671 = vstv %s2670
        %v2672 = vmul.f32 %v2671, %v2668
        %v2673 = vmul.f32 %v2671, %v2669
        %v2674 = vadd.f32 %v2566, %v2672
        %v2675 = vadd.f32 %v2567, %v2673
        %v2676 = vcombine.low %v2082, %v2089
        %v2677 = vcombine.low %v2096, %v2124
        %v2679 = vunpack.c.l.s4 1966171168
        %v2680 = vunpack.c.0.s8 %v2679
        %v2681 = vlaneseq
        %v2682 = vshrl.u32 %v2681, 7
        %v2683 = vsub.s32 %v2680, %v2682
        %v2684 = vrot.slane %v2676, %v2683
        %v2686 = vunpack.c.l.s4 1966171168
        %v2687 = vunpack.c.0.s8 %v2686
        %v2688 = vlaneseq
        %v2689 = vshrl.u32 %v2688, 7
        %v2690 = vsub.s32 %v2687, %v2689
        %v2691 = vrot.slane %v2677, %v2690
        %v2692 = vcombine.low %v2684, %v2691
        %v2693 = vcombine.low %v2131, %v2138
        %v2694 = vcombine.low %v2145, %v2075
        %v2696 = vunpack.c.l.s4 1966171168
        %v2697 = vunpack.c.0.s8 %v2696
        %v2698 = vlaneseq
        %v2699 = vshrl.u32 %v2698, 7
        %v2700 = vsub.s32 %v2697, %v2699
        %v2701 = vrot.slane %v2693, %v2700
        %v2703 = vunpack.c.l.s4 1966171168
        %v2704 = vunpack.c.0.s8 %v2703
        %v2705 = vlaneseq
        %v2706 = vshrl.u32 %v2705, 7
        %v2707 = vsub.s32 %v2704, %v2706
        %v2708 = vrot.slane %v2694, %v2707
        %v2709 = vcombine.low %v2701, %v2708
        %v2712 = vsel %vm1912, %v2692, 0.0
        %v2713 = vsel %vm1913, %v2709, 0.0
        %s2714 = sld [smem:[#allocation3 + $0x6]]
        %v2715 = vstv %s2714
        %v2716 = vmul.f32 %v2715, %v2712
        %v2717 = vmul.f32 %v2715, %v2713
        %v2718 = vadd.f32 %v2674, %v2716
        %v2719 = vadd.f32 %v2675, %v2717
        %v2720 = vcombine.low %v2190, %v2197
        %v2721 = vcombine.low %v2204, %v2232
        %v2723 = vunpack.c.l.s4 1966171168
        %v2724 = vunpack.c.0.s8 %v2723
        %v2725 = vlaneseq
        %v2726 = vshrl.u32 %v2725, 7
        %v2727 = vsub.s32 %v2724, %v2726
        %v2728 = vrot.slane %v2720, %v2727
        %v2730 = vunpack.c.l.s4 1966171168
        %v2731 = vunpack.c.0.s8 %v2730
        %v2732 = vlaneseq
        %v2733 = vshrl.u32 %v2732, 7
        %v2734 = vsub.s32 %v2731, %v2733
        %v2735 = vrot.slane %v2721, %v2734
        %v2736 = vcombine.low %v2728, %v2735
        %v2737 = vcombine.low %v2239, %v2246
        %v2738 = vcombine.low %v2253, %v2183
        %v2740 = vunpack.c.l.s4 1966171168
        %v2741 = vunpack.c.0.s8 %v2740
        %v2742 = vlaneseq
        %v2743 = vshrl.u32 %v2742, 7
        %v2744 = vsub.s32 %v2741, %v2743
        %v2745 = vrot.slane %v2737, %v2744
        %v2747 = vunpack.c.l.s4 1966171168
        %v2748 = vunpack.c.0.s8 %v2747
        %v2749 = vlaneseq
        %v2750 = vshrl.u32 %v2749, 7
        %v2751 = vsub.s32 %v2748, %v2750
        %v2752 = vrot.slane %v2738, %v2751
        %v2753 = vcombine.low %v2745, %v2752
        %v2756 = vsel %vm1910, %v2736, 0.0
        %v2757 = vsel %vm1911, %v2753, 0.0
        %s2758 = sld [smem:[#allocation3 + $0x7]]
        %v2759 = vstv %s2758
        %v2760 = vmul.f32 %v2759, %v2756
        %v2761 = vmul.f32 %v2759, %v2757
        %v2762 = vadd.f32 %v2718, %v2760
        %v2763 = vadd.f32 %v2719, %v2761
        %v2764 = vcombine.low %v2363, %v2370
        %v2765 = vcombine.low %v2377, %v2405
        %v2767 = vunpack.c.l.s4 1966171168
        %v2768 = vunpack.c.0.s8 %v2767
        %v2769 = vlaneseq
        %v2770 = vshrl.u32 %v2769, 7
        %v2771 = vsub.s32 %v2768, %v2770
        %v2772 = vrot.slane %v2764, %v2771
        %v2774 = vunpack.c.l.s4 1966171168
        %v2775 = vunpack.c.0.s8 %v2774
        %v2776 = vlaneseq
        %v2777 = vshrl.u32 %v2776, 7
        %v2778 = vsub.s32 %v2775, %v2777
        %v2779 = vrot.slane %v2765, %v2778
        %v2780 = vcombine.low %v2772, %v2779
        %v2781 = vcombine.low %v2412, %v2419
        %v2782 = vcombine.low %v2426, %v2356
        %v2784 = vunpack.c.l.s4 1966171168
        %v2785 = vunpack.c.0.s8 %v2784
        %v2786 = vlaneseq
        %v2787 = vshrl.u32 %v2786, 7
        %v2788 = vsub.s32 %v2785, %v2787
        %v2789 = vrot.slane %v2781, %v2788
        %v2791 = vunpack.c.l.s4 1966171168
        %v2792 = vunpack.c.0.s8 %v2791
        %v2793 = vlaneseq
        %v2794 = vshrl.u32 %v2793, 7
        %v2795 = vsub.s32 %v2792, %v2794
        %v2796 = vrot.slane %v2782, %v2795
        %v2797 = vcombine.low %v2789, %v2796
        %v2800 = vsel %vm1914, %v2780, 0.0
        %v2801 = vsel %vm1915, %v2797, 0.0
        %s2802 = sld [smem:[#allocation3 + $0x8]]
        %v2803 = vstv %s2802
        %v2804 = vmul.f32 %v2803, %v2800
        %v2805 = vmul.f32 %v2803, %v2801
        %v2806 = vadd.f32 %v2762, %v2804
        %v2807 = vadd.f32 %v2763, %v2805
        %v2810 = vlaneseq
        %v2811 = vshrl.u32 %v2810, 7
        %v2812 = vsub.s32 0, %v2811
        %v2813 = vrot.slane %v1898, %v2812
        %v2814 = vlaneseq
        %v2815 = vshrl.u32 %v2814, 7
        %v2816 = vsub.s32 1, %v2815
        %v2817 = vrot.slane %v1898, %v2816
        %v2818 = vlaneseq
        %v2819 = vshrl.u32 %v2818, 7
        %v2820 = vsub.s32 2, %v2819
        %v2821 = vrot.slane %v1898, %v2820
        %v2822 = vlaneseq
        %v2823 = vshrl.u32 %v2822, 7
        %v2824 = vsub.s32 3, %v2823
        %v2825 = vrot.slane %v1898, %v2824
        %v2826 = vlaneseq
        %v2827 = vshrl.u32 %v2826, 7
        %v2828 = vsub.s32 4, %v2827
        %v2829 = vrot.slane %v1898, %v2828
        %v2830 = vlaneseq
        %v2831 = vshrl.u32 %v2830, 7
        %v2832 = vsub.s32 5, %v2831
        %v2833 = vrot.slane %v1898, %v2832
        %v2834 = vlaneseq
        %v2835 = vshrl.u32 %v2834, 7
        %v2836 = vsub.s32 6, %v2835
        %v2837 = vrot.slane %v1898, %v2836
        %v2838 = vlaneseq
        %v2839 = vshrl.u32 %v2838, 7
        %v2840 = vsub.s32 7, %v2839
        %v2841 = vrot.slane %v1898, %v2840
        %v2842 = vlaneseq
        %v2843 = vshrl.u32 %v2842, 7
        %v2844 = vsub.s32 0, %v2843
        %v2845 = vrot.slane %v1899, %v2844
        %v2846 = vlaneseq
        %v2847 = vshrl.u32 %v2846, 7
        %v2848 = vsub.s32 1, %v2847
        %v2849 = vrot.slane %v1899, %v2848
        %v2850 = vlaneseq
        %v2851 = vshrl.u32 %v2850, 7
        %v2852 = vsub.s32 2, %v2851
        %v2853 = vrot.slane %v1899, %v2852
        %v2854 = vlaneseq
        %v2855 = vshrl.u32 %v2854, 7
        %v2856 = vsub.s32 3, %v2855
        %v2857 = vrot.slane %v1899, %v2856
        %v2858 = vlaneseq
        %v2859 = vshrl.u32 %v2858, 7
        %v2860 = vsub.s32 4, %v2859
        %v2861 = vrot.slane %v1899, %v2860
        %v2862 = vlaneseq
        %v2863 = vshrl.u32 %v2862, 7
        %v2864 = vsub.s32 5, %v2863
        %v2865 = vrot.slane %v1899, %v2864
        %v2866 = vlaneseq
        %v2867 = vshrl.u32 %v2866, 7
        %v2868 = vsub.s32 6, %v2867
        %v2869 = vrot.slane %v1899, %v2868
        %v2870 = vlaneseq
        %v2871 = vshrl.u32 %v2870, 7
        %v2872 = vsub.s32 7, %v2871
        %v2873 = vrot.slane %v1899, %v2872
        %2890 = vrot.lane.b32.xlu0 %v2813, 1
        %v2891 = vpop.permute.xlu0 %2890
        %2892 = vrot.lane.b32.xlu0 %v2817, 1
        %v2893 = vpop.permute.xlu0 %2892
        %2894 = vrot.lane.b32.xlu0 %v2821, 1
        %v2895 = vpop.permute.xlu0 %2894
        %2896 = vrot.lane.b32.xlu0 %v2825, 1
        %v2897 = vpop.permute.xlu0 %2896
        %2898 = vrot.lane.b32.xlu0 %v2829, 1
        %v2899 = vpop.permute.xlu0 %2898
        %2900 = vrot.lane.b32.xlu0 %v2833, 1
        %v2901 = vpop.permute.xlu0 %2900
        %2902 = vrot.lane.b32.xlu0 %v2837, 1
        %v2903 = vpop.permute.xlu0 %2902
        %2904 = vrot.lane.b32.xlu0 %v2841, 1
        %v2905 = vpop.permute.xlu0 %2904
        %2906 = vrot.lane.b32.xlu0 %v2845, 1
        %v2907 = vpop.permute.xlu0 %2906
        %2908 = vrot.lane.b32.xlu0 %v2849, 1
        %v2909 = vpop.permute.xlu0 %2908
        %2910 = vrot.lane.b32.xlu0 %v2853, 1
        %v2911 = vpop.permute.xlu0 %2910
        %2912 = vrot.lane.b32.xlu0 %v2857, 1
        %v2913 = vpop.permute.xlu0 %2912
        %2914 = vrot.lane.b32.xlu0 %v2861, 1
        %v2915 = vpop.permute.xlu0 %2914
        %2916 = vrot.lane.b32.xlu0 %v2865, 1
        %v2917 = vpop.permute.xlu0 %2916
        %2918 = vrot.lane.b32.xlu0 %v2869, 1
        %v2919 = vpop.permute.xlu0 %2918
        %2920 = vrot.lane.b32.xlu0 %v2873, 1
        %v2921 = vpop.permute.xlu0 %2920
        %v2922 = vsel %vm2032, %v2919, %v2921
        %v2923 = vsel %vm2032, %v2917, %v2919
        %v2924 = vsel %vm2032, %v2915, %v2917
        %v2925 = vsel %vm2032, %v2913, %v2915
        %v2926 = vsel %vm2032, %v2911, %v2913
        %v2927 = vsel %vm2032, %v2909, %v2911
        %v2928 = vsel %vm2032, %v2907, %v2909
        %v2929 = vsel %vm2032, %v2905, %v2907
        %v2930 = vsel %vm2032, %v2903, %v2905
        %v2931 = vsel %vm2032, %v2901, %v2903
        %v2932 = vsel %vm2032, %v2899, %v2901
        %v2933 = vsel %vm2032, %v2897, %v2899
        %v2934 = vsel %vm2032, %v2895, %v2897
        %v2935 = vsel %vm2032, %v2893, %v2895
        %v2936 = vsel %vm2032, %v2891, %v2893
        %v2937 = vsel %vm2032, %v2921, %v2891
        %v2954 = vcombine.low %v2922, %v2937
        %v2955 = vcombine.low %v2936, %v2935
        %v2956 = vcombine.low %v2934, %v2933
        %v2957 = vcombine.low %v2932, %v2931
        %v2959 = vunpack.c.l.s4 1966171168
        %v2960 = vunpack.c.0.s8 %v2959
        %v2961 = vlaneseq
        %v2962 = vshrl.u32 %v2961, 7
        %v2963 = vsub.s32 %v2960, %v2962
        %v2964 = vrot.slane %v2954, %v2963
        %v2966 = vunpack.c.l.s4 1966171168
        %v2967 = vunpack.c.0.s8 %v2966
        %v2968 = vlaneseq
        %v2969 = vshrl.u32 %v2968, 7
        %v2970 = vsub.s32 %v2967, %v2969
        %v2971 = vrot.slane %v2955, %v2970
        %v2973 = vunpack.c.l.s4 1966171168
        %v2974 = vunpack.c.0.s8 %v2973
        %v2975 = vlaneseq
        %v2976 = vshrl.u32 %v2975, 7
        %v2977 = vsub.s32 %v2974, %v2976
        %v2978 = vrot.slane %v2956, %v2977
        %v2980 = vunpack.c.l.s4 1966171168
        %v2981 = vunpack.c.0.s8 %v2980
        %v2982 = vlaneseq
        %v2983 = vshrl.u32 %v2982, 7
        %v2984 = vsub.s32 %v2981, %v2983
        %v2985 = vrot.slane %v2957, %v2984
        %v2986 = vcombine.low %v2964, %v2971
        %v2987 = vcombine.low %v2978, %v2985
        %v2989 = vunpack.c.l.s4 1966171168
        %v2990 = vunpack.c.0.s8 %v2989
        %v2991 = vlaneseq
        %v2992 = vshrl.u32 %v2991, 7
        %v2993 = vsub.s32 %v2990, %v2992
        %v2994 = vrot.slane %v2986, %v2993
        %v2996 = vunpack.c.l.s4 1966171168
        %v2997 = vunpack.c.0.s8 %v2996
        %v2998 = vlaneseq
        %v2999 = vshrl.u32 %v2998, 7
        %v3000 = vsub.s32 %v2997, %v2999
        %v3001 = vrot.slane %v2987, %v3000
        %v3002 = vcombine.low %v2994, %v3001
        %v3003 = vcombine.low %v2930, %v2929
        %v3004 = vcombine.low %v2928, %v2927
        %v3005 = vcombine.low %v2926, %v2925
        %v3006 = vcombine.low %v2924, %v2923
        %v3008 = vunpack.c.l.s4 1966171168
        %v3009 = vunpack.c.0.s8 %v3008
        %v3010 = vlaneseq
        %v3011 = vshrl.u32 %v3010, 7
        %v3012 = vsub.s32 %v3009, %v3011
        %v3013 = vrot.slane %v3003, %v3012
        %v3015 = vunpack.c.l.s4 1966171168
        %v3016 = vunpack.c.0.s8 %v3015
        %v3017 = vlaneseq
        %v3018 = vshrl.u32 %v3017, 7
        %v3019 = vsub.s32 %v3016, %v3018
        %v3020 = vrot.slane %v3004, %v3019
        %v3022 = vunpack.c.l.s4 1966171168
        %v3023 = vunpack.c.0.s8 %v3022
        %v3024 = vlaneseq
        %v3025 = vshrl.u32 %v3024, 7
        %v3026 = vsub.s32 %v3023, %v3025
        %v3027 = vrot.slane %v3005, %v3026
        %v3029 = vunpack.c.l.s4 1966171168
        %v3030 = vunpack.c.0.s8 %v3029
        %v3031 = vlaneseq
        %v3032 = vshrl.u32 %v3031, 7
        %v3033 = vsub.s32 %v3030, %v3032
        %v3034 = vrot.slane %v3006, %v3033
        %v3035 = vcombine.low %v3013, %v3020
        %v3036 = vcombine.low %v3027, %v3034
        %v3038 = vunpack.c.l.s4 1966171168
        %v3039 = vunpack.c.0.s8 %v3038
        %v3040 = vlaneseq
        %v3041 = vshrl.u32 %v3040, 7
        %v3042 = vsub.s32 %v3039, %v3041
        %v3043 = vrot.slane %v3035, %v3042
        %v3045 = vunpack.c.l.s4 1966171168
        %v3046 = vunpack.c.0.s8 %v3045
        %v3047 = vlaneseq
        %v3048 = vshrl.u32 %v3047, 7
        %v3049 = vsub.s32 %v3046, %v3048
        %v3050 = vrot.slane %v3036, %v3049
        %v3051 = vcombine.low %v3043, %v3050
        %v3054 = vsel %vm1904, %v3002, 0.0
        %v3055 = vsel %vm1905, %v3051, 0.0
        %s3056 = sld [smem:[#allocation3 + $0x9]]
        %v3057 = vstv %s3056
        %v3058 = vmul.f32 %v3057, %v3054
        %v3059 = vmul.f32 %v3057, %v3055
        %v3060 = vadd.f32 %v2806, %v3058
        %v3061 = vadd.f32 %v2807, %v3059
        %v3062 = vcombine.low %v2873, %v2813
        %v3063 = vcombine.low %v2817, %v2821
        %v3064 = vcombine.low %v2825, %v2829
        %v3065 = vcombine.low %v2833, %v2837
        %v3067 = vunpack.c.l.s4 1966171168
        %v3068 = vunpack.c.0.s8 %v3067
        %v3069 = vlaneseq
        %v3070 = vshrl.u32 %v3069, 7
        %v3071 = vsub.s32 %v3068, %v3070
        %v3072 = vrot.slane %v3062, %v3071
        %v3074 = vunpack.c.l.s4 1966171168
        %v3075 = vunpack.c.0.s8 %v3074
        %v3076 = vlaneseq
        %v3077 = vshrl.u32 %v3076, 7
        %v3078 = vsub.s32 %v3075, %v3077
        %v3079 = vrot.slane %v3063, %v3078
        %v3081 = vunpack.c.l.s4 1966171168
        %v3082 = vunpack.c.0.s8 %v3081
        %v3083 = vlaneseq
        %v3084 = vshrl.u32 %v3083, 7
        %v3085 = vsub.s32 %v3082, %v3084
        %v3086 = vrot.slane %v3064, %v3085
        %v3088 = vunpack.c.l.s4 1966171168
        %v3089 = vunpack.c.0.s8 %v3088
        %v3090 = vlaneseq
        %v3091 = vshrl.u32 %v3090, 7
        %v3092 = vsub.s32 %v3089, %v3091
        %v3093 = vrot.slane %v3065, %v3092
        %v3094 = vcombine.low %v3072, %v3079
        %v3095 = vcombine.low %v3086, %v3093
        %v3097 = vunpack.c.l.s4 1966171168
        %v3098 = vunpack.c.0.s8 %v3097
        %v3099 = vlaneseq
        %v3100 = vshrl.u32 %v3099, 7
        %v3101 = vsub.s32 %v3098, %v3100
        %v3102 = vrot.slane %v3094, %v3101
        %v3104 = vunpack.c.l.s4 1966171168
        %v3105 = vunpack.c.0.s8 %v3104
        %v3106 = vlaneseq
        %v3107 = vshrl.u32 %v3106, 7
        %v3108 = vsub.s32 %v3105, %v3107
        %v3109 = vrot.slane %v3095, %v3108
        %v3110 = vcombine.low %v3102, %v3109
        %v3111 = vcombine.low %v2841, %v2845
        %v3112 = vcombine.low %v2849, %v2853
        %v3113 = vcombine.low %v2857, %v2861
        %v3114 = vcombine.low %v2865, %v2869
        %v3116 = vunpack.c.l.s4 1966171168
        %v3117 = vunpack.c.0.s8 %v3116
        %v3118 = vlaneseq
        %v3119 = vshrl.u32 %v3118, 7
        %v3120 = vsub.s32 %v3117, %v3119
        %v3121 = vrot.slane %v3111, %v3120
        %v3123 = vunpack.c.l.s4 1966171168
        %v3124 = vunpack.c.0.s8 %v3123
        %v3125 = vlaneseq
        %v3126 = vshrl.u32 %v3125, 7
        %v3127 = vsub.s32 %v3124, %v3126
        %v3128 = vrot.slane %v3112, %v3127
        %v3130 = vunpack.c.l.s4 1966171168
        %v3131 = vunpack.c.0.s8 %v3130
        %v3132 = vlaneseq
        %v3133 = vshrl.u32 %v3132, 7
        %v3134 = vsub.s32 %v3131, %v3133
        %v3135 = vrot.slane %v3113, %v3134
        %v3137 = vunpack.c.l.s4 1966171168
        %v3138 = vunpack.c.0.s8 %v3137
        %v3139 = vlaneseq
        %v3140 = vshrl.u32 %v3139, 7
        %v3141 = vsub.s32 %v3138, %v3140
        %v3142 = vrot.slane %v3114, %v3141
        %v3143 = vcombine.low %v3121, %v3128
        %v3144 = vcombine.low %v3135, %v3142
        %v3146 = vunpack.c.l.s4 1966171168
        %v3147 = vunpack.c.0.s8 %v3146
        %v3148 = vlaneseq
        %v3149 = vshrl.u32 %v3148, 7
        %v3150 = vsub.s32 %v3147, %v3149
        %v3151 = vrot.slane %v3143, %v3150
        %v3153 = vunpack.c.l.s4 1966171168
        %v3154 = vunpack.c.0.s8 %v3153
        %v3155 = vlaneseq
        %v3156 = vshrl.u32 %v3155, 7
        %v3157 = vsub.s32 %v3154, %v3156
        %v3158 = vrot.slane %v3144, %v3157
        %v3159 = vcombine.low %v3151, %v3158
        %v3162 = vsel %vm1900, %v3110, 0.0
        %v3163 = vsel %vm1901, %v3159, 0.0
        %s3164 = sld [smem:[#allocation3 + $0xa]]
        %v3165 = vstv %s3164
        %v3166 = vmul.f32 %v3165, %v3162
        %v3167 = vmul.f32 %v3165, %v3163
        %v3168 = vadd.f32 %v3060, %v3166
        %v3169 = vadd.f32 %v3061, %v3167
        %3170 = vrot.lane.b32.xlu0 %v2813, 127
        %v3171 = vpop.permute.xlu0 %3170
        %3172 = vrot.lane.b32.xlu0 %v2817, 127
        %v3173 = vpop.permute.xlu0 %3172
        %3174 = vrot.lane.b32.xlu0 %v2821, 127
        %v3175 = vpop.permute.xlu0 %3174
        %3176 = vrot.lane.b32.xlu0 %v2825, 127
        %v3177 = vpop.permute.xlu0 %3176
        %3178 = vrot.lane.b32.xlu0 %v2829, 127
        %v3179 = vpop.permute.xlu0 %3178
        %3180 = vrot.lane.b32.xlu0 %v2833, 127
        %v3181 = vpop.permute.xlu0 %3180
        %3182 = vrot.lane.b32.xlu0 %v2837, 127
        %v3183 = vpop.permute.xlu0 %3182
        %3184 = vrot.lane.b32.xlu0 %v2841, 127
        %v3185 = vpop.permute.xlu0 %3184
        %3186 = vrot.lane.b32.xlu0 %v2845, 127
        %v3187 = vpop.permute.xlu0 %3186
        %3188 = vrot.lane.b32.xlu0 %v2849, 127
        %v3189 = vpop.permute.xlu0 %3188
        %3190 = vrot.lane.b32.xlu0 %v2853, 127
        %v3191 = vpop.permute.xlu0 %3190
        %3192 = vrot.lane.b32.xlu0 %v2857, 127
        %v3193 = vpop.permute.xlu0 %3192
        %3194 = vrot.lane.b32.xlu0 %v2861, 127
        %v3195 = vpop.permute.xlu0 %3194
        %3196 = vrot.lane.b32.xlu0 %v2865, 127
        %v3197 = vpop.permute.xlu0 %3196
        %3198 = vrot.lane.b32.xlu0 %v2869, 127
        %v3199 = vpop.permute.xlu0 %3198
        %3200 = vrot.lane.b32.xlu0 %v2873, 127
        %v3201 = vpop.permute.xlu0 %3200
        %v3202 = vsel %vm2313, %v3199, %v3201
        %v3203 = vsel %vm2313, %v3197, %v3199
        %v3204 = vsel %vm2313, %v3195, %v3197
        %v3205 = vsel %vm2313, %v3193, %v3195
        %v3206 = vsel %vm2313, %v3191, %v3193
        %v3207 = vsel %vm2313, %v3189, %v3191
        %v3208 = vsel %vm2313, %v3187, %v3189
        %v3209 = vsel %vm2313, %v3185, %v3187
        %v3210 = vsel %vm2313, %v3183, %v3185
        %v3211 = vsel %vm2313, %v3181, %v3183
        %v3212 = vsel %vm2313, %v3179, %v3181
        %v3213 = vsel %vm2313, %v3177, %v3179
        %v3214 = vsel %vm2313, %v3175, %v3177
        %v3215 = vsel %vm2313, %v3173, %v3175
        %v3216 = vsel %vm2313, %v3171, %v3173
        %v3217 = vsel %vm2313, %v3201, %v3171
        %v3234 = vcombine.low %v3217, %v3216
        %v3235 = vcombine.low %v3215, %v3214
        %v3236 = vcombine.low %v3213, %v3212
        %v3237 = vcombine.low %v3211, %v3210
        %v3239 = vunpack.c.l.s4 1966171168
        %v3240 = vunpack.c.0.s8 %v3239
        %v3241 = vlaneseq
        %v3242 = vshrl.u32 %v3241, 7
        %v3243 = vsub.s32 %v3240, %v3242
        %v3244 = vrot.slane %v3234, %v3243
        %v3246 = vunpack.c.l.s4 1966171168
        %v3247 = vunpack.c.0.s8 %v3246
        %v3248 = vlaneseq
        %v3249 = vshrl.u32 %v3248, 7
        %v3250 = vsub.s32 %v3247, %v3249
        %v3251 = vrot.slane %v3235, %v3250
        %v3253 = vunpack.c.l.s4 1966171168
        %v3254 = vunpack.c.0.s8 %v3253
        %v3255 = vlaneseq
        %v3256 = vshrl.u32 %v3255, 7
        %v3257 = vsub.s32 %v3254, %v3256
        %v3258 = vrot.slane %v3236, %v3257
        %v3260 = vunpack.c.l.s4 1966171168
        %v3261 = vunpack.c.0.s8 %v3260
        %v3262 = vlaneseq
        %v3263 = vshrl.u32 %v3262, 7
        %v3264 = vsub.s32 %v3261, %v3263
        %v3265 = vrot.slane %v3237, %v3264
        %v3266 = vcombine.low %v3244, %v3251
        %v3267 = vcombine.low %v3258, %v3265
        %v3269 = vunpack.c.l.s4 1966171168
        %v3270 = vunpack.c.0.s8 %v3269
        %v3271 = vlaneseq
        %v3272 = vshrl.u32 %v3271, 7
        %v3273 = vsub.s32 %v3270, %v3272
        %v3274 = vrot.slane %v3266, %v3273
        %v3276 = vunpack.c.l.s4 1966171168
        %v3277 = vunpack.c.0.s8 %v3276
        %v3278 = vlaneseq
        %v3279 = vshrl.u32 %v3278, 7
        %v3280 = vsub.s32 %v3277, %v3279
        %v3281 = vrot.slane %v3267, %v3280
        %v3282 = vcombine.low %v3274, %v3281
        %v3283 = vcombine.low %v3209, %v3208
        %v3284 = vcombine.low %v3207, %v3206
        %v3285 = vcombine.low %v3205, %v3204
        %v3286 = vcombine.low %v3203, %v3202
        %v3288 = vunpack.c.l.s4 1966171168
        %v3289 = vunpack.c.0.s8 %v3288
        %v3290 = vlaneseq
        %v3291 = vshrl.u32 %v3290, 7
        %v3292 = vsub.s32 %v3289, %v3291
        %v3293 = vrot.slane %v3283, %v3292
        %v3295 = vunpack.c.l.s4 1966171168
        %v3296 = vunpack.c.0.s8 %v3295
        %v3297 = vlaneseq
        %v3298 = vshrl.u32 %v3297, 7
        %v3299 = vsub.s32 %v3296, %v3298
        %v3300 = vrot.slane %v3284, %v3299
        %v3302 = vunpack.c.l.s4 1966171168
        %v3303 = vunpack.c.0.s8 %v3302
        %v3304 = vlaneseq
        %v3305 = vshrl.u32 %v3304, 7
        %v3306 = vsub.s32 %v3303, %v3305
        %v3307 = vrot.slane %v3285, %v3306
        %v3309 = vunpack.c.l.s4 1966171168
        %v3310 = vunpack.c.0.s8 %v3309
        %v3311 = vlaneseq
        %v3312 = vshrl.u32 %v3311, 7
        %v3313 = vsub.s32 %v3310, %v3312
        %v3314 = vrot.slane %v3286, %v3313
        %v3315 = vcombine.low %v3293, %v3300
        %v3316 = vcombine.low %v3307, %v3314
        %v3318 = vunpack.c.l.s4 1966171168
        %v3319 = vunpack.c.0.s8 %v3318
        %v3320 = vlaneseq
        %v3321 = vshrl.u32 %v3320, 7
        %v3322 = vsub.s32 %v3319, %v3321
        %v3323 = vrot.slane %v3315, %v3322
        %v3325 = vunpack.c.l.s4 1966171168
        %v3326 = vunpack.c.0.s8 %v3325
        %v3327 = vlaneseq
        %v3328 = vshrl.u32 %v3327, 7
        %v3329 = vsub.s32 %v3326, %v3328
        %v3330 = vrot.slane %v3316, %v3329
        %v3331 = vcombine.low %v3323, %v3330
        %v3334 = vsel %vm1908, %v3282, 0.0
        %v3335 = vsel %vm1909, %v3331, 0.0
        %s3336 = sld [smem:[#allocation3 + $0xb]]
        %v3337 = vstv %s3336
        %v3338 = vmul.f32 %v3337, %v3334
        %v3339 = vmul.f32 %v3337, %v3335
        %v3340 = vadd.f32 %v3168, %v3338
        %v3341 = vadd.f32 %v3169, %v3339
        %v3342 = vcombine.low %v2937, %v2936
        %v3343 = vcombine.low %v2935, %v2934
        %v3344 = vcombine.low %v2933, %v2932
        %v3345 = vcombine.low %v2931, %v2930
        %v3347 = vunpack.c.l.s4 1966171168
        %v3348 = vunpack.c.0.s8 %v3347
        %v3349 = vlaneseq
        %v3350 = vshrl.u32 %v3349, 7
        %v3351 = vsub.s32 %v3348, %v3350
        %v3352 = vrot.slane %v3342, %v3351
        %v3354 = vunpack.c.l.s4 1966171168
        %v3355 = vunpack.c.0.s8 %v3354
        %v3356 = vlaneseq
        %v3357 = vshrl.u32 %v3356, 7
        %v3358 = vsub.s32 %v3355, %v3357
        %v3359 = vrot.slane %v3343, %v3358
        %v3361 = vunpack.c.l.s4 1966171168
        %v3362 = vunpack.c.0.s8 %v3361
        %v3363 = vlaneseq
        %v3364 = vshrl.u32 %v3363, 7
        %v3365 = vsub.s32 %v3362, %v3364
        %v3366 = vrot.slane %v3344, %v3365
        %v3368 = vunpack.c.l.s4 1966171168
        %v3369 = vunpack.c.0.s8 %v3368
        %v3370 = vlaneseq
        %v3371 = vshrl.u32 %v3370, 7
        %v3372 = vsub.s32 %v3369, %v3371
        %v3373 = vrot.slane %v3345, %v3372
        %v3374 = vcombine.low %v3352, %v3359
        %v3375 = vcombine.low %v3366, %v3373
        %v3377 = vunpack.c.l.s4 1966171168
        %v3378 = vunpack.c.0.s8 %v3377
        %v3379 = vlaneseq
        %v3380 = vshrl.u32 %v3379, 7
        %v3381 = vsub.s32 %v3378, %v3380
        %v3382 = vrot.slane %v3374, %v3381
        %v3384 = vunpack.c.l.s4 1966171168
        %v3385 = vunpack.c.0.s8 %v3384
        %v3386 = vlaneseq
        %v3387 = vshrl.u32 %v3386, 7
        %v3388 = vsub.s32 %v3385, %v3387
        %v3389 = vrot.slane %v3375, %v3388
        %v3390 = vcombine.low %v3382, %v3389
        %v3391 = vcombine.low %v2929, %v2928
        %v3392 = vcombine.low %v2927, %v2926
        %v3393 = vcombine.low %v2925, %v2924
        %v3394 = vcombine.low %v2923, %v2922
        %v3396 = vunpack.c.l.s4 1966171168
        %v3397 = vunpack.c.0.s8 %v3396
        %v3398 = vlaneseq
        %v3399 = vshrl.u32 %v3398, 7
        %v3400 = vsub.s32 %v3397, %v3399
        %v3401 = vrot.slane %v3391, %v3400
        %v3403 = vunpack.c.l.s4 1966171168
        %v3404 = vunpack.c.0.s8 %v3403
        %v3405 = vlaneseq
        %v3406 = vshrl.u32 %v3405, 7
        %v3407 = vsub.s32 %v3404, %v3406
        %v3408 = vrot.slane %v3392, %v3407
        %v3410 = vunpack.c.l.s4 1966171168
        %v3411 = vunpack.c.0.s8 %v3410
        %v3412 = vlaneseq
        %v3413 = vshrl.u32 %v3412, 7
        %v3414 = vsub.s32 %v3411, %v3413
        %v3415 = vrot.slane %v3393, %v3414
        %v3417 = vunpack.c.l.s4 1966171168
        %v3418 = vunpack.c.0.s8 %v3417
        %v3419 = vlaneseq
        %v3420 = vshrl.u32 %v3419, 7
        %v3421 = vsub.s32 %v3418, %v3420
        %v3422 = vrot.slane %v3394, %v3421
        %v3423 = vcombine.low %v3401, %v3408
        %v3424 = vcombine.low %v3415, %v3422
        %v3426 = vunpack.c.l.s4 1966171168
        %v3427 = vunpack.c.0.s8 %v3426
        %v3428 = vlaneseq
        %v3429 = vshrl.u32 %v3428, 7
        %v3430 = vsub.s32 %v3427, %v3429
        %v3431 = vrot.slane %v3423, %v3430
        %v3433 = vunpack.c.l.s4 1966171168
        %v3434 = vunpack.c.0.s8 %v3433
        %v3435 = vlaneseq
        %v3436 = vshrl.u32 %v3435, 7
        %v3437 = vsub.s32 %v3434, %v3436
        %v3438 = vrot.slane %v3424, %v3437
        %v3439 = vcombine.low %v3431, %v3438
        %v3442 = vsel %vm1902, %v3390, 0.0
        %v3443 = vsel %vm1903, %v3439, 0.0
        %s3444 = sld [smem:[#allocation3 + $0xc]]
        %v3445 = vstv %s3444
        %v3446 = vmul.f32 %v3445, %v3442
        %v3447 = vmul.f32 %v3445, %v3443
        %v3448 = vadd.f32 %v3340, %v3446
        %v3449 = vadd.f32 %v3341, %v3447
        %s3450 = sld [smem:[#allocation3 + $0xd]]
        %v3451 = vstv %s3450
        %v3452 = vmul.f32 %v3451, %v1898
        %v3453 = vmul.f32 %v3451, %v1899
        %v3454 = vadd.f32 %v3448, %v3452
        %v3455 = vadd.f32 %v3449, %v3453
        %v3456 = vcombine.low %v3216, %v3215
        %v3457 = vcombine.low %v3214, %v3213
        %v3458 = vcombine.low %v3212, %v3211
        %v3459 = vcombine.low %v3210, %v3209
        %v3461 = vunpack.c.l.s4 1966171168
        %v3462 = vunpack.c.0.s8 %v3461
        %v3463 = vlaneseq
        %v3464 = vshrl.u32 %v3463, 7
        %v3465 = vsub.s32 %v3462, %v3464
        %v3466 = vrot.slane %v3456, %v3465
        %v3468 = vunpack.c.l.s4 1966171168
        %v3469 = vunpack.c.0.s8 %v3468
        %v3470 = vlaneseq
        %v3471 = vshrl.u32 %v3470, 7
        %v3472 = vsub.s32 %v3469, %v3471
        %v3473 = vrot.slane %v3457, %v3472
        %v3475 = vunpack.c.l.s4 1966171168
        %v3476 = vunpack.c.0.s8 %v3475
        %v3477 = vlaneseq
        %v3478 = vshrl.u32 %v3477, 7
        %v3479 = vsub.s32 %v3476, %v3478
        %v3480 = vrot.slane %v3458, %v3479
        %v3482 = vunpack.c.l.s4 1966171168
        %v3483 = vunpack.c.0.s8 %v3482
        %v3484 = vlaneseq
        %v3485 = vshrl.u32 %v3484, 7
        %v3486 = vsub.s32 %v3483, %v3485
        %v3487 = vrot.slane %v3459, %v3486
        %v3488 = vcombine.low %v3466, %v3473
        %v3489 = vcombine.low %v3480, %v3487
        %v3491 = vunpack.c.l.s4 1966171168
        %v3492 = vunpack.c.0.s8 %v3491
        %v3493 = vlaneseq
        %v3494 = vshrl.u32 %v3493, 7
        %v3495 = vsub.s32 %v3492, %v3494
        %v3496 = vrot.slane %v3488, %v3495
        %v3498 = vunpack.c.l.s4 1966171168
        %v3499 = vunpack.c.0.s8 %v3498
        %v3500 = vlaneseq
        %v3501 = vshrl.u32 %v3500, 7
        %v3502 = vsub.s32 %v3499, %v3501
        %v3503 = vrot.slane %v3489, %v3502
        %v3504 = vcombine.low %v3496, %v3503
        %v3505 = vcombine.low %v3208, %v3207
        %v3506 = vcombine.low %v3206, %v3205
        %v3507 = vcombine.low %v3204, %v3203
        %v3508 = vcombine.low %v3202, %v3217
        %v3510 = vunpack.c.l.s4 1966171168
        %v3511 = vunpack.c.0.s8 %v3510
        %v3512 = vlaneseq
        %v3513 = vshrl.u32 %v3512, 7
        %v3514 = vsub.s32 %v3511, %v3513
        %v3515 = vrot.slane %v3505, %v3514
        %v3517 = vunpack.c.l.s4 1966171168
        %v3518 = vunpack.c.0.s8 %v3517
        %v3519 = vlaneseq
        %v3520 = vshrl.u32 %v3519, 7
        %v3521 = vsub.s32 %v3518, %v3520
        %v3522 = vrot.slane %v3506, %v3521
        %v3524 = vunpack.c.l.s4 1966171168
        %v3525 = vunpack.c.0.s8 %v3524
        %v3526 = vlaneseq
        %v3527 = vshrl.u32 %v3526, 7
        %v3528 = vsub.s32 %v3525, %v3527
        %v3529 = vrot.slane %v3507, %v3528
        %v3531 = vunpack.c.l.s4 1966171168
        %v3532 = vunpack.c.0.s8 %v3531
        %v3533 = vlaneseq
        %v3534 = vshrl.u32 %v3533, 7
        %v3535 = vsub.s32 %v3532, %v3534
        %v3536 = vrot.slane %v3508, %v3535
        %v3537 = vcombine.low %v3515, %v3522
        %v3538 = vcombine.low %v3529, %v3536
        %v3540 = vunpack.c.l.s4 1966171168
        %v3541 = vunpack.c.0.s8 %v3540
        %v3542 = vlaneseq
        %v3543 = vshrl.u32 %v3542, 7
        %v3544 = vsub.s32 %v3541, %v3543
        %v3545 = vrot.slane %v3537, %v3544
        %v3547 = vunpack.c.l.s4 1966171168
        %v3548 = vunpack.c.0.s8 %v3547
        %v3549 = vlaneseq
        %v3550 = vshrl.u32 %v3549, 7
        %v3551 = vsub.s32 %v3548, %v3550
        %v3552 = vrot.slane %v3538, %v3551
        %v3553 = vcombine.low %v3545, %v3552
        %v3556 = vsel %vm1906, %v3504, 0.0
        %v3557 = vsel %vm1907, %v3553, 0.0
        %s3558 = sld [smem:[#allocation3 + $0xe]]
        %v3559 = vstv %s3558
        %v3560 = vmul.f32 %v3559, %v3556
        %v3561 = vmul.f32 %v3559, %v3557
        %v3562 = vadd.f32 %v3454, %v3560
        %v3563 = vadd.f32 %v3455, %v3561
        %v3564 = vcombine.low %v2971, %v2978
        %v3565 = vcombine.low %v2985, %v3013
        %v3567 = vunpack.c.l.s4 1966171168
        %v3568 = vunpack.c.0.s8 %v3567
        %v3569 = vlaneseq
        %v3570 = vshrl.u32 %v3569, 7
        %v3571 = vsub.s32 %v3568, %v3570
        %v3572 = vrot.slane %v3564, %v3571
        %v3574 = vunpack.c.l.s4 1966171168
        %v3575 = vunpack.c.0.s8 %v3574
        %v3576 = vlaneseq
        %v3577 = vshrl.u32 %v3576, 7
        %v3578 = vsub.s32 %v3575, %v3577
        %v3579 = vrot.slane %v3565, %v3578
        %v3580 = vcombine.low %v3572, %v3579
        %v3581 = vcombine.low %v3020, %v3027
        %v3582 = vcombine.low %v3034, %v2964
        %v3584 = vunpack.c.l.s4 1966171168
        %v3585 = vunpack.c.0.s8 %v3584
        %v3586 = vlaneseq
        %v3587 = vshrl.u32 %v3586, 7
        %v3588 = vsub.s32 %v3585, %v3587
        %v3589 = vrot.slane %v3581, %v3588
        %v3591 = vunpack.c.l.s4 1966171168
        %v3592 = vunpack.c.0.s8 %v3591
        %v3593 = vlaneseq
        %v3594 = vshrl.u32 %v3593, 7
        %v3595 = vsub.s32 %v3592, %v3594
        %v3596 = vrot.slane %v3582, %v3595
        %v3597 = vcombine.low %v3589, %v3596
        %v3600 = vsel %vm1912, %v3580, 0.0
        %v3601 = vsel %vm1913, %v3597, 0.0
        %s3602 = sld [smem:[#allocation3 + $0xf]]
        %v3603 = vstv %s3602
        %v3604 = vmul.f32 %v3603, %v3600
        %v3605 = vmul.f32 %v3603, %v3601
        %v3606 = vadd.f32 %v3562, %v3604
        %v3607 = vadd.f32 %v3563, %v3605
        %v3608 = vcombine.low %v3079, %v3086
        %v3609 = vcombine.low %v3093, %v3121
        %v3611 = vunpack.c.l.s4 1966171168
        %v3612 = vunpack.c.0.s8 %v3611
        %v3613 = vlaneseq
        %v3614 = vshrl.u32 %v3613, 7
        %v3615 = vsub.s32 %v3612, %v3614
        %v3616 = vrot.slane %v3608, %v3615
        %v3618 = vunpack.c.l.s4 1966171168
        %v3619 = vunpack.c.0.s8 %v3618
        %v3620 = vlaneseq
        %v3621 = vshrl.u32 %v3620, 7
        %v3622 = vsub.s32 %v3619, %v3621
        %v3623 = vrot.slane %v3609, %v3622
        %v3624 = vcombine.low %v3616, %v3623
        %v3625 = vcombine.low %v3128, %v3135
        %v3626 = vcombine.low %v3142, %v3072
        %v3628 = vunpack.c.l.s4 1966171168
        %v3629 = vunpack.c.0.s8 %v3628
        %v3630 = vlaneseq
        %v3631 = vshrl.u32 %v3630, 7
        %v3632 = vsub.s32 %v3629, %v3631
        %v3633 = vrot.slane %v3625, %v3632
        %v3635 = vunpack.c.l.s4 1966171168
        %v3636 = vunpack.c.0.s8 %v3635
        %v3637 = vlaneseq
        %v3638 = vshrl.u32 %v3637, 7
        %v3639 = vsub.s32 %v3636, %v3638
        %v3640 = vrot.slane %v3626, %v3639
        %v3641 = vcombine.low %v3633, %v3640
        %v3644 = vsel %vm1910, %v3624, 0.0
        %v3645 = vsel %vm1911, %v3641, 0.0
        %s3646 = sld [smem:[#allocation3 + $0x10]]
        %v3647 = vstv %s3646
        %v3648 = vmul.f32 %v3647, %v3644
        %v3649 = vmul.f32 %v3647, %v3645
        %v3650 = vadd.f32 %v3606, %v3648
        %v3651 = vadd.f32 %v3607, %v3649
        %v3652 = vcombine.low %v3251, %v3258
        %v3653 = vcombine.low %v3265, %v3293
        %v3655 = vunpack.c.l.s4 1966171168
        %v3656 = vunpack.c.0.s8 %v3655
        %v3657 = vlaneseq
        %v3658 = vshrl.u32 %v3657, 7
        %v3659 = vsub.s32 %v3656, %v3658
        %v3660 = vrot.slane %v3652, %v3659
        %v3662 = vunpack.c.l.s4 1966171168
        %v3663 = vunpack.c.0.s8 %v3662
        %v3664 = vlaneseq
        %v3665 = vshrl.u32 %v3664, 7
        %v3666 = vsub.s32 %v3663, %v3665
        %v3667 = vrot.slane %v3653, %v3666
        %v3668 = vcombine.low %v3660, %v3667
        %v3669 = vcombine.low %v3300, %v3307
        %v3670 = vcombine.low %v3314, %v3244
        %v3672 = vunpack.c.l.s4 1966171168
        %v3673 = vunpack.c.0.s8 %v3672
        %v3674 = vlaneseq
        %v3675 = vshrl.u32 %v3674, 7
        %v3676 = vsub.s32 %v3673, %v3675
        %v3677 = vrot.slane %v3669, %v3676
        %v3679 = vunpack.c.l.s4 1966171168
        %v3680 = vunpack.c.0.s8 %v3679
        %v3681 = vlaneseq
        %v3682 = vshrl.u32 %v3681, 7
        %v3683 = vsub.s32 %v3680, %v3682
        %v3684 = vrot.slane %v3670, %v3683
        %v3685 = vcombine.low %v3677, %v3684
        %v3688 = vsel %vm1914, %v3668, 0.0
        %v3689 = vsel %vm1915, %v3685, 0.0
        %s3690 = sld [smem:[#allocation3 + $0x11]]
        %v3691 = vstv %s3690
        %v3692 = vmul.f32 %v3691, %v3688
        %v3693 = vmul.f32 %v3691, %v3689
        %v3694 = vadd.f32 %v3650, %v3692
        %v3695 = vadd.f32 %v3651, %v3693
        %v3696 = vxor.u32 %v3694, 2147483648
        %v3697 = vxor.u32 %v3695, 2147483648
        %v3698 = vmul.f32 %v3696, 1.442695
        %v3699 = vpow.pop %v3698
        %v3700 = vmul.f32 %v3697, 1.442695
        %v3701 = vpow.pop %v3700
        %v3702 = vadd.f32 %v3699, 1.0
        %v3703 = vadd.f32 %v3701, 1.0
        %v3704 = vrcp.pop %v3702
        %v3705 = vmul.f32 1.0, %v3704
        %v3706 = vrcp.pop %v3703
        %v3707 = vmul.f32 1.0, %v3706
        %v3710 = vlaneseq
        %v3711 = vshrl.u32 %v3710, 7
        %v3712 = vsub.s32 0, %v3711
        %v3713 = vrot.slane %v3705, %v3712
        %v3714 = vlaneseq
        %v3715 = vshrl.u32 %v3714, 7
        %v3716 = vsub.s32 1, %v3715
        %v3717 = vrot.slane %v3705, %v3716
        %v3718 = vlaneseq
        %v3719 = vshrl.u32 %v3718, 7
        %v3720 = vsub.s32 2, %v3719
        %v3721 = vrot.slane %v3705, %v3720
        %v3722 = vlaneseq
        %v3723 = vshrl.u32 %v3722, 7
        %v3724 = vsub.s32 3, %v3723
        %v3725 = vrot.slane %v3705, %v3724
        %v3726 = vlaneseq
        %v3727 = vshrl.u32 %v3726, 7
        %v3728 = vsub.s32 4, %v3727
        %v3729 = vrot.slane %v3705, %v3728
        %v3730 = vlaneseq
        %v3731 = vshrl.u32 %v3730, 7
        %v3732 = vsub.s32 5, %v3731
        %v3733 = vrot.slane %v3705, %v3732
        %v3734 = vlaneseq
        %v3735 = vshrl.u32 %v3734, 7
        %v3736 = vsub.s32 6, %v3735
        %v3737 = vrot.slane %v3705, %v3736
        %v3738 = vlaneseq
        %v3739 = vshrl.u32 %v3738, 7
        %v3740 = vsub.s32 7, %v3739
        %v3741 = vrot.slane %v3705, %v3740
        %v3742 = vlaneseq
        %v3743 = vshrl.u32 %v3742, 7
        %v3744 = vsub.s32 0, %v3743
        %v3745 = vrot.slane %v3707, %v3744
        %v3746 = vlaneseq
        %v3747 = vshrl.u32 %v3746, 7
        %v3748 = vsub.s32 1, %v3747
        %v3749 = vrot.slane %v3707, %v3748
        %v3750 = vlaneseq
        %v3751 = vshrl.u32 %v3750, 7
        %v3752 = vsub.s32 2, %v3751
        %v3753 = vrot.slane %v3707, %v3752
        %v3754 = vlaneseq
        %v3755 = vshrl.u32 %v3754, 7
        %v3756 = vsub.s32 3, %v3755
        %v3757 = vrot.slane %v3707, %v3756
        %v3758 = vlaneseq
        %v3759 = vshrl.u32 %v3758, 7
        %v3760 = vsub.s32 4, %v3759
        %v3761 = vrot.slane %v3707, %v3760
        %v3762 = vlaneseq
        %v3763 = vshrl.u32 %v3762, 7
        %v3764 = vsub.s32 5, %v3763
        %v3765 = vrot.slane %v3707, %v3764
        %v3766 = vlaneseq
        %v3767 = vshrl.u32 %v3766, 7
        %v3768 = vsub.s32 6, %v3767
        %v3769 = vrot.slane %v3707, %v3768
        %v3770 = vlaneseq
        %v3771 = vshrl.u32 %v3770, 7
        %v3772 = vsub.s32 7, %v3771
        %v3773 = vrot.slane %v3707, %v3772
        %v3790 = vmul.f32 %v1456, %v3713
        %v3791 = vmul.f32 %v1457, %v3717
        %v3792 = vmul.f32 %v1458, %v3721
        %v3793 = vmul.f32 %v1459, %v3725
        %v3794 = vmul.f32 %v1460, %v3729
        %v3795 = vmul.f32 %v1461, %v3733
        %v3796 = vmul.f32 %v1462, %v3737
        %v3797 = vmul.f32 %v1463, %v3741
        %v3798 = vmul.f32 %v1464, %v3745
        %v3799 = vmul.f32 %v1465, %v3749
        %v3800 = vmul.f32 %v1466, %v3753
        %v3801 = vmul.f32 %v1467, %v3757
        %v3802 = vmul.f32 %v1468, %v3761
        %v3803 = vmul.f32 %v1469, %v3765
        %v3804 = vmul.f32 %v1470, %v3769
        %v3805 = vmul.f32 %v1471, %v3773
        %3806 = vst [vmem:[%s324] sm:$0xff] %v3790
        %3807 = vst [vmem:[%s324 + $0x8] sm:$0xff] %v3791
        %3808 = vst [vmem:[%s324 + $0x10] sm:$0xff] %v3792
        %3809 = vst [vmem:[%s324 + $0x18] sm:$0xff] %v3793
        %3810 = vst [vmem:[%s324 + $0x20] sm:$0xff] %v3794
        %3811 = vst [vmem:[%s324 + $0x28] sm:$0xff] %v3795
        %3812 = vst [vmem:[%s324 + $0x30] sm:$0xff] %v3796
        %3813 = vst [vmem:[%s324 + $0x38] sm:$0xff] %v3797
        %3814 = vst [vmem:[%s324 + $0x40] sm:$0xff] %v3798
        %3815 = vst [vmem:[%s324 + $0x48] sm:$0xff] %v3799
        %3816 = vst [vmem:[%s324 + $0x50] sm:$0xff] %v3800
        %3817 = vst [vmem:[%s324 + $0x58] sm:$0xff] %v3801
        %3818 = vst [vmem:[%s324 + $0x60] sm:$0xff] %v3802
        %3819 = vst [vmem:[%s324 + $0x68] sm:$0xff] %v3803
        %3820 = vst [vmem:[%s324 + $0x70] sm:$0xff] %v3804
        %3821 = vst [vmem:[%s324 + $0x78] sm:$0xff] %v3805
        %s3822 = sand.u32 %s190, 1
        %s3823 = scalar_lea.sflag [#allocation6], %s3822
        %s3824 = sand.u32 %s190, 1
        %s3825 = smul.addr %s3824, 128
        %s3826 = scalar_lea.vmem [#allocation10], %s3825
        // Predicated region
        $region61: #{tpu_custom_call.1} parent=47 // pred_check
          %p3827 = pneg %p200
        $region62: #{tpu_custom_call.1} parent=47 // pred_check_branch
          %3829 = sbr.rel (%p3827) target = $region64
        $region63: #{tpu_custom_call.1} parent=47 // pred_region
          %s3831 = ssub.s32 2048, 2048
          %3832 = vsyncadd %s3823, %s3831
          %s3833 = smul.addr %s30, 16
          %s3834 = smul.addr %s3833, 128
          %s3835 = scalar_lea.hbm %s8, %s3834
          %s3837 = sshll.u32 %s3826, 4
          %s3838 = int_to_ptr.vmem [resolvable:$true] %s3837
          %3840 = dma.vmem_to_hbm [thread:$0]  %s3838, 2048, %s3835, %s3823
        $region64: #{tpu_custom_call.1} parent=47 // pred_fallthru
          _
      $region48: #{tpu_custom_call.1} parent=5 // pred_fallthru
        _
      %p3841 = scmp.le.s32.totalorder 2, %s25
      // Predicated region
      $region65: #{tpu_custom_call.1} parent=5 // pred_check
        %p3842 = pneg %p3841
      $region66: #{tpu_custom_call.1} parent=5 // pred_check_branch
        %3844 = sbr.rel (%p3842) target = $region68
      $region67: #{tpu_custom_call.1} parent=5 // pred_region
        %s3845 = ssub.s32 %s25, 2
        // Predicated region
        $region69: #{tpu_custom_call.1} parent=67 // pred_check
          %p3846 = pneg %p206
        $region70: #{tpu_custom_call.1} parent=67 // pred_check_branch
          %3848 = sbr.rel (%p3846) target = $region72
        $region71: #{tpu_custom_call.1} parent=67 // pred_region
          %s3849 = sand.u32 %s191, 1
          %s3850 = scalar_lea.sflag [#allocation6], %s3849
          %s3851 = sand.u32 %s191, 1
          %s3852 = smul.addr %s3851, 128
          %s3853 = scalar_lea.vmem [#allocation10], %s3852
          %3854 = dma.done %s3850, 2048
        $region72: #{tpu_custom_call.1} parent=67 // pred_fallthru
          _
      $region68: #{tpu_custom_call.1} parent=5 // pred_fallthru
        _
    $region6: #{tpu_custom_call.1} parent=1 // loop_footer
      %s29 = sadd.s32 1, %s25
    $region7: #{tpu_custom_call.1} parent=1 // loop_footer_branch
      %24 = sbr.rel target = $region3
    $region8: #{tpu_custom_call.1} parent=1 // loop_exit
      _
    %3855 = vsyncpa [#allocation5], 1
    %s3856 = scalar_lea.sflag [#allocation5], 1
    %3857 = vsyncpa %s3856, 1
    %3858 = vsyncpa [#allocation8], 1
    %3859 = vsyncpa [#allocation6], 1
    %s3860 = scalar_lea.sflag [#allocation6], 1
    %3861 = vsyncpa %s3860, 1

</llo_original>
